<compile_context>
chip_gen: v5e
topology: v5e:2x2
jax: 0.10.0
libtpu: 0.0.40
codegen_flags: <defaults>
</compile_context>

<pallas_src>
import math
from functools import partial

import jax
import jax.numpy as jnp
from jax.experimental import pallas as pl
from jax.experimental.pallas import tpu as pltpu

LN_EPS = 1e-5                      # PyTorch nn.LayerNorm default
_MM_DTYPE = jnp.bfloat16           # matmul-operand dtype (f32 accumulation)

# rows of the packed per-layer vector table (all zero-padded to Hp lanes)
_BO1, _G1, _BE1, _BQ2, _BO2, _G2, _BE2, _B2F, _GF, _BEF = range(10)
_NUM_VEC = 10


def _round_up(x, m):
    return (x + m - 1) // m * m


# ------------------------------- kernel ------------------------------------ #
def _decoder_stack_kernel(
    # layer-invariant inputs (fetched once, constant block index)
    x0_ref,        # (B, Tt, Hp)  f32   embedded targets + positional enc.
    enc_ref,       # (B, Ts, Hp)  bf16  encoder output (padded cols zero)
    tb_ref,        # (B, 1, Tt)   f32   additive self-attn mask bias
    sb_ref,        # (B, 1, Ts)   f32   additive cross-attn mask bias
    # per-layer weights (leading layer axis squeezed by BlockSpec)
    wqkv1_ref,     # (Hp, 3*Hp)        bf16  fused Q|K|V self-attn proj (Q pre-scaled)
    wo1_ref,       # (nh, hd, Hp)      bf16  self-attn out proj, split per head
    wq2_ref,       # (Hp, Hp)          bf16  cross-attn Q proj (pre-scaled)
    wkv2_ref,      # (Hp, 2*Hp)        bf16  fused K|V cross-attn proj
    wo2_ref,       # (nh, hd, Hp)      bf16
    w1_ref,        # (Hp, Fp)          bf16  FFN linear1
    w2_ref,        # (Fp, Hp)          bf16  FFN linear2
    bqkv1_ref,     # (1, 3*Hp) f32
    bkv2_ref,      # (1, 2*Hp) f32
    b1f_ref,       # (1, Fp)   f32
    vec_ref,       # (_NUM_VEC, Hp) f32 packed biases / LayerNorm params
    # carried state / output
    x_ref,         # (B, Tt, Hp) f32
    *, hidden, num_heads,
):
    B, Tq, Hp = x_ref.shape
    Ts = enc_ref.shape[1]
    H = hidden
    nh = num_heads
    hd = H // nh

    # Layer 0: seed the carried activation block from the embedded input.
    @pl.when(pl.program_id(0) == 0)
    def _():
        x_ref[...] = x0_ref[...]

    xf = x_ref[...].reshape(B * Tq, Hp)             # residual stream (f32)
    vec = vec_ref[...]

    # Column mask over the real hidden width (padded cols of activations are 0).
    col_real = jax.lax.broadcasted_iota(jnp.int32, (1, Hp), 1) < H

    def layer_norm(zf, gamma, beta):
        # padded columns of zf are exactly zero -> full-width sums equal sums
        # over the real H columns; statistics use the real width H.
        mu = jnp.sum(zf, axis=-1, keepdims=True) * (1.0 / H)
        d = jnp.where(col_real, zf - mu, 0.0)
        var = jnp.sum(d * d, axis=-1, keepdims=True) * (1.0 / H)
        return d * jax.lax.rsqrt(var + LN_EPS) * gamma + beta

    def attention(q, kv, n_kv, bias, wo_heads, bo):
        """q: (B*Tq, Hp) f32 (1/sqrt(d) already folded into W_q);
        kv: (B*n_kv, 2*Hp) f32 with K in [:, :Hp] and V in [:, Hp:];
        bias: (B, 1, n_kv) additive; wo_heads: (nh, hd, Hp) bf16; bo: (1, Hp)."""
        bias_full = jnp.broadcast_to(bias, (B, Tq, n_kv))   # hoisted out of head loop
        out = jnp.zeros((B * Tq, Hp), jnp.float32)
        for h in range(nh):                                  # unrolled at trace time
            lo, hi = h * hd, (h + 1) * hd
            qh = q[:, lo:hi].reshape(B, Tq, hd)              # leading-dim split only
            kh = kv[:, lo:hi].reshape(B, n_kv, hd)
            vh = kv[:, Hp + lo:Hp + hi].reshape(B, n_kv, hd)
            s = jnp.einsum("bqd,bkd->bqk", qh, kh,
                           preferred_element_type=jnp.float32) + bias_full
            s = s - jnp.max(s, axis=-1, keepdims=True)
            p = jnp.exp(s)
            attn = p * pl.reciprocal(jnp.sum(p, axis=-1, keepdims=True), approx=True)
            ctx = jnp.einsum("bqk,bkd->bqd", attn, vh,
                             preferred_element_type=jnp.float32)
            # fold this head's context straight through its slice of W_o; the
            # (hd=8)-lane context is never materialised / concatenated, every
            # accumulated product is a full-128-lane result.
            out = out + jnp.dot(
                ctx.reshape(B * Tq, hd).astype(_MM_DTYPE), wo_heads[h],
                preferred_element_type=jnp.float32)
        return out + bo

    # ------------------------- self attention ----------------------------- #
    qkv1 = jnp.dot(xf.astype(_MM_DTYPE), wqkv1_ref[...],
                   preferred_element_type=jnp.float32) + bqkv1_ref[...]
    a1 = attention(qkv1[:, :Hp], qkv1[:, Hp:], Tq, tb_ref[...],
                   wo1_ref[...], vec[_BO1:_BO1 + 1])
    x1 = layer_norm(a1 + xf, vec[_G1:_G1 + 1], vec[_BE1:_BE1 + 1])

    # ------------------------- cross attention ---------------------------- #
    q2 = jnp.dot(x1.astype(_MM_DTYPE), wq2_ref[...],
                 preferred_element_type=jnp.float32) + vec[_BQ2:_BQ2 + 1]
    kv2 = jnp.dot(enc_ref[...].reshape(B * Ts, Hp), wkv2_ref[...],
                  preferred_element_type=jnp.float32) + bkv2_ref[...]
    a2 = attention(q2, kv2, Ts, sb_ref[...], wo2_ref[...], vec[_BO2:_BO2 + 1])
    x2 = layer_norm(a2 + x1, vec[_G2:_G2 + 1], vec[_BE2:_BE2 + 1])

    # ------------------------- feed forward -------------------------------- #
    h1 = jnp.maximum(
        jnp.dot(x2.astype(_MM_DTYPE), w1_ref[...],
                preferred_element_type=jnp.float32) + b1f_ref[...], 0.0)
    y = jnp.dot(h1.astype(_MM_DTYPE), w2_ref[...],
                preferred_element_type=jnp.float32) + vec[_B2F:_B2F + 1]
    x3 = layer_norm(y + x2, vec[_GF:_GF + 1], vec[_BEF:_BEF + 1])

    x_ref[...] = x3.reshape(B, Tq, Hp)


# ------------------------------ wrapper ------------------------------------ #
def decoder_forward(params, target_ids, encoder_output, source_mask, target_mask,
                    *, hidden, num_heads):
    B, Tt = target_ids.shape
    Ts = encoder_output.shape[1]
    L, Hp, _ = params["wq2"].shape
    Fp = params["w1"].shape[2]
    hd = hidden // num_heads
    nh = num_heads

    # Embedding gather + positional encoding (tiny, data-dependent gather ->
    # stays in XLA).  NOTE (reference parity): the PyTorch PositionalEncoding
    # expects [seq, batch, H] but the Decoder feeds it a batch-first tensor, so
    # pe[:B] of shape [B, 1, H] broadcasts over the sequence dim.  Reproduced
    # exactly on purpose.
    x0 = params["emb"][target_ids] + params["pe"][:B]           # (B, Tt, Hp) f32

    enc = jnp.pad(encoder_output,
                  ((0, 0), (0, 0), (0, Hp - hidden))).astype(_MM_DTYPE)

    # Additive mask biases (0 = keep, -1e9 = masked); broadcast over heads and
    # query positions exactly like the reference's double unsqueeze.  (The
    # reference self-attention mask is whatever the caller passes -- here a
    # padding mask, no causal mask, matching the spec.)
    tgt_bias = ((target_mask.astype(jnp.float32) - 1.0) * 1e9)[:, None, :]
    src_bias = ((source_mask.astype(jnp.float32) - 1.0) * 1e9)[:, None, :]

    kernel = partial(_decoder_stack_kernel, hidden=hidden, num_heads=num_heads)

    out = pl.pallas_call(
        kernel,
        out_shape=jax.ShapeDtypeStruct((B, Tt, Hp), jnp.float32),
        grid=(L,),
        in_specs=[
            pl.BlockSpec((B, Tt, Hp), lambda l: (0, 0, 0)),        # x0
            pl.BlockSpec((B, Ts, Hp), lambda l: (0, 0, 0)),        # encoder output
            pl.BlockSpec((B, 1, Tt), lambda l: (0, 0, 0)),         # tgt mask bias
            pl.BlockSpec((B, 1, Ts), lambda l: (0, 0, 0)),         # src mask bias
            pl.BlockSpec((None, Hp, 3 * Hp), lambda l: (l, 0, 0)),     # wqkv1
            pl.BlockSpec((None, nh, hd, Hp), lambda l: (l, 0, 0, 0)),  # wo1
            pl.BlockSpec((None, Hp, Hp), lambda l: (l, 0, 0)),         # wq2
            pl.BlockSpec((None, Hp, 2 * Hp), lambda l: (l, 0, 0)),     # wkv2
            pl.BlockSpec((None, nh, hd, Hp), lambda l: (l, 0, 0, 0)),  # wo2
            pl.BlockSpec((None, Hp, Fp), lambda l: (l, 0, 0)),         # w1
            pl.BlockSpec((None, Fp, Hp), lambda l: (l, 0, 0)),         # w2
            pl.BlockSpec((None, 1, 3 * Hp), lambda l: (l, 0, 0)),      # bqkv1
            pl.BlockSpec((None, 1, 2 * Hp), lambda l: (l, 0, 0)),      # bkv2
            pl.BlockSpec((None, 1, Fp), lambda l: (l, 0, 0)),          # b1 (FFN)
            pl.BlockSpec((None, _NUM_VEC, Hp), lambda l: (l, 0, 0)),   # packed vecs
        ],
        # Carried activation: constant output block index across the layer
        # axis keeps x resident in VMEM for the whole stack (written back to
        # HBM once at the end).
        out_specs=pl.BlockSpec((B, Tt, Hp), lambda l: (0, 0, 0)),
        compiler_params=pltpu.CompilerParams(
            dimension_semantics=("arbitrary",),      # layer axis carries state
            vmem_limit_bytes=32 * 1024 * 1024,       # safe on v5e/v6e/v7x
        ),
    )(
        x0, enc, tgt_bias, src_bias,
        params["wqkv1"], params["wo1"], params["wq2"], params["wkv2"],
        params["wo2"], params["w1"], params["w2"],
        params["bqkv1"], params["bkv2"], params["b1f"], params["vec"],
    )
    return out[:, :, :hidden]


# ----------------------------- parameters ---------------------------------- #
def init_params(key, vocab, hidden, filt, num_layers, num_heads, max_len=512):
    assert hidden % num_heads == 0
    Hp = _round_up(hidden, 128)
    Fp = _round_up(filt, 128)
    head_dim = hidden // num_heads
    inv_sqrt_d = 1.0 / math.sqrt(float(head_dim))

    def lin_w(k, din, dout):
        return (jax.random.normal(k, (din, dout)) / math.sqrt(din)).astype(jnp.float32)

    def pad2(w, rows, cols):
        return jnp.zeros((rows, cols), jnp.float32).at[: w.shape[0], : w.shape[1]].set(w)

    def pad_last(w, cols):
        pad_cfg = [(0, 0)] * (w.ndim - 1) + [(0, cols - w.shape[-1])]
        return jnp.pad(w, pad_cfg)

    def padv(v, n):
        return jnp.zeros((n,), jnp.float32).at[: v.shape[0]].set(v)

    keys = jax.random.split(key, 1 + num_layers)

    emb = jax.random.normal(keys[0], (vocab, hidden)) * 0.02
    emb_p = pad2(emb, vocab, Hp)                                  # padded cols zero

    # positional encoding buffer, shape (max_len, 1, Hp) like the PyTorch module
    position = jnp.arange(max_len, dtype=jnp.float32)[:, None]
    div_term = jnp.exp(jnp.arange(0, hidden, 2, dtype=jnp.float32)
                       * (-math.log(10000.0) / hidden))
    pe = jnp.zeros((max_len, hidden), jnp.float32)
    pe = pe.at[:, 0::2].set(jnp.sin(position * div_term))
    pe = pe.at[:, 1::2].set(jnp.cos(position * div_term))
    pe_p = pad2(pe, max_len, Hp)[:, None, :]

    ones_h = padv(jnp.ones(hidden, jnp.float32), Hp)   # LN gamma (padding = 0!)
    zeros_h = jnp.zeros((Hp,), jnp.float32)

    wqkv1_l, wo1_l, wq2_l, wkv2_l, wo2_l, w1_l, w2_l = [], [], [], [], [], [], []
    bqkv1_l, bkv2_l, b1f_l, vec_l = [], [], [], []

    for i in range(num_layers):
        lk = jax.random.split(keys[1 + i], 10)
        wq1 = lin_w(lk[0], hidden, hidden) * inv_sqrt_d   # score scale folded in
        wk1 = lin_w(lk[1], hidden, hidden)
        wv1 = lin_w(lk[2], hidden, hidden)
        wo1 = lin_w(lk[3], hidden, hidden)
        wq2 = lin_w(lk[4], hidden, hidden) * inv_sqrt_d
        wk2 = lin_w(lk[5], hidden, hidden)
        wv2 = lin_w(lk[6], hidden, hidden)
        wo2 = lin_w(lk[7], hidden, hidden)
        w1 = lin_w(lk[8], hidden, filt)
        w2 = lin_w(lk[9], filt, hidden)

        wqkv1_l.append(jnp.concatenate(
            [pad2(wq1, Hp, Hp), pad2(wk1, Hp, Hp), pad2(wv1, Hp, Hp)], axis=1))
        wkv2_l.append(jnp.concatenate(
            [pad2(wk2, Hp, Hp), pad2(wv2, Hp, Hp)], axis=1))
        wq2_l.append(pad2(wq2, Hp, Hp))
        # W_o stored pre-split per head: (num_heads, head_dim, Hp)
        wo1_l.append(pad_last(wo1.reshape(num_heads, head_dim, hidden), Hp))
        wo2_l.append(pad_last(wo2.reshape(num_heads, head_dim, hidden), Hp))
        w1_l.append(pad2(w1, Hp, Fp))
        w2_l.append(pad2(w2, Fp, Hp))

        # Linear biases are zero-initialised (as in the previous version); the
        # Q biases would also carry the folded 1/sqrt(d) scale if non-zero.
        bqkv1_l.append(jnp.zeros((1, 3 * Hp), jnp.float32))
        bkv2_l.append(jnp.zeros((1, 2 * Hp), jnp.float32))
        b1f_l.append(jnp.zeros((1, Fp), jnp.float32))
        vec_l.append(jnp.stack([
            zeros_h,   # _BO1  self-attn out-proj bias
            ones_h,    # _G1   LN1 gamma
            zeros_h,   # _BE1  LN1 beta
            zeros_h,   # _BQ2  cross-attn Q bias (pre-scaled if non-zero)
            zeros_h,   # _BO2  cross-attn out-proj bias
            ones_h,    # _G2   LN2 gamma
            zeros_h,   # _BE2  LN2 beta
            zeros_h,   # _B2F  FFN linear2 bias
            ones_h,    # _GF   LN3 gamma
            zeros_h,   # _BEF  LN3 beta
        ]))

    return dict(
        emb=emb_p,
        pe=pe_p,
        wqkv1=jnp.stack(wqkv1_l).astype(_MM_DTYPE),
        wo1=jnp.stack(wo1_l).astype(_MM_DTYPE),
        wq2=jnp.stack(wq2_l).astype(_MM_DTYPE),
        wkv2=jnp.stack(wkv2_l).astype(_MM_DTYPE),
        wo2=jnp.stack(wo2_l).astype(_MM_DTYPE),
        w1=jnp.stack(w1_l).astype(_MM_DTYPE),
        w2=jnp.stack(w2_l).astype(_MM_DTYPE),
        bqkv1=jnp.stack(bqkv1_l),
        bkv2=jnp.stack(bkv2_l),
        b1f=jnp.stack(b1f_l),
        vec=jnp.stack(vec_l),
    )


# -------------------------------- main -------------------------------------- #
if __name__ == "__main__":
    B, T_TGT, T_SRC = 2, 8, 16
    HIDDEN, NUM_HEADS, FILTER, NUM_LAYERS, VOCAB = 32, 4, 64, 2, 50

    key = jax.random.PRNGKey(0)
    pkey, ikey, ekey = jax.random.split(key, 3)
    params = init_params(pkey, VOCAB, HIDDEN, FILTER, NUM_LAYERS, NUM_HEADS)

    target_ids = jax.random.randint(ikey, (B, T_TGT), 0, VOCAB)
    encoder_output = jax.random.normal(ekey, (B, T_SRC, HIDDEN), jnp.float32)
    # padding masks (1 = keep, 0 = masked); [B, seq] so the reference's double
    # unsqueeze broadcasts over heads and query positions.
    source_mask = jnp.ones((B, T_SRC), jnp.float32).at[1, T_SRC - 3:].set(0.0)
    target_mask = jnp.ones((B, T_TGT), jnp.float32).at[0, T_TGT - 2:].set(0.0)

    fwd = jax.jit(partial(decoder_forward, hidden=HIDDEN, num_heads=NUM_HEADS))
    out = fwd(params, target_ids, encoder_output, source_mask, target_mask)
    out = jax.block_until_ready(out)

    assert out.shape == (B, T_TGT, HIDDEN) and out.dtype == jnp.float32
    assert bool(jnp.all(jnp.isfinite(out)))
    print("KERNEL_OK")
</pallas_src>

<mosaic_0001>
module attributes {stable_mosaic.version = 11 : i64} {
  func.func @_decoder_stack_kernel(%arg0: i32, %arg1: memref<2x8x128xf32, #tpu.memory_space<vmem>>, %arg2: memref<2x16x128xbf16, #tpu.memory_space<vmem>>, %arg3: memref<2x1x8xf32, #tpu.memory_space<vmem>>, %arg4: memref<2x1x16xf32, #tpu.memory_space<vmem>>, %arg5: memref<1x128x384xbf16, #tpu.memory_space<vmem>>, %arg6: memref<1x4x8x128xbf16, #tpu.memory_space<vmem>>, %arg7: memref<1x128x128xbf16, #tpu.memory_space<vmem>>, %arg8: memref<1x128x256xbf16, #tpu.memory_space<vmem>>, %arg9: memref<1x4x8x128xbf16, #tpu.memory_space<vmem>>, %arg10: memref<1x128x128xbf16, #tpu.memory_space<vmem>>, %arg11: memref<1x128x128xbf16, #tpu.memory_space<vmem>>, %arg12: memref<1x1x384xf32, #tpu.memory_space<vmem>>, %arg13: memref<1x1x256xf32, #tpu.memory_space<vmem>>, %arg14: memref<1x1x128xf32, #tpu.memory_space<vmem>>, %arg15: memref<1x10x128xf32, #tpu.memory_space<vmem>>, %arg16: memref<2x8x128xf32, #tpu.memory_space<vmem>>) attributes {dimension_semantics = [#tpu.dimension_semantics<arbitrary>], iteration_bounds = array<i64: 2>, scalar_prefetch = 0 : i64, scratch_operands = 0 : i64, tpu.core_type = #tpu.core_type<tc>, window_params = [{pipeline_mode = #tpu.pipeline_mode<synchronous>, transform_indices = @transform_0, window_bounds = array<i64: 2, 8, 128>}, {pipeline_mode = #tpu.pipeline_mode<synchronous>, transform_indices = @transform_1, window_bounds = array<i64: 2, 16, 128>}, {pipeline_mode = #tpu.pipeline_mode<synchronous>, transform_indices = @transform_2, window_bounds = array<i64: 2, 1, 8>}, {pipeline_mode = #tpu.pipeline_mode<synchronous>, transform_indices = @transform_3, window_bounds = array<i64: 2, 1, 16>}, {transform_indices = @transform_4, window_bounds = array<i64: 1, 128, 384>}, {transform_indices = @transform_5, window_bounds = array<i64: 1, 4, 8, 128>}, {transform_indices = @transform_6, window_bounds = array<i64: 1, 128, 128>}, {transform_indices = @transform_7, window_bounds = array<i64: 1, 128, 256>}, {transform_indices = @transform_8, window_bounds = array<i64: 1, 4, 8, 128>}, {transform_indices = @transform_9, window_bounds = array<i64: 1, 128, 128>}, {transform_indices = @transform_10, window_bounds = array<i64: 1, 128, 128>}, {transform_indices = @transform_11, window_bounds = array<i64: 1, 1, 384>}, {transform_indices = @transform_12, window_bounds = array<i64: 1, 1, 256>}, {transform_indices = @transform_13, window_bounds = array<i64: 1, 1, 128>}, {transform_indices = @transform_14, window_bounds = array<i64: 1, 10, 128>}, {pipeline_mode = #tpu.pipeline_mode<synchronous>, transform_indices = @transform_15, window_bounds = array<i64: 2, 8, 128>}]} {
    %c0_i32 = arith.constant 0 : i32
    %0 = arith.cmpi eq, %arg0, %c0_i32 : i32
    %1 = arith.extui %0 : i1 to i32
    %c0_i32_0 = arith.constant 0 : i32
    %2 = arith.cmpi ne, %1, %c0_i32_0 : i32
    scf.if %2 {
      %c0_115 = arith.constant 0 : index
      %c0_116 = arith.constant 0 : index
      %c0_117 = arith.constant 0 : index
      %354 = vector.load %arg1[%c0_115, %c0_116, %c0_117] : memref<2x8x128xf32, #tpu.memory_space<vmem>>, vector<2x8x128xf32>
      %c0_118 = arith.constant 0 : index
      %c0_119 = arith.constant 0 : index
      %c0_120 = arith.constant 0 : index
      %355 = vector.load %arg16[%c0_118, %c0_119, %c0_120] : memref<2x8x128xf32, #tpu.memory_space<vmem>>, vector<2x8x128xf32>
      tpu.vector_store %arg16[%c0_118, %c0_119, %c0_120], %354 {strides = array<i32>} : memref<2x8x128xf32, #tpu.memory_space<vmem>>, vector<2x8x128xf32>,
    } else {
    }
    %c0 = arith.constant 0 : index
    %c0_1 = arith.constant 0 : index
    %c0_2 = arith.constant 0 : index
    %3 = vector.load %arg16[%c0, %c0_1, %c0_2] : memref<2x8x128xf32, #tpu.memory_space<vmem>>, vector<2x8x128xf32>
    %4 = vector.shape_cast %3 : vector<2x8x128xf32> to vector<16x128xf32>
    %c0_3 = arith.constant 0 : index
    %c0_4 = arith.constant 0 : index
    %c0_5 = arith.constant 0 : index
    %5 = vector.load %arg15[%c0_3, %c0_4, %c0_5] : memref<1x10x128xf32, #tpu.memory_space<vmem>>, vector<1x10x128xf32>
    %6 = vector.shape_cast %5 : vector<1x10x128xf32> to vector<10x128xf32>
    %7 = tpu.iota {dimensions = array<i32: 1>} : vector<1x128xi32>
    %c32_i32 = arith.constant 32 : i32
    %8 = vector.broadcast %c32_i32 : i32 to vector<1x128xi32>
    %9 = arith.cmpi slt, %7, %8 : vector<1x128xi32>
    %10 = arith.truncf %4 : vector<16x128xf32> to vector<16x128xbf16>
    %c0_6 = arith.constant 0 : index
    %c0_7 = arith.constant 0 : index
    %c0_8 = arith.constant 0 : index
    %11 = vector.load %arg5[%c0_6, %c0_7, %c0_8] : memref<1x128x384xbf16, #tpu.memory_space<vmem>>, vector<1x128x384xbf16>
    %12 = vector.shape_cast %11 : vector<1x128x384xbf16> to vector<128x384xbf16>
    %cst = arith.constant dense<0.000000e+00> : vector<16x384xf32>
    %13 = tpu.matmul %10, %12, %cst {dimension_numbers = #tpu.dot_dimension_numbers<[1], [0], [0], [1], [0, 0, 1, 1], [], []>} : vector<16x128xbf16>, vector<128x384xbf16>, vector<16x384xf32> -> vector<16x384xf32>
    %c0_9 = arith.constant 0 : index
    %c0_10 = arith.constant 0 : index
    %c0_11 = arith.constant 0 : index
    %14 = vector.load %arg12[%c0_9, %c0_10, %c0_11] : memref<1x1x384xf32, #tpu.memory_space<vmem>>, vector<1x1x384xf32>
    %15 = vector.shape_cast %14 : vector<1x1x384xf32> to vector<1x384xf32>
    %16 = vector.broadcast %15 : vector<1x384xf32> to vector<16x384xf32>
    %17 = arith.addf %13, %16 : vector<16x384xf32>
    %18 = vector.extract_strided_slice %17 {offsets = [0, 0], sizes = [16, 128], strides = [1, 1]} : vector<16x384xf32> to vector<16x128xf32>
    %19 = vector.extract_strided_slice %17 {offsets = [0, 128], sizes = [16, 256], strides = [1, 1]} : vector<16x384xf32> to vector<16x256xf32>
    %c0_12 = arith.constant 0 : index
    %c0_13 = arith.constant 0 : index
    %c0_14 = arith.constant 0 : index
    %20 = vector.load %arg3[%c0_12, %c0_13, %c0_14] : memref<2x1x8xf32, #tpu.memory_space<vmem>>, vector<2x1x8xf32>
    %c0_15 = arith.constant 0 : index
    %c0_16 = arith.constant 0 : index
    %c0_17 = arith.constant 0 : index
    %c0_18 = arith.constant 0 : index
    %21 = vector.load %arg6[%c0_15, %c0_16, %c0_17, %c0_18] : memref<1x4x8x128xbf16, #tpu.memory_space<vmem>>, vector<1x4x8x128xbf16>
    %22 = vector.shape_cast %21 : vector<1x4x8x128xbf16> to vector<4x8x128xbf16>
    %23 = vector.extract_strided_slice %6 {offsets = [0, 0], sizes = [1, 128], strides = [1, 1]} : vector<10x128xf32> to vector<1x128xf32>
    %24 = vector.shape_cast %20 : vector<2x1x8xf32> to vector<2x1x8xf32>
    %25 = vector.broadcast %24 : vector<2x1x8xf32> to vector<2x8x8xf32>
    %cst_19 = arith.constant 0.000000e+00 : f32
    %26 = vector.broadcast %cst_19 : f32 to vector<16x128xf32>
    %27 = vector.extract_strided_slice %18 {offsets = [0, 0], sizes = [16, 8], strides = [1, 1]} : vector<16x128xf32> to vector<16x8xf32>
    %28 = vector.shape_cast %27 : vector<16x8xf32> to vector<2x8x8xf32>
    %29 = vector.extract_strided_slice %19 {offsets = [0, 0], sizes = [16, 8], strides = [1, 1]} : vector<16x256xf32> to vector<16x8xf32>
    %30 = vector.shape_cast %29 : vector<16x8xf32> to vector<2x8x8xf32>
    %31 = vector.extract_strided_slice %19 {offsets = [0, 128], sizes = [16, 8], strides = [1, 1]} : vector<16x256xf32> to vector<16x8xf32>
    %32 = vector.shape_cast %31 : vector<16x8xf32> to vector<2x8x8xf32>
    "tpu.trace_start"() <{level = 10 : i32, message = "bqd,bkd->bqk"}> : () -> ()
    %cst_20 = arith.constant dense<0.000000e+00> : vector<2x8x8xf32>
    %33 = tpu.matmul %28, %30, %cst_20 {dimension_numbers = #tpu.dot_dimension_numbers<[2], [2], [1], [1], [0, 0, 0, 1, 1, 1], [0], [0]>} : vector<2x8x8xf32>, vector<2x8x8xf32>, vector<2x8x8xf32> -> vector<2x8x8xf32>
    "tpu.trace_stop"() : () -> ()
    %34 = arith.addf %33, %25 : vector<2x8x8xf32>
    %cst_21 = arith.constant dense<0xFF800000> : vector<2x8xf32>
    %35 = vector.multi_reduction <maximumf>, %34, %cst_21 [2] : vector<2x8x8xf32> to vector<2x8xf32>
    %36 = vector.shape_cast %35 : vector<2x8xf32> to vector<2x8x1xf32>
    %37 = vector.broadcast %36 : vector<2x8x1xf32> to vector<2x8x8xf32>
    %38 = arith.subf %34, %37 : vector<2x8x8xf32>
    %39 = math.exp %38 : vector<2x8x8xf32>
    %cst_22 = arith.constant dense<0.000000e+00> : vector<2x8xf32>
    %40 = vector.multi_reduction <add>, %39, %cst_22 [2] : vector<2x8x8xf32> to vector<2x8xf32>
    %41 = vector.shape_cast %40 : vector<2x8xf32> to vector<2x8x1xf32>
    %42 = tpu.reciprocal %41 {approx = true} : vector<2x8x1xf32> -> vector<2x8x1xf32>
    %43 = vector.broadcast %42 : vector<2x8x1xf32> to vector<2x8x8xf32>
    %44 = arith.mulf %39, %43 : vector<2x8x8xf32>
    "tpu.trace_start"() <{level = 10 : i32, message = "bqk,bkd->bqd"}> : () -> ()
    %cst_23 = arith.constant dense<0.000000e+00> : vector<2x8x8xf32>
    %45 = tpu.matmul %44, %32, %cst_23 {dimension_numbers = #tpu.dot_dimension_numbers<[2], [1], [1], [2], [0, 0, 0, 1, 1, 2], [0], [0]>} : vector<2x8x8xf32>, vector<2x8x8xf32>, vector<2x8x8xf32> -> vector<2x8x8xf32>
    "tpu.trace_stop"() : () -> ()
    %46 = vector.shape_cast %45 : vector<2x8x8xf32> to vector<16x8xf32>
    %47 = arith.truncf %46 : vector<16x8xf32> to vector<16x8xbf16>
    %48 = vector.extract_strided_slice %22 {offsets = [0, 0, 0], sizes = [1, 8, 128], strides = [1, 1, 1]} : vector<4x8x128xbf16> to vector<1x8x128xbf16>
    %49 = vector.shape_cast %48 : vector<1x8x128xbf16> to vector<8x128xbf16>
    %cst_24 = arith.constant dense<0.000000e+00> : vector<16x128xf32>
    %50 = tpu.matmul %47, %49, %cst_24 {dimension_numbers = #tpu.dot_dimension_numbers<[1], [0], [0], [1], [0, 0, 1, 1], [], []>} : vector<16x8xbf16>, vector<8x128xbf16>, vector<16x128xf32> -> vector<16x128xf32>
    %51 = arith.addf %26, %50 : vector<16x128xf32>
    %52 = vector.extract_strided_slice %18 {offsets = [0, 8], sizes = [16, 8], strides = [1, 1]} : vector<16x128xf32> to vector<16x8xf32>
    %53 = vector.shape_cast %52 : vector<16x8xf32> to vector<2x8x8xf32>
    %54 = vector.extract_strided_slice %19 {offsets = [0, 8], sizes = [16, 8], strides = [1, 1]} : vector<16x256xf32> to vector<16x8xf32>
    %55 = vector.shape_cast %54 : vector<16x8xf32> to vector<2x8x8xf32>
    %56 = vector.extract_strided_slice %19 {offsets = [0, 136], sizes = [16, 8], strides = [1, 1]} : vector<16x256xf32> to vector<16x8xf32>
    %57 = vector.shape_cast %56 : vector<16x8xf32> to vector<2x8x8xf32>
    "tpu.trace_start"() <{level = 10 : i32, message = "bqd,bkd->bqk"}> : () -> ()
    %cst_25 = arith.constant dense<0.000000e+00> : vector<2x8x8xf32>
    %58 = tpu.matmul %53, %55, %cst_25 {dimension_numbers = #tpu.dot_dimension_numbers<[2], [2], [1], [1], [0, 0, 0, 1, 1, 1], [0], [0]>} : vector<2x8x8xf32>, vector<2x8x8xf32>, vector<2x8x8xf32> -> vector<2x8x8xf32>
    "tpu.trace_stop"() : () -> ()
    %59 = arith.addf %58, %25 : vector<2x8x8xf32>
    %cst_26 = arith.constant dense<0xFF800000> : vector<2x8xf32>
    %60 = vector.multi_reduction <maximumf>, %59, %cst_26 [2] : vector<2x8x8xf32> to vector<2x8xf32>
    %61 = vector.shape_cast %60 : vector<2x8xf32> to vector<2x8x1xf32>
    %62 = vector.broadcast %61 : vector<2x8x1xf32> to vector<2x8x8xf32>
    %63 = arith.subf %59, %62 : vector<2x8x8xf32>
    %64 = math.exp %63 : vector<2x8x8xf32>
    %cst_27 = arith.constant dense<0.000000e+00> : vector<2x8xf32>
    %65 = vector.multi_reduction <add>, %64, %cst_27 [2] : vector<2x8x8xf32> to vector<2x8xf32>
    %66 = vector.shape_cast %65 : vector<2x8xf32> to vector<2x8x1xf32>
    %67 = tpu.reciprocal %66 {approx = true} : vector<2x8x1xf32> -> vector<2x8x1xf32>
    %68 = vector.broadcast %67 : vector<2x8x1xf32> to vector<2x8x8xf32>
    %69 = arith.mulf %64, %68 : vector<2x8x8xf32>
    "tpu.trace_start"() <{level = 10 : i32, message = "bqk,bkd->bqd"}> : () -> ()
    %cst_28 = arith.constant dense<0.000000e+00> : vector<2x8x8xf32>
    %70 = tpu.matmul %69, %57, %cst_28 {dimension_numbers = #tpu.dot_dimension_numbers<[2], [1], [1], [2], [0, 0, 0, 1, 1, 2], [0], [0]>} : vector<2x8x8xf32>, vector<2x8x8xf32>, vector<2x8x8xf32> -> vector<2x8x8xf32>
    "tpu.trace_stop"() : () -> ()
    %71 = vector.shape_cast %70 : vector<2x8x8xf32> to vector<16x8xf32>
    %72 = arith.truncf %71 : vector<16x8xf32> to vector<16x8xbf16>
    %73 = vector.extract_strided_slice %22 {offsets = [1, 0, 0], sizes = [1, 8, 128], strides = [1, 1, 1]} : vector<4x8x128xbf16> to vector<1x8x128xbf16>
    %74 = vector.shape_cast %73 : vector<1x8x128xbf16> to vector<8x128xbf16>
    %cst_29 = arith.constant dense<0.000000e+00> : vector<16x128xf32>
    %75 = tpu.matmul %72, %74, %cst_29 {dimension_numbers = #tpu.dot_dimension_numbers<[1], [0], [0], [1], [0, 0, 1, 1], [], []>} : vector<16x8xbf16>, vector<8x128xbf16>, vector<16x128xf32> -> vector<16x128xf32>
    %76 = arith.addf %51, %75 : vector<16x128xf32>
    %77 = vector.extract_strided_slice %18 {offsets = [0, 16], sizes = [16, 8], strides = [1, 1]} : vector<16x128xf32> to vector<16x8xf32>
    %78 = vector.shape_cast %77 : vector<16x8xf32> to vector<2x8x8xf32>
    %79 = vector.extract_strided_slice %19 {offsets = [0, 16], sizes = [16, 8], strides = [1, 1]} : vector<16x256xf32> to vector<16x8xf32>
    %80 = vector.shape_cast %79 : vector<16x8xf32> to vector<2x8x8xf32>
    %81 = vector.extract_strided_slice %19 {offsets = [0, 144], sizes = [16, 8], strides = [1, 1]} : vector<16x256xf32> to vector<16x8xf32>
    %82 = vector.shape_cast %81 : vector<16x8xf32> to vector<2x8x8xf32>
    "tpu.trace_start"() <{level = 10 : i32, message = "bqd,bkd->bqk"}> : () -> ()
    %cst_30 = arith.constant dense<0.000000e+00> : vector<2x8x8xf32>
    %83 = tpu.matmul %78, %80, %cst_30 {dimension_numbers = #tpu.dot_dimension_numbers<[2], [2], [1], [1], [0, 0, 0, 1, 1, 1], [0], [0]>} : vector<2x8x8xf32>, vector<2x8x8xf32>, vector<2x8x8xf32> -> vector<2x8x8xf32>
    "tpu.trace_stop"() : () -> ()
    %84 = arith.addf %83, %25 : vector<2x8x8xf32>
    %cst_31 = arith.constant dense<0xFF800000> : vector<2x8xf32>
    %85 = vector.multi_reduction <maximumf>, %84, %cst_31 [2] : vector<2x8x8xf32> to vector<2x8xf32>
    %86 = vector.shape_cast %85 : vector<2x8xf32> to vector<2x8x1xf32>
    %87 = vector.broadcast %86 : vector<2x8x1xf32> to vector<2x8x8xf32>
    %88 = arith.subf %84, %87 : vector<2x8x8xf32>
    %89 = math.exp %88 : vector<2x8x8xf32>
    %cst_32 = arith.constant dense<0.000000e+00> : vector<2x8xf32>
    %90 = vector.multi_reduction <add>, %89, %cst_32 [2] : vector<2x8x8xf32> to vector<2x8xf32>
    %91 = vector.shape_cast %90 : vector<2x8xf32> to vector<2x8x1xf32>
    %92 = tpu.reciprocal %91 {approx = true} : vector<2x8x1xf32> -> vector<2x8x1xf32>
    %93 = vector.broadcast %92 : vector<2x8x1xf32> to vector<2x8x8xf32>
    %94 = arith.mulf %89, %93 : vector<2x8x8xf32>
    "tpu.trace_start"() <{level = 10 : i32, message = "bqk,bkd->bqd"}> : () -> ()
    %cst_33 = arith.constant dense<0.000000e+00> : vector<2x8x8xf32>
    %95 = tpu.matmul %94, %82, %cst_33 {dimension_numbers = #tpu.dot_dimension_numbers<[2], [1], [1], [2], [0, 0, 0, 1, 1, 2], [0], [0]>} : vector<2x8x8xf32>, vector<2x8x8xf32>, vector<2x8x8xf32> -> vector<2x8x8xf32>
    "tpu.trace_stop"() : () -> ()
    %96 = vector.shape_cast %95 : vector<2x8x8xf32> to vector<16x8xf32>
    %97 = arith.truncf %96 : vector<16x8xf32> to vector<16x8xbf16>
    %98 = vector.extract_strided_slice %22 {offsets = [2, 0, 0], sizes = [1, 8, 128], strides = [1, 1, 1]} : vector<4x8x128xbf16> to vector<1x8x128xbf16>
    %99 = vector.shape_cast %98 : vector<1x8x128xbf16> to vector<8x128xbf16>
    %cst_34 = arith.constant dense<0.000000e+00> : vector<16x128xf32>
    %100 = tpu.matmul %97, %99, %cst_34 {dimension_numbers = #tpu.dot_dimension_numbers<[1], [0], [0], [1], [0, 0, 1, 1], [], []>} : vector<16x8xbf16>, vector<8x128xbf16>, vector<16x128xf32> -> vector<16x128xf32>
    %101 = arith.addf %76, %100 : vector<16x128xf32>
    %102 = vector.extract_strided_slice %18 {offsets = [0, 24], sizes = [16, 8], strides = [1, 1]} : vector<16x128xf32> to vector<16x8xf32>
    %103 = vector.shape_cast %102 : vector<16x8xf32> to vector<2x8x8xf32>
    %104 = vector.extract_strided_slice %19 {offsets = [0, 24], sizes = [16, 8], strides = [1, 1]} : vector<16x256xf32> to vector<16x8xf32>
    %105 = vector.shape_cast %104 : vector<16x8xf32> to vector<2x8x8xf32>
    %106 = vector.extract_strided_slice %19 {offsets = [0, 152], sizes = [16, 8], strides = [1, 1]} : vector<16x256xf32> to vector<16x8xf32>
    %107 = vector.shape_cast %106 : vector<16x8xf32> to vector<2x8x8xf32>
    "tpu.trace_start"() <{level = 10 : i32, message = "bqd,bkd->bqk"}> : () -> ()
    %cst_35 = arith.constant dense<0.000000e+00> : vector<2x8x8xf32>
    %108 = tpu.matmul %103, %105, %cst_35 {dimension_numbers = #tpu.dot_dimension_numbers<[2], [2], [1], [1], [0, 0, 0, 1, 1, 1], [0], [0]>} : vector<2x8x8xf32>, vector<2x8x8xf32>, vector<2x8x8xf32> -> vector<2x8x8xf32>
    "tpu.trace_stop"() : () -> ()
    %109 = arith.addf %108, %25 : vector<2x8x8xf32>
    %cst_36 = arith.constant dense<0xFF800000> : vector<2x8xf32>
    %110 = vector.multi_reduction <maximumf>, %109, %cst_36 [2] : vector<2x8x8xf32> to vector<2x8xf32>
    %111 = vector.shape_cast %110 : vector<2x8xf32> to vector<2x8x1xf32>
    %112 = vector.broadcast %111 : vector<2x8x1xf32> to vector<2x8x8xf32>
    %113 = arith.subf %109, %112 : vector<2x8x8xf32>
    %114 = math.exp %113 : vector<2x8x8xf32>
    %cst_37 = arith.constant dense<0.000000e+00> : vector<2x8xf32>
    %115 = vector.multi_reduction <add>, %114, %cst_37 [2] : vector<2x8x8xf32> to vector<2x8xf32>
    %116 = vector.shape_cast %115 : vector<2x8xf32> to vector<2x8x1xf32>
    %117 = tpu.reciprocal %116 {approx = true} : vector<2x8x1xf32> -> vector<2x8x1xf32>
    %118 = vector.broadcast %117 : vector<2x8x1xf32> to vector<2x8x8xf32>
    %119 = arith.mulf %114, %118 : vector<2x8x8xf32>
    "tpu.trace_start"() <{level = 10 : i32, message = "bqk,bkd->bqd"}> : () -> ()
    %cst_38 = arith.constant dense<0.000000e+00> : vector<2x8x8xf32>
    %120 = tpu.matmul %119, %107, %cst_38 {dimension_numbers = #tpu.dot_dimension_numbers<[2], [1], [1], [2], [0, 0, 0, 1, 1, 2], [0], [0]>} : vector<2x8x8xf32>, vector<2x8x8xf32>, vector<2x8x8xf32> -> vector<2x8x8xf32>
    "tpu.trace_stop"() : () -> ()
    %121 = vector.shape_cast %120 : vector<2x8x8xf32> to vector<16x8xf32>
    %122 = arith.truncf %121 : vector<16x8xf32> to vector<16x8xbf16>
    %123 = vector.extract_strided_slice %22 {offsets = [3, 0, 0], sizes = [1, 8, 128], strides = [1, 1, 1]} : vector<4x8x128xbf16> to vector<1x8x128xbf16>
    %124 = vector.shape_cast %123 : vector<1x8x128xbf16> to vector<8x128xbf16>
    %cst_39 = arith.constant dense<0.000000e+00> : vector<16x128xf32>
    %125 = tpu.matmul %122, %124, %cst_39 {dimension_numbers = #tpu.dot_dimension_numbers<[1], [0], [0], [1], [0, 0, 1, 1], [], []>} : vector<16x8xbf16>, vector<8x128xbf16>, vector<16x128xf32> -> vector<16x128xf32>
    %126 = arith.addf %101, %125 : vector<16x128xf32>
    %127 = vector.broadcast %23 : vector<1x128xf32> to vector<16x128xf32>
    %128 = arith.addf %126, %127 : vector<16x128xf32>
    %129 = arith.addf %128, %4 : vector<16x128xf32>
    %130 = vector.extract_strided_slice %6 {offsets = [1, 0], sizes = [1, 128], strides = [1, 1]} : vector<10x128xf32> to vector<1x128xf32>
    %131 = vector.extract_strided_slice %6 {offsets = [2, 0], sizes = [1, 128], strides = [1, 1]} : vector<10x128xf32> to vector<1x128xf32>
    %cst_40 = arith.constant dense<0.000000e+00> : vector<16xf32>
    %132 = vector.multi_reduction <add>, %129, %cst_40 [1] : vector<16x128xf32> to vector<16xf32>
    %133 = vector.shape_cast %132 : vector<16xf32> to vector<16x1xf32>
    %cst_41 = arith.constant 3.125000e-02 : f32
    %134 = vector.broadcast %cst_41 : f32 to vector<16x1xf32>
    %135 = arith.mulf %133, %134 : vector<16x1xf32>
    %136 = vector.broadcast %135 : vector<16x1xf32> to vector<16x128xf32>
    %137 = arith.subf %129, %136 : vector<16x128xf32>
    %cst_42 = arith.constant 0.000000e+00 : f32
    %138 = vector.shape_cast %9 : vector<1x128xi1> to vector<1x128xi1>
    %139 = vector.broadcast %138 : vector<1x128xi1> to vector<16x128xi1>
    %140 = vector.broadcast %cst_42 : f32 to vector<16x128xf32>
    %141 = arith.select %139, %137, %140 : vector<16x128xi1>, vector<16x128xf32>
    %142 = arith.mulf %141, %141 : vector<16x128xf32>
    %cst_43 = arith.constant dense<0.000000e+00> : vector<16xf32>
    %143 = vector.multi_reduction <add>, %142, %cst_43 [1] : vector<16x128xf32> to vector<16xf32>
    %144 = vector.shape_cast %143 : vector<16xf32> to vector<16x1xf32>
    %cst_44 = arith.constant 3.125000e-02 : f32
    %145 = vector.broadcast %cst_44 : f32 to vector<16x1xf32>
    %146 = arith.mulf %144, %145 : vector<16x1xf32>
    %cst_45 = arith.constant 9.99999974E-6 : f32
    %147 = vector.broadcast %cst_45 : f32 to vector<16x1xf32>
    %148 = arith.addf %146, %147 : vector<16x1xf32>
    %149 = math.rsqrt %148 : vector<16x1xf32>
    %150 = vector.broadcast %149 : vector<16x1xf32> to vector<16x128xf32>
    %151 = arith.mulf %141, %150 : vector<16x128xf32>
    %152 = vector.broadcast %130 : vector<1x128xf32> to vector<16x128xf32>
    %153 = arith.mulf %151, %152 : vector<16x128xf32>
    %154 = vector.broadcast %131 : vector<1x128xf32> to vector<16x128xf32>
    %155 = arith.addf %153, %154 : vector<16x128xf32>
    %156 = arith.truncf %155 : vector<16x128xf32> to vector<16x128xbf16>
    %c0_46 = arith.constant 0 : index
    %c0_47 = arith.constant 0 : index
    %c0_48 = arith.constant 0 : index
    %157 = vector.load %arg7[%c0_46, %c0_47, %c0_48] : memref<1x128x128xbf16, #tpu.memory_space<vmem>>, vector<1x128x128xbf16>
    %158 = vector.shape_cast %157 : vector<1x128x128xbf16> to vector<128x128xbf16>
    %cst_49 = arith.constant dense<0.000000e+00> : vector<16x128xf32>
    %159 = tpu.matmul %156, %158, %cst_49 {dimension_numbers = #tpu.dot_dimension_numbers<[1], [0], [0], [1], [0, 0, 1, 1], [], []>} : vector<16x128xbf16>, vector<128x128xbf16>, vector<16x128xf32> -> vector<16x128xf32>
    %160 = vector.extract_strided_slice %6 {offsets = [3, 0], sizes = [1, 128], strides = [1, 1]} : vector<10x128xf32> to vector<1x128xf32>
    %161 = vector.broadcast %160 : vector<1x128xf32> to vector<16x128xf32>
    %162 = arith.addf %159, %161 : vector<16x128xf32>
    %c0_50 = arith.constant 0 : index
    %c0_51 = arith.constant 0 : index
    %c0_52 = arith.constant 0 : index
    %163 = vector.load %arg2[%c0_50, %c0_51, %c0_52] : memref<2x16x128xbf16, #tpu.memory_space<vmem>>, vector<2x16x128xbf16>
    %164 = vector.shape_cast %163 : vector<2x16x128xbf16> to vector<32x128xbf16>
    %c0_53 = arith.constant 0 : index
    %c0_54 = arith.constant 0 : index
    %c0_55 = arith.constant 0 : index
    %165 = vector.load %arg8[%c0_53, %c0_54, %c0_55] : memref<1x128x256xbf16, #tpu.memory_space<vmem>>, vector<1x128x256xbf16>
    %166 = vector.shape_cast %165 : vector<1x128x256xbf16> to vector<128x256xbf16>
    %cst_56 = arith.constant dense<0.000000e+00> : vector<32x256xf32>
    %167 = tpu.matmul %164, %166, %cst_56 {dimension_numbers = #tpu.dot_dimension_numbers<[1], [0], [0], [1], [0, 0, 1, 1], [], []>} : vector<32x128xbf16>, vector<128x256xbf16>, vector<32x256xf32> -> vector<32x256xf32>
    %c0_57 = arith.constant 0 : index
    %c0_58 = arith.constant 0 : index
    %c0_59 = arith.constant 0 : index
    %168 = vector.load %arg13[%c0_57, %c0_58, %c0_59] : memref<1x1x256xf32, #tpu.memory_space<vmem>>, vector<1x1x256xf32>
    %169 = vector.shape_cast %168 : vector<1x1x256xf32> to vector<1x256xf32>
    %170 = vector.broadcast %169 : vector<1x256xf32> to vector<32x256xf32>
    %171 = arith.addf %167, %170 : vector<32x256xf32>
    %c0_60 = arith.constant 0 : index
    %c0_61 = arith.constant 0 : index
    %c0_62 = arith.constant 0 : index
    %172 = vector.load %arg4[%c0_60, %c0_61, %c0_62] : memref<2x1x16xf32, #tpu.memory_space<vmem>>, vector<2x1x16xf32>
    %c0_63 = arith.constant 0 : index
    %c0_64 = arith.constant 0 : index
    %c0_65 = arith.constant 0 : index
    %c0_66 = arith.constant 0 : index
    %173 = vector.load %arg9[%c0_63, %c0_64, %c0_65, %c0_66] : memref<1x4x8x128xbf16, #tpu.memory_space<vmem>>, vector<1x4x8x128xbf16>
    %174 = vector.shape_cast %173 : vector<1x4x8x128xbf16> to vector<4x8x128xbf16>
    %175 = vector.extract_strided_slice %6 {offsets = [4, 0], sizes = [1, 128], strides = [1, 1]} : vector<10x128xf32> to vector<1x128xf32>
    %176 = vector.shape_cast %172 : vector<2x1x16xf32> to vector<2x1x16xf32>
    %177 = vector.broadcast %176 : vector<2x1x16xf32> to vector<2x8x16xf32>
    %cst_67 = arith.constant 0.000000e+00 : f32
    %178 = vector.broadcast %cst_67 : f32 to vector<16x128xf32>
    %179 = vector.extract_strided_slice %162 {offsets = [0, 0], sizes = [16, 8], strides = [1, 1]} : vector<16x128xf32> to vector<16x8xf32>
    %180 = vector.shape_cast %179 : vector<16x8xf32> to vector<2x8x8xf32>
    %181 = vector.extract_strided_slice %171 {offsets = [0, 0], sizes = [32, 8], strides = [1, 1]} : vector<32x256xf32> to vector<32x8xf32>
    %182 = vector.shape_cast %181 : vector<32x8xf32> to vector<2x16x8xf32>
    %183 = vector.extract_strided_slice %171 {offsets = [0, 128], sizes = [32, 8], strides = [1, 1]} : vector<32x256xf32> to vector<32x8xf32>
    %184 = vector.shape_cast %183 : vector<32x8xf32> to vector<2x16x8xf32>
    "tpu.trace_start"() <{level = 10 : i32, message = "bqd,bkd->bqk"}> : () -> ()
    %cst_68 = arith.constant dense<0.000000e+00> : vector<2x8x16xf32>
    %185 = tpu.matmul %180, %182, %cst_68 {dimension_numbers = #tpu.dot_dimension_numbers<[2], [2], [1], [1], [0, 0, 0, 1, 1, 1], [0], [0]>} : vector<2x8x8xf32>, vector<2x16x8xf32>, vector<2x8x16xf32> -> vector<2x8x16xf32>
    "tpu.trace_stop"() : () -> ()
    %186 = arith.addf %185, %177 : vector<2x8x16xf32>
    %cst_69 = arith.constant dense<0xFF800000> : vector<2x8xf32>
    %187 = vector.multi_reduction <maximumf>, %186, %cst_69 [2] : vector<2x8x16xf32> to vector<2x8xf32>
    %188 = vector.shape_cast %187 : vector<2x8xf32> to vector<2x8x1xf32>
    %189 = vector.broadcast %188 : vector<2x8x1xf32> to vector<2x8x16xf32>
    %190 = arith.subf %186, %189 : vector<2x8x16xf32>
    %191 = math.exp %190 : vector<2x8x16xf32>
    %cst_70 = arith.constant dense<0.000000e+00> : vector<2x8xf32>
    %192 = vector.multi_reduction <add>, %191, %cst_70 [2] : vector<2x8x16xf32> to vector<2x8xf32>
    %193 = vector.shape_cast %192 : vector<2x8xf32> to vector<2x8x1xf32>
    %194 = tpu.reciprocal %193 {approx = true} : vector<2x8x1xf32> -> vector<2x8x1xf32>
    %195 = vector.broadcast %194 : vector<2x8x1xf32> to vector<2x8x16xf32>
    %196 = arith.mulf %191, %195 : vector<2x8x16xf32>
    "tpu.trace_start"() <{level = 10 : i32, message = "bqk,bkd->bqd"}> : () -> ()
    %cst_71 = arith.constant dense<0.000000e+00> : vector<2x8x8xf32>
    %197 = tpu.matmul %196, %184, %cst_71 {dimension_numbers = #tpu.dot_dimension_numbers<[2], [1], [1], [2], [0, 0, 0, 1, 1, 2], [0], [0]>} : vector<2x8x16xf32>, vector<2x16x8xf32>, vector<2x8x8xf32> -> vector<2x8x8xf32>
    "tpu.trace_stop"() : () -> ()
    %198 = vector.shape_cast %197 : vector<2x8x8xf32> to vector<16x8xf32>
    %199 = arith.truncf %198 : vector<16x8xf32> to vector<16x8xbf16>
    %200 = vector.extract_strided_slice %174 {offsets = [0, 0, 0], sizes = [1, 8, 128], strides = [1, 1, 1]} : vector<4x8x128xbf16> to vector<1x8x128xbf16>
    %201 = vector.shape_cast %200 : vector<1x8x128xbf16> to vector<8x128xbf16>
    %cst_72 = arith.constant dense<0.000000e+00> : vector<16x128xf32>
    %202 = tpu.matmul %199, %201, %cst_72 {dimension_numbers = #tpu.dot_dimension_numbers<[1], [0], [0], [1], [0, 0, 1, 1], [], []>} : vector<16x8xbf16>, vector<8x128xbf16>, vector<16x128xf32> -> vector<16x128xf32>
    %203 = arith.addf %178, %202 : vector<16x128xf32>
    %204 = vector.extract_strided_slice %162 {offsets = [0, 8], sizes = [16, 8], strides = [1, 1]} : vector<16x128xf32> to vector<16x8xf32>
    %205 = vector.shape_cast %204 : vector<16x8xf32> to vector<2x8x8xf32>
    %206 = vector.extract_strided_slice %171 {offsets = [0, 8], sizes = [32, 8], strides = [1, 1]} : vector<32x256xf32> to vector<32x8xf32>
    %207 = vector.shape_cast %206 : vector<32x8xf32> to vector<2x16x8xf32>
    %208 = vector.extract_strided_slice %171 {offsets = [0, 136], sizes = [32, 8], strides = [1, 1]} : vector<32x256xf32> to vector<32x8xf32>
    %209 = vector.shape_cast %208 : vector<32x8xf32> to vector<2x16x8xf32>
    "tpu.trace_start"() <{level = 10 : i32, message = "bqd,bkd->bqk"}> : () -> ()
    %cst_73 = arith.constant dense<0.000000e+00> : vector<2x8x16xf32>
    %210 = tpu.matmul %205, %207, %cst_73 {dimension_numbers = #tpu.dot_dimension_numbers<[2], [2], [1], [1], [0, 0, 0, 1, 1, 1], [0], [0]>} : vector<2x8x8xf32>, vector<2x16x8xf32>, vector<2x8x16xf32> -> vector<2x8x16xf32>
    "tpu.trace_stop"() : () -> ()
    %211 = arith.addf %210, %177 : vector<2x8x16xf32>
    %cst_74 = arith.constant dense<0xFF800000> : vector<2x8xf32>
    %212 = vector.multi_reduction <maximumf>, %211, %cst_74 [2] : vector<2x8x16xf32> to vector<2x8xf32>
    %213 = vector.shape_cast %212 : vector<2x8xf32> to vector<2x8x1xf32>
    %214 = vector.broadcast %213 : vector<2x8x1xf32> to vector<2x8x16xf32>
    %215 = arith.subf %211, %214 : vector<2x8x16xf32>
    %216 = math.exp %215 : vector<2x8x16xf32>
    %cst_75 = arith.constant dense<0.000000e+00> : vector<2x8xf32>
    %217 = vector.multi_reduction <add>, %216, %cst_75 [2] : vector<2x8x16xf32> to vector<2x8xf32>
    %218 = vector.shape_cast %217 : vector<2x8xf32> to vector<2x8x1xf32>
    %219 = tpu.reciprocal %218 {approx = true} : vector<2x8x1xf32> -> vector<2x8x1xf32>
    %220 = vector.broadcast %219 : vector<2x8x1xf32> to vector<2x8x16xf32>
    %221 = arith.mulf %216, %220 : vector<2x8x16xf32>
    "tpu.trace_start"() <{level = 10 : i32, message = "bqk,bkd->bqd"}> : () -> ()
    %cst_76 = arith.constant dense<0.000000e+00> : vector<2x8x8xf32>
    %222 = tpu.matmul %221, %209, %cst_76 {dimension_numbers = #tpu.dot_dimension_numbers<[2], [1], [1], [2], [0, 0, 0, 1, 1, 2], [0], [0]>} : vector<2x8x16xf32>, vector<2x16x8xf32>, vector<2x8x8xf32> -> vector<2x8x8xf32>
    "tpu.trace_stop"() : () -> ()
    %223 = vector.shape_cast %222 : vector<2x8x8xf32> to vector<16x8xf32>
    %224 = arith.truncf %223 : vector<16x8xf32> to vector<16x8xbf16>
    %225 = vector.extract_strided_slice %174 {offsets = [1, 0, 0], sizes = [1, 8, 128], strides = [1, 1, 1]} : vector<4x8x128xbf16> to vector<1x8x128xbf16>
    %226 = vector.shape_cast %225 : vector<1x8x128xbf16> to vector<8x128xbf16>
    %cst_77 = arith.constant dense<0.000000e+00> : vector<16x128xf32>
    %227 = tpu.matmul %224, %226, %cst_77 {dimension_numbers = #tpu.dot_dimension_numbers<[1], [0], [0], [1], [0, 0, 1, 1], [], []>} : vector<16x8xbf16>, vector<8x128xbf16>, vector<16x128xf32> -> vector<16x128xf32>
    %228 = arith.addf %203, %227 : vector<16x128xf32>
    %229 = vector.extract_strided_slice %162 {offsets = [0, 16], sizes = [16, 8], strides = [1, 1]} : vector<16x128xf32> to vector<16x8xf32>
    %230 = vector.shape_cast %229 : vector<16x8xf32> to vector<2x8x8xf32>
    %231 = vector.extract_strided_slice %171 {offsets = [0, 16], sizes = [32, 8], strides = [1, 1]} : vector<32x256xf32> to vector<32x8xf32>
    %232 = vector.shape_cast %231 : vector<32x8xf32> to vector<2x16x8xf32>
    %233 = vector.extract_strided_slice %171 {offsets = [0, 144], sizes = [32, 8], strides = [1, 1]} : vector<32x256xf32> to vector<32x8xf32>
    %234 = vector.shape_cast %233 : vector<32x8xf32> to vector<2x16x8xf32>
    "tpu.trace_start"() <{level = 10 : i32, message = "bqd,bkd->bqk"}> : () -> ()
    %cst_78 = arith.constant dense<0.000000e+00> : vector<2x8x16xf32>
    %235 = tpu.matmul %230, %232, %cst_78 {dimension_numbers = #tpu.dot_dimension_numbers<[2], [2], [1], [1], [0, 0, 0, 1, 1, 1], [0], [0]>} : vector<2x8x8xf32>, vector<2x16x8xf32>, vector<2x8x16xf32> -> vector<2x8x16xf32>
    "tpu.trace_stop"() : () -> ()
    %236 = arith.addf %235, %177 : vector<2x8x16xf32>
    %cst_79 = arith.constant dense<0xFF800000> : vector<2x8xf32>
    %237 = vector.multi_reduction <maximumf>, %236, %cst_79 [2] : vector<2x8x16xf32> to vector<2x8xf32>
    %238 = vector.shape_cast %237 : vector<2x8xf32> to vector<2x8x1xf32>
    %239 = vector.broadcast %238 : vector<2x8x1xf32> to vector<2x8x16xf32>
    %240 = arith.subf %236, %239 : vector<2x8x16xf32>
    %241 = math.exp %240 : vector<2x8x16xf32>
    %cst_80 = arith.constant dense<0.000000e+00> : vector<2x8xf32>
    %242 = vector.multi_reduction <add>, %241, %cst_80 [2] : vector<2x8x16xf32> to vector<2x8xf32>
    %243 = vector.shape_cast %242 : vector<2x8xf32> to vector<2x8x1xf32>
    %244 = tpu.reciprocal %243 {approx = true} : vector<2x8x1xf32> -> vector<2x8x1xf32>
    %245 = vector.broadcast %244 : vector<2x8x1xf32> to vector<2x8x16xf32>
    %246 = arith.mulf %241, %245 : vector<2x8x16xf32>
    "tpu.trace_start"() <{level = 10 : i32, message = "bqk,bkd->bqd"}> : () -> ()
    %cst_81 = arith.constant dense<0.000000e+00> : vector<2x8x8xf32>
    %247 = tpu.matmul %246, %234, %cst_81 {dimension_numbers = #tpu.dot_dimension_numbers<[2], [1], [1], [2], [0, 0, 0, 1, 1, 2], [0], [0]>} : vector<2x8x16xf32>, vector<2x16x8xf32>, vector<2x8x8xf32> -> vector<2x8x8xf32>
    "tpu.trace_stop"() : () -> ()
    %248 = vector.shape_cast %247 : vector<2x8x8xf32> to vector<16x8xf32>
    %249 = arith.truncf %248 : vector<16x8xf32> to vector<16x8xbf16>
    %250 = vector.extract_strided_slice %174 {offsets = [2, 0, 0], sizes = [1, 8, 128], strides = [1, 1, 1]} : vector<4x8x128xbf16> to vector<1x8x128xbf16>
    %251 = vector.shape_cast %250 : vector<1x8x128xbf16> to vector<8x128xbf16>
    %cst_82 = arith.constant dense<0.000000e+00> : vector<16x128xf32>
    %252 = tpu.matmul %249, %251, %cst_82 {dimension_numbers = #tpu.dot_dimension_numbers<[1], [0], [0], [1], [0, 0, 1, 1], [], []>} : vector<16x8xbf16>, vector<8x128xbf16>, vector<16x128xf32> -> vector<16x128xf32>
    %253 = arith.addf %228, %252 : vector<16x128xf32>
    %254 = vector.extract_strided_slice %162 {offsets = [0, 24], sizes = [16, 8], strides = [1, 1]} : vector<16x128xf32> to vector<16x8xf32>
    %255 = vector.shape_cast %254 : vector<16x8xf32> to vector<2x8x8xf32>
    %256 = vector.extract_strided_slice %171 {offsets = [0, 24], sizes = [32, 8], strides = [1, 1]} : vector<32x256xf32> to vector<32x8xf32>
    %257 = vector.shape_cast %256 : vector<32x8xf32> to vector<2x16x8xf32>
    %258 = vector.extract_strided_slice %171 {offsets = [0, 152], sizes = [32, 8], strides = [1, 1]} : vector<32x256xf32> to vector<32x8xf32>
    %259 = vector.shape_cast %258 : vector<32x8xf32> to vector<2x16x8xf32>
    "tpu.trace_start"() <{level = 10 : i32, message = "bqd,bkd->bqk"}> : () -> ()
    %cst_83 = arith.constant dense<0.000000e+00> : vector<2x8x16xf32>
    %260 = tpu.matmul %255, %257, %cst_83 {dimension_numbers = #tpu.dot_dimension_numbers<[2], [2], [1], [1], [0, 0, 0, 1, 1, 1], [0], [0]>} : vector<2x8x8xf32>, vector<2x16x8xf32>, vector<2x8x16xf32> -> vector<2x8x16xf32>
    "tpu.trace_stop"() : () -> ()
    %261 = arith.addf %260, %177 : vector<2x8x16xf32>
    %cst_84 = arith.constant dense<0xFF800000> : vector<2x8xf32>
    %262 = vector.multi_reduction <maximumf>, %261, %cst_84 [2] : vector<2x8x16xf32> to vector<2x8xf32>
    %263 = vector.shape_cast %262 : vector<2x8xf32> to vector<2x8x1xf32>
    %264 = vector.broadcast %263 : vector<2x8x1xf32> to vector<2x8x16xf32>
    %265 = arith.subf %261, %264 : vector<2x8x16xf32>
    %266 = math.exp %265 : vector<2x8x16xf32>
    %cst_85 = arith.constant dense<0.000000e+00> : vector<2x8xf32>
    %267 = vector.multi_reduction <add>, %266, %cst_85 [2] : vector<2x8x16xf32> to vector<2x8xf32>
    %268 = vector.shape_cast %267 : vector<2x8xf32> to vector<2x8x1xf32>
    %269 = tpu.reciprocal %268 {approx = true} : vector<2x8x1xf32> -> vector<2x8x1xf32>
    %270 = vector.broadcast %269 : vector<2x8x1xf32> to vector<2x8x16xf32>
    %271 = arith.mulf %266, %270 : vector<2x8x16xf32>
    "tpu.trace_start"() <{level = 10 : i32, message = "bqk,bkd->bqd"}> : () -> ()
    %cst_86 = arith.constant dense<0.000000e+00> : vector<2x8x8xf32>
    %272 = tpu.matmul %271, %259, %cst_86 {dimension_numbers = #tpu.dot_dimension_numbers<[2], [1], [1], [2], [0, 0, 0, 1, 1, 2], [0], [0]>} : vector<2x8x16xf32>, vector<2x16x8xf32>, vector<2x8x8xf32> -> vector<2x8x8xf32>
    "tpu.trace_stop"() : () -> ()
    %273 = vector.shape_cast %272 : vector<2x8x8xf32> to vector<16x8xf32>
    %274 = arith.truncf %273 : vector<16x8xf32> to vector<16x8xbf16>
    %275 = vector.extract_strided_slice %174 {offsets = [3, 0, 0], sizes = [1, 8, 128], strides = [1, 1, 1]} : vector<4x8x128xbf16> to vector<1x8x128xbf16>
    %276 = vector.shape_cast %275 : vector<1x8x128xbf16> to vector<8x128xbf16>
    %cst_87 = arith.constant dense<0.000000e+00> : vector<16x128xf32>
    %277 = tpu.matmul %274, %276, %cst_87 {dimension_numbers = #tpu.dot_dimension_numbers<[1], [0], [0], [1], [0, 0, 1, 1], [], []>} : vector<16x8xbf16>, vector<8x128xbf16>, vector<16x128xf32> -> vector<16x128xf32>
    %278 = arith.addf %253, %277 : vector<16x128xf32>
    %279 = vector.broadcast %175 : vector<1x128xf32> to vector<16x128xf32>
    %280 = arith.addf %278, %279 : vector<16x128xf32>
    %281 = arith.addf %280, %155 : vector<16x128xf32>
    %282 = vector.extract_strided_slice %6 {offsets = [5, 0], sizes = [1, 128], strides = [1, 1]} : vector<10x128xf32> to vector<1x128xf32>
    %283 = vector.extract_strided_slice %6 {offsets = [6, 0], sizes = [1, 128], strides = [1, 1]} : vector<10x128xf32> to vector<1x128xf32>
    %cst_88 = arith.constant dense<0.000000e+00> : vector<16xf32>
    %284 = vector.multi_reduction <add>, %281, %cst_88 [1] : vector<16x128xf32> to vector<16xf32>
    %285 = vector.shape_cast %284 : vector<16xf32> to vector<16x1xf32>
    %cst_89 = arith.constant 3.125000e-02 : f32
    %286 = vector.broadcast %cst_89 : f32 to vector<16x1xf32>
    %287 = arith.mulf %285, %286 : vector<16x1xf32>
    %288 = vector.broadcast %287 : vector<16x1xf32> to vector<16x128xf32>
    %289 = arith.subf %281, %288 : vector<16x128xf32>
    %cst_90 = arith.constant 0.000000e+00 : f32
    %290 = vector.shape_cast %9 : vector<1x128xi1> to vector<1x128xi1>
    %291 = vector.broadcast %290 : vector<1x128xi1> to vector<16x128xi1>
    %292 = vector.broadcast %cst_90 : f32 to vector<16x128xf32>
    %293 = arith.select %291, %289, %292 : vector<16x128xi1>, vector<16x128xf32>
    %294 = arith.mulf %293, %293 : vector<16x128xf32>
    %cst_91 = arith.constant dense<0.000000e+00> : vector<16xf32>
    %295 = vector.multi_reduction <add>, %294, %cst_91 [1] : vector<16x128xf32> to vector<16xf32>
    %296 = vector.shape_cast %295 : vector<16xf32> to vector<16x1xf32>
    %cst_92 = arith.constant 3.125000e-02 : f32
    %297 = vector.broadcast %cst_92 : f32 to vector<16x1xf32>
    %298 = arith.mulf %296, %297 : vector<16x1xf32>
    %cst_93 = arith.constant 9.99999974E-6 : f32
    %299 = vector.broadcast %cst_93 : f32 to vector<16x1xf32>
    %300 = arith.addf %298, %299 : vector<16x1xf32>
    %301 = math.rsqrt %300 : vector<16x1xf32>
    %302 = vector.broadcast %301 : vector<16x1xf32> to vector<16x128xf32>
    %303 = arith.mulf %293, %302 : vector<16x128xf32>
    %304 = vector.broadcast %282 : vector<1x128xf32> to vector<16x128xf32>
    %305 = arith.mulf %303, %304 : vector<16x128xf32>
    %306 = vector.broadcast %283 : vector<1x128xf32> to vector<16x128xf32>
    %307 = arith.addf %305, %306 : vector<16x128xf32>
    %308 = arith.truncf %307 : vector<16x128xf32> to vector<16x128xbf16>
    %c0_94 = arith.constant 0 : index
    %c0_95 = arith.constant 0 : index
    %c0_96 = arith.constant 0 : index
    %309 = vector.load %arg10[%c0_94, %c0_95, %c0_96] : memref<1x128x128xbf16, #tpu.memory_space<vmem>>, vector<1x128x128xbf16>
    %310 = vector.shape_cast %309 : vector<1x128x128xbf16> to vector<128x128xbf16>
    %cst_97 = arith.constant dense<0.000000e+00> : vector<16x128xf32>
    %311 = tpu.matmul %308, %310, %cst_97 {dimension_numbers = #tpu.dot_dimension_numbers<[1], [0], [0], [1], [0, 0, 1, 1], [], []>} : vector<16x128xbf16>, vector<128x128xbf16>, vector<16x128xf32> -> vector<16x128xf32>
    %c0_98 = arith.constant 0 : index
    %c0_99 = arith.constant 0 : index
    %c0_100 = arith.constant 0 : index
    %312 = vector.load %arg14[%c0_98, %c0_99, %c0_100] : memref<1x1x128xf32, #tpu.memory_space<vmem>>, vector<1x1x128xf32>
    %313 = vector.shape_cast %312 : vector<1x1x128xf32> to vector<1x128xf32>
    %314 = vector.broadcast %313 : vector<1x128xf32> to vector<16x128xf32>
    %315 = arith.addf %311, %314 : vector<16x128xf32>
    %cst_101 = arith.constant 0.000000e+00 : f32
    %316 = vector.broadcast %cst_101 : f32 to vector<16x128xf32>
    %317 = arith.maximumf %315, %316 : vector<16x128xf32>
    %318 = arith.truncf %317 : vector<16x128xf32> to vector<16x128xbf16>
    %c0_102 = arith.constant 0 : index
    %c0_103 = arith.constant 0 : index
    %c0_104 = arith.constant 0 : index
    %319 = vector.load %arg11[%c0_102, %c0_103, %c0_104] : memref<1x128x128xbf16, #tpu.memory_space<vmem>>, vector<1x128x128xbf16>
    %320 = vector.shape_cast %319 : vector<1x128x128xbf16> to vector<128x128xbf16>
    %cst_105 = arith.constant dense<0.000000e+00> : vector<16x128xf32>
    %321 = tpu.matmul %318, %320, %cst_105 {dimension_numbers = #tpu.dot_dimension_numbers<[1], [0], [0], [1], [0, 0, 1, 1], [], []>} : vector<16x128xbf16>, vector<128x128xbf16>, vector<16x128xf32> -> vector<16x128xf32>
    %322 = vector.extract_strided_slice %6 {offsets = [7, 0], sizes = [1, 128], strides = [1, 1]} : vector<10x128xf32> to vector<1x128xf32>
    %323 = vector.broadcast %322 : vector<1x128xf32> to vector<16x128xf32>
    %324 = arith.addf %321, %323 : vector<16x128xf32>
    %325 = arith.addf %324, %307 : vector<16x128xf32>
    %326 = vector.extract_strided_slice %6 {offsets = [8, 0], sizes = [1, 128], strides = [1, 1]} : vector<10x128xf32> to vector<1x128xf32>
    %327 = vector.extract_strided_slice %6 {offsets = [9, 0], sizes = [1, 128], strides = [1, 1]} : vector<10x128xf32> to vector<1x128xf32>
    %cst_106 = arith.constant dense<0.000000e+00> : vector<16xf32>
    %328 = vector.multi_reduction <add>, %325, %cst_106 [1] : vector<16x128xf32> to vector<16xf32>
    %329 = vector.shape_cast %328 : vector<16xf32> to vector<16x1xf32>
    %cst_107 = arith.constant 3.125000e-02 : f32
    %330 = vector.broadcast %cst_107 : f32 to vector<16x1xf32>
    %331 = arith.mulf %329, %330 : vector<16x1xf32>
    %332 = vector.broadcast %331 : vector<16x1xf32> to vector<16x128xf32>
    %333 = arith.subf %325, %332 : vector<16x128xf32>
    %cst_108 = arith.constant 0.000000e+00 : f32
    %334 = vector.shape_cast %9 : vector<1x128xi1> to vector<1x128xi1>
    %335 = vector.broadcast %334 : vector<1x128xi1> to vector<16x128xi1>
    %336 = vector.broadcast %cst_108 : f32 to vector<16x128xf32>
    %337 = arith.select %335, %333, %336 : vector<16x128xi1>, vector<16x128xf32>
    %338 = arith.mulf %337, %337 : vector<16x128xf32>
    %cst_109 = arith.constant dense<0.000000e+00> : vector<16xf32>
    %339 = vector.multi_reduction <add>, %338, %cst_109 [1] : vector<16x128xf32> to vector<16xf32>
    %340 = vector.shape_cast %339 : vector<16xf32> to vector<16x1xf32>
    %cst_110 = arith.constant 3.125000e-02 : f32
    %341 = vector.broadcast %cst_110 : f32 to vector<16x1xf32>
    %342 = arith.mulf %340, %341 : vector<16x1xf32>
    %cst_111 = arith.constant 9.99999974E-6 : f32
    %343 = vector.broadcast %cst_111 : f32 to vector<16x1xf32>
    %344 = arith.addf %342, %343 : vector<16x1xf32>
    %345 = math.rsqrt %344 : vector<16x1xf32>
    %346 = vector.broadcast %345 : vector<16x1xf32> to vector<16x128xf32>
    %347 = arith.mulf %337, %346 : vector<16x128xf32>
    %348 = vector.broadcast %326 : vector<1x128xf32> to vector<16x128xf32>
    %349 = arith.mulf %347, %348 : vector<16x128xf32>
    %350 = vector.broadcast %327 : vector<1x128xf32> to vector<16x128xf32>
    %351 = arith.addf %349, %350 : vector<16x128xf32>
    %352 = vector.shape_cast %351 : vector<16x128xf32> to vector<2x8x128xf32>
    %c0_112 = arith.constant 0 : index
    %c0_113 = arith.constant 0 : index
    %c0_114 = arith.constant 0 : index
    %353 = vector.load %arg16[%c0_112, %c0_113, %c0_114] : memref<2x8x128xf32, #tpu.memory_space<vmem>>, vector<2x8x128xf32>
    tpu.vector_store %arg16[%c0_112, %c0_113, %c0_114], %352 {strides = array<i32>} : memref<2x8x128xf32, #tpu.memory_space<vmem>>, vector<2x8x128xf32>,
    return
  }
  func.func @transform_0(%arg0: i32) -> (i32, i32, i32) {
    %c0_i32 = arith.constant 0 : i32
    %c0_i32_0 = arith.constant 0 : i32
    %c0_i32_1 = arith.constant 0 : i32
    %c0_i32_2 = arith.constant 0 : i32
    return %c0_i32, %c0_i32_0, %c0_i32_1 : i32, i32, i32
  }
  func.func @transform_1(%arg0: i32) -> (i32, i32, i32) {
    %c0_i32 = arith.constant 0 : i32
    %c0_i32_0 = arith.constant 0 : i32
    %c0_i32_1 = arith.constant 0 : i32
    %c0_i32_2 = arith.constant 0 : i32
    return %c0_i32, %c0_i32_0, %c0_i32_1 : i32, i32, i32
  }
  func.func @transform_2(%arg0: i32) -> (i32, i32, i32) {
    %c0_i32 = arith.constant 0 : i32
    %c0_i32_0 = arith.constant 0 : i32
    %c0_i32_1 = arith.constant 0 : i32
    %c0_i32_2 = arith.constant 0 : i32
    return %c0_i32, %c0_i32_0, %c0_i32_1 : i32, i32, i32
  }
  func.func @transform_3(%arg0: i32) -> (i32, i32, i32) {
    %c0_i32 = arith.constant 0 : i32
    %c0_i32_0 = arith.constant 0 : i32
    %c0_i32_1 = arith.constant 0 : i32
    %c0_i32_2 = arith.constant 0 : i32
    return %c0_i32, %c0_i32_0, %c0_i32_1 : i32, i32, i32
  }
  func.func @transform_4(%arg0: i32) -> (i32, i32, i32) {
    %c0_i32 = arith.constant 0 : i32
    %c0_i32_0 = arith.constant 0 : i32
    %c0_i32_1 = arith.constant 0 : i32
    return %arg0, %c0_i32, %c0_i32_0 : i32, i32, i32
  }
  func.func @transform_5(%arg0: i32) -> (i32, i32, i32, i32) {
    %c0_i32 = arith.constant 0 : i32
    %c0_i32_0 = arith.constant 0 : i32
    %c0_i32_1 = arith.constant 0 : i32
    %c0_i32_2 = arith.constant 0 : i32
    return %arg0, %c0_i32, %c0_i32_0, %c0_i32_1 : i32, i32, i32, i32
  }
  func.func @transform_6(%arg0: i32) -> (i32, i32, i32) {
    %c0_i32 = arith.constant 0 : i32
    %c0_i32_0 = arith.constant 0 : i32
    %c0_i32_1 = arith.constant 0 : i32
    return %arg0, %c0_i32, %c0_i32_0 : i32, i32, i32
  }
  func.func @transform_7(%arg0: i32) -> (i32, i32, i32) {
    %c0_i32 = arith.constant 0 : i32
    %c0_i32_0 = arith.constant 0 : i32
    %c0_i32_1 = arith.constant 0 : i32
    return %arg0, %c0_i32, %c0_i32_0 : i32, i32, i32
  }
  func.func @transform_8(%arg0: i32) -> (i32, i32, i32, i32) {
    %c0_i32 = arith.constant 0 : i32
    %c0_i32_0 = arith.constant 0 : i32
    %c0_i32_1 = arith.constant 0 : i32
    %c0_i32_2 = arith.constant 0 : i32
    return %arg0, %c0_i32, %c0_i32_0, %c0_i32_1 : i32, i32, i32, i32
  }
  func.func @transform_9(%arg0: i32) -> (i32, i32, i32) {
    %c0_i32 = arith.constant 0 : i32
    %c0_i32_0 = arith.constant 0 : i32
    %c0_i32_1 = arith.constant 0 : i32
    return %arg0, %c0_i32, %c0_i32_0 : i32, i32, i32
  }
  func.func @transform_10(%arg0: i32) -> (i32, i32, i32) {
    %c0_i32 = arith.constant 0 : i32
    %c0_i32_0 = arith.constant 0 : i32
    %c0_i32_1 = arith.constant 0 : i32
    return %arg0, %c0_i32, %c0_i32_0 : i32, i32, i32
  }
  func.func @transform_11(%arg0: i32) -> (i32, i32, i32) {
    %c0_i32 = arith.constant 0 : i32
    %c0_i32_0 = arith.constant 0 : i32
    %c0_i32_1 = arith.constant 0 : i32
    return %arg0, %c0_i32, %c0_i32_0 : i32, i32, i32
  }
  func.func @transform_12(%arg0: i32) -> (i32, i32, i32) {
    %c0_i32 = arith.constant 0 : i32
    %c0_i32_0 = arith.constant 0 : i32
    %c0_i32_1 = arith.constant 0 : i32
    return %arg0, %c0_i32, %c0_i32_0 : i32, i32, i32
  }
  func.func @transform_13(%arg0: i32) -> (i32, i32, i32) {
    %c0_i32 = arith.constant 0 : i32
    %c0_i32_0 = arith.constant 0 : i32
    %c0_i32_1 = arith.constant 0 : i32
    return %arg0, %c0_i32, %c0_i32_0 : i32, i32, i32
  }
  func.func @transform_14(%arg0: i32) -> (i32, i32, i32) {
    %c0_i32 = arith.constant 0 : i32
    %c0_i32_0 = arith.constant 0 : i32
    %c0_i32_1 = arith.constant 0 : i32
    return %arg0, %c0_i32, %c0_i32_0 : i32, i32, i32
  }
  func.func @transform_15(%arg0: i32) -> (i32, i32, i32) {
    %c0_i32 = arith.constant 0 : i32
    %c0_i32_0 = arith.constant 0 : i32
    %c0_i32_1 = arith.constant 0 : i32
    %c0_i32_2 = arith.constant 0 : i32
    return %c0_i32, %c0_i32_0, %c0_i32_1 : i32, i32, i32
  }
}

</mosaic_0001>

<llo_original>
// kernel: decoder_forward.1
$region0: #{decoder_forward.1}
  #allocation0 [shape = 'u32[]', space=smem, size = 0x4, offset = 0x4, fixed_abs, tag = 'smem constant byte address 0x4 - core index']
  #allocation1 [shape = 'u32[72,128]{1,0:T(1,128)}', space=vmem, size = 0x9000, scoped, tag = 'internal scratch']
  %s0 = inlined_call_operand.vmem [shape: f32[2,8,128], index: 0, kind: input, shape index: {}]
  %s1 = inlined_call_operand.vmem [shape: bf16[2,16,128], index: 1, kind: input, shape index: {}]
  %s2 = inlined_call_operand.vmem [shape: f32[2,1,8], index: 2, kind: input, shape index: {}]
  %s3 = inlined_call_operand.vmem [shape: f32[2,1,16], index: 3, kind: input, shape index: {}]
  %s4 = inlined_call_operand.hbm [shape: bf16[2,128,384], index: 4, kind: input, shape index: {}]
  %s5 = inlined_call_operand.vmem [shape: bf16[2,4,8,128], index: 5, kind: input, shape index: {}]
  %s6 = inlined_call_operand.vmem [shape: bf16[2,128,128], index: 6, kind: input, shape index: {}]
  %s7 = inlined_call_operand.hbm [shape: bf16[2,128,256], index: 7, kind: input, shape index: {}]
  %s8 = inlined_call_operand.vmem [shape: bf16[2,4,8,128], index: 8, kind: input, shape index: {}]
  %s9 = inlined_call_operand.hbm [shape: bf16[2,128,128], index: 9, kind: input, shape index: {}]
  %s10 = inlined_call_operand.hbm [shape: bf16[2,128,128], index: 10, kind: input, shape index: {}]
  %s11 = inlined_call_operand.vmem [shape: f32[2,1,384], index: 11, kind: input, shape index: {}]
  %s12 = inlined_call_operand.vmem [shape: f32[2,1,256], index: 12, kind: input, shape index: {}]
  %s13 = inlined_call_operand.vmem [shape: f32[2,1,128], index: 13, kind: input, shape index: {}]
  %s14 = inlined_call_operand.vmem [shape: f32[2,10,128], index: 14, kind: input, shape index: {}]
  %s15 = inlined_call_operand.hbm [shape: f32[2,8,128], index: 15, kind: output, shape index: {}]
  %s16 = sld [smem:[#allocation0]]
  $region113: #{decoder_forward.1} parent=0
    _
  %s18 = ssub.s32 1, %s16
  %s19 = scalar_select 0, %s18, %s16
  $region1: #{decoder_forward.1} parent=0
    #allocation2 [shape = 'u8[196608]{0}', space=vmem, size = 0x30000, scoped, tag = 'input window, operand 4']
    #allocation3 [shape = 's32[2]{0}', space=sflag, size = 0x8, scoped, tag = 'scoped memory for decoder_forward.1']
    #allocation4 [shape = 's32[2]{0}', space=sflag, size = 0x8, scoped, tag = 'scoped memory for decoder_forward.1']
    #allocation5 [shape = 'u8[131072]{0}', space=vmem, size = 0x20000, scoped, tag = 'input window, operand 7']
    #allocation6 [shape = 's32[2]{0}', space=sflag, size = 0x8, scoped, tag = 'scoped memory for decoder_forward.1']
    #allocation7 [shape = 'u8[65536]{0}', space=vmem, size = 0x10000, scoped, tag = 'input window, operand 9']
    #allocation8 [shape = 'u8[65536]{0}', space=vmem, size = 0x10000, scoped, tag = 'input window, operand 10']
    #allocation9 [shape = 's32[2]{0}', space=sflag, size = 0x8, scoped, tag = 'scoped memory for decoder_forward.1']
    #allocation10 [shape = 'u8[8192]{0}', space=vmem, size = 0x2000, scoped, tag = 'output window, operand 0, single buffered']
    %20 = vsyncpa [#allocation3], 0
    %s21 = scalar_lea.sflag [#allocation3], 1
    %22 = vsyncpa %s21, 0
    %23 = vsyncpa [#allocation6], 0
    %s24 = scalar_lea.sflag [#allocation6], 1
    %25 = vsyncpa %s24, 0
    %26 = vsyncpa [#allocation9], 0
    %s27 = scalar_lea.sflag [#allocation9], 1
    %28 = vsyncpa %s27, 0
    %29 = vsyncpa [#allocation4], 0
    loop: start=0, step=1, limit=4
    $region2: #{decoder_forward.1} parent=1 // loop_pre_header
      _
    $region3: #{decoder_forward.1} parent=1 // loop_header
      %s31 = sphi 0, %s35
      %p32 = scmp.ge.s32.totalorder %s31, 4
      %s39 = sphi 0, %s39
      %s41 = sphi 0, %s39
      %s42 = sphi 0, %s41
      %s56 = sphi 0, %s42
      %s60 = sphi 0, %s60
      %s62 = sphi 0, %s60
      %s63 = sphi 0, %s62
      %s77 = sphi 0, %s63
      %s81 = sphi 0, %s81
      %s83 = sphi 0, %s81
      %s84 = sphi 0, %s83
      %s98 = sphi 0, %s84
      %s102 = sphi 0, %s102
      %s104 = sphi 0, %s102
      %s105 = sphi 0, %s104
      %s119 = sphi 0, %s105
      %s125 = sphi 0, %s127
      %s128 = sphi 0, %s125
      %s129 = sphi 0, %s128
      %s145 = sphi 0, %s129
      %s151 = sphi 0, %s153
      %s154 = sphi 0, %s151
      %s155 = sphi 0, %s154
      %s171 = sphi 0, %s155
      %s177 = sphi 0, %s179
      %s180 = sphi 0, %s177
      %s181 = sphi 0, %s180
      %s197 = sphi 0, %s181
      %s203 = sphi 0, %s205
      %s206 = sphi 0, %s203
      %s207 = sphi 0, %s206
      %s223 = sphi 0, %s207
      %s229 = sphi 0, %s231
      %s232 = sphi 0, %s229
      %s233 = sphi 0, %s232
      %s249 = sphi 0, %s233
      %s255 = sphi 0, %s257
      %s258 = sphi 0, %s255
      %s259 = sphi 0, %s258
      %s275 = sphi 0, %s259
      %s281 = sphi 0, %s283
      %s284 = sphi 0, %s281
      %s285 = sphi 0, %s284
      %s301 = sphi 0, %s285
      %s307 = sphi 0, %s309
      %s310 = sphi 0, %s307
      %s311 = sphi 0, %s310
      %s327 = sphi 0, %s311
      %s333 = sphi 0, %s335
      %s336 = sphi 0, %s333
      %s337 = sphi 0, %s336
      %s353 = sphi 0, %s337
      %s359 = sphi 0, %s361
      %s362 = sphi 0, %s359
      %s363 = sphi 0, %s362
      %s379 = sphi 0, %s363
      %s385 = sphi 0, %s387
      %s388 = sphi 0, %s385
      %s389 = sphi 0, %s388
      %s405 = sphi 0, %s389
      %s409 = sphi 0, %s409
      %s411 = sphi 0, %s409
      %s412 = sphi 0, %s411
      %s426 = sphi 0, %s412
    $region4: #{decoder_forward.1} parent=1 // loop_header_branch
      %34 = sbr.rel (%p32) target = $region8
    $region5: #{decoder_forward.1} parent=1 // loop_body
      %s36 = ssub.s32 %s31, 1
      %s37 = ssub.s32 %s31, 2
      %s38 = sadd.s32 %s31, 1
      %s40 = sadd.s32 %s39, 1
      %p43 = scmp.eq.s32.totalorder %s31, 1
      %p44 = scmp.ne.s32.totalorder %s39, %s41
      %p45 = scmp.eq.s32.totalorder %s31, 0
      %p46 = por %p44, %p45
      %p47 = scmp.ne.s32.totalorder %s39, %s41
      %p48 = scmp.eq.s32.totalorder %s36, 1
      %p49 = por %p47, %p48
      %p50 = scmp.ne.s32.totalorder %s41, %s42
      %p51 = scmp.eq.s32.totalorder %s36, 0
      %p52 = por %p50, %p51
      %p53 = scmp.ne.s32.totalorder %s41, %s42
      %p54 = scmp.eq.s32.totalorder %s37, 1
      %p55 = por %p53, %p54
      %p57 = scmp.ne.s32.totalorder %s42, %s56
      %p58 = scmp.eq.s32.totalorder %s37, 0
      %p59 = por %p57, %p58
      %s61 = sadd.s32 %s60, 1
      %p64 = scmp.eq.s32.totalorder %s31, 1
      %p65 = scmp.ne.s32.totalorder %s60, %s62
      %p66 = scmp.eq.s32.totalorder %s31, 0
      %p67 = por %p65, %p66
      %p68 = scmp.ne.s32.totalorder %s60, %s62
      %p69 = scmp.eq.s32.totalorder %s36, 1
      %p70 = por %p68, %p69
      %p71 = scmp.ne.s32.totalorder %s62, %s63
      %p72 = scmp.eq.s32.totalorder %s36, 0
      %p73 = por %p71, %p72
      %p74 = scmp.ne.s32.totalorder %s62, %s63
      %p75 = scmp.eq.s32.totalorder %s37, 1
      %p76 = por %p74, %p75
      %p78 = scmp.ne.s32.totalorder %s63, %s77
      %p79 = scmp.eq.s32.totalorder %s37, 0
      %p80 = por %p78, %p79
      %s82 = sadd.s32 %s81, 1
      %p85 = scmp.eq.s32.totalorder %s31, 1
      %p86 = scmp.ne.s32.totalorder %s81, %s83
      %p87 = scmp.eq.s32.totalorder %s31, 0
      %p88 = por %p86, %p87
      %p89 = scmp.ne.s32.totalorder %s81, %s83
      %p90 = scmp.eq.s32.totalorder %s36, 1
      %p91 = por %p89, %p90
      %p92 = scmp.ne.s32.totalorder %s83, %s84
      %p93 = scmp.eq.s32.totalorder %s36, 0
      %p94 = por %p92, %p93
      %p95 = scmp.ne.s32.totalorder %s83, %s84
      %p96 = scmp.eq.s32.totalorder %s37, 1
      %p97 = por %p95, %p96
      %p99 = scmp.ne.s32.totalorder %s84, %s98
      %p100 = scmp.eq.s32.totalorder %s37, 0
      %p101 = por %p99, %p100
      %s103 = sadd.s32 %s102, 1
      %p106 = scmp.eq.s32.totalorder %s31, 1
      %p107 = scmp.ne.s32.totalorder %s102, %s104
      %p108 = scmp.eq.s32.totalorder %s31, 0
      %p109 = por %p107, %p108
      %p110 = scmp.ne.s32.totalorder %s102, %s104
      %p111 = scmp.eq.s32.totalorder %s36, 1
      %p112 = por %p110, %p111
      %p113 = scmp.ne.s32.totalorder %s104, %s105
      %p114 = scmp.eq.s32.totalorder %s36, 0
      %p115 = por %p113, %p114
      %p116 = scmp.ne.s32.totalorder %s104, %s105
      %p117 = scmp.eq.s32.totalorder %s37, 1
      %p118 = por %p116, %p117
      %p120 = scmp.ne.s32.totalorder %s105, %s119
      %p121 = scmp.eq.s32.totalorder %s37, 0
      %p122 = por %p120, %p121
      %s123 = ssub.s32 %s31, %s38
      %p124 = scmp.eq.s32.totalorder %s123, 0
      %s126 = sadd.s32 %s125, 1
      %s127 = scalar_select %p124, %s125, %s126
      %p130 = pneg %p124
      %p131 = scmp.eq.s32.totalorder %s31, 1
      %p132 = por %p130, %p131
      %p133 = scmp.ne.s32.totalorder %s125, %s128
      %p134 = scmp.eq.s32.totalorder %s31, 0
      %p135 = por %p133, %p134
      %p136 = scmp.ne.s32.totalorder %s125, %s128
      %p137 = scmp.eq.s32.totalorder %s36, 1
      %p138 = por %p136, %p137
      %p139 = scmp.ne.s32.totalorder %s128, %s129
      %p140 = scmp.eq.s32.totalorder %s36, 0
      %p141 = por %p139, %p140
      %p142 = scmp.ne.s32.totalorder %s128, %s129
      %p143 = scmp.eq.s32.totalorder %s37, 1
      %p144 = por %p142, %p143
      %p146 = scmp.ne.s32.totalorder %s129, %s145
      %p147 = scmp.eq.s32.totalorder %s37, 0
      %p148 = por %p146, %p147
      %s149 = ssub.s32 %s31, %s38
      %p150 = scmp.eq.s32.totalorder %s149, 0
      %s152 = sadd.s32 %s151, 1
      %s153 = scalar_select %p150, %s151, %s152
      %p156 = pneg %p150
      %p157 = scmp.eq.s32.totalorder %s31, 1
      %p158 = por %p156, %p157
      %p159 = scmp.ne.s32.totalorder %s151, %s154
      %p160 = scmp.eq.s32.totalorder %s31, 0
      %p161 = por %p159, %p160
      %p162 = scmp.ne.s32.totalorder %s151, %s154
      %p163 = scmp.eq.s32.totalorder %s36, 1
      %p164 = por %p162, %p163
      %p165 = scmp.ne.s32.totalorder %s154, %s155
      %p166 = scmp.eq.s32.totalorder %s36, 0
      %p167 = por %p165, %p166
      %p168 = scmp.ne.s32.totalorder %s154, %s155
      %p169 = scmp.eq.s32.totalorder %s37, 1
      %p170 = por %p168, %p169
      %p172 = scmp.ne.s32.totalorder %s155, %s171
      %p173 = scmp.eq.s32.totalorder %s37, 0
      %p174 = por %p172, %p173
      %s175 = ssub.s32 %s31, %s38
      %p176 = scmp.eq.s32.totalorder %s175, 0
      %s178 = sadd.s32 %s177, 1
      %s179 = scalar_select %p176, %s177, %s178
      %p182 = pneg %p176
      %p183 = scmp.eq.s32.totalorder %s31, 1
      %p184 = por %p182, %p183
      %p185 = scmp.ne.s32.totalorder %s177, %s180
      %p186 = scmp.eq.s32.totalorder %s31, 0
      %p187 = por %p185, %p186
      %p188 = scmp.ne.s32.totalorder %s177, %s180
      %p189 = scmp.eq.s32.totalorder %s36, 1
      %p190 = por %p188, %p189
      %p191 = scmp.ne.s32.totalorder %s180, %s181
      %p192 = scmp.eq.s32.totalorder %s36, 0
      %p193 = por %p191, %p192
      %p194 = scmp.ne.s32.totalorder %s180, %s181
      %p195 = scmp.eq.s32.totalorder %s37, 1
      %p196 = por %p194, %p195
      %p198 = scmp.ne.s32.totalorder %s181, %s197
      %p199 = scmp.eq.s32.totalorder %s37, 0
      %p200 = por %p198, %p199
      %s201 = ssub.s32 %s31, %s38
      %p202 = scmp.eq.s32.totalorder %s201, 0
      %s204 = sadd.s32 %s203, 1
      %s205 = scalar_select %p202, %s203, %s204
      %p208 = pneg %p202
      %p209 = scmp.eq.s32.totalorder %s31, 1
      %p210 = por %p208, %p209
      %p211 = scmp.ne.s32.totalorder %s203, %s206
      %p212 = scmp.eq.s32.totalorder %s31, 0
      %p213 = por %p211, %p212
      %p214 = scmp.ne.s32.totalorder %s203, %s206
      %p215 = scmp.eq.s32.totalorder %s36, 1
      %p216 = por %p214, %p215
      %p217 = scmp.ne.s32.totalorder %s206, %s207
      %p218 = scmp.eq.s32.totalorder %s36, 0
      %p219 = por %p217, %p218
      %p220 = scmp.ne.s32.totalorder %s206, %s207
      %p221 = scmp.eq.s32.totalorder %s37, 1
      %p222 = por %p220, %p221
      %p224 = scmp.ne.s32.totalorder %s207, %s223
      %p225 = scmp.eq.s32.totalorder %s37, 0
      %p226 = por %p224, %p225
      %s227 = ssub.s32 %s31, %s38
      %p228 = scmp.eq.s32.totalorder %s227, 0
      %s230 = sadd.s32 %s229, 1
      %s231 = scalar_select %p228, %s229, %s230
      %p234 = pneg %p228
      %p235 = scmp.eq.s32.totalorder %s31, 1
      %p236 = por %p234, %p235
      %p237 = scmp.ne.s32.totalorder %s229, %s232
      %p238 = scmp.eq.s32.totalorder %s31, 0
      %p239 = por %p237, %p238
      %p240 = scmp.ne.s32.totalorder %s229, %s232
      %p241 = scmp.eq.s32.totalorder %s36, 1
      %p242 = por %p240, %p241
      %p243 = scmp.ne.s32.totalorder %s232, %s233
      %p244 = scmp.eq.s32.totalorder %s36, 0
      %p245 = por %p243, %p244
      %p246 = scmp.ne.s32.totalorder %s232, %s233
      %p247 = scmp.eq.s32.totalorder %s37, 1
      %p248 = por %p246, %p247
      %p250 = scmp.ne.s32.totalorder %s233, %s249
      %p251 = scmp.eq.s32.totalorder %s37, 0
      %p252 = por %p250, %p251
      %s253 = ssub.s32 %s31, %s38
      %p254 = scmp.eq.s32.totalorder %s253, 0
      %s256 = sadd.s32 %s255, 1
      %s257 = scalar_select %p254, %s255, %s256
      %p260 = pneg %p254
      %p261 = scmp.eq.s32.totalorder %s31, 1
      %p262 = por %p260, %p261
      %p263 = scmp.ne.s32.totalorder %s255, %s258
      %p264 = scmp.eq.s32.totalorder %s31, 0
      %p265 = por %p263, %p264
      %p266 = scmp.ne.s32.totalorder %s255, %s258
      %p267 = scmp.eq.s32.totalorder %s36, 1
      %p268 = por %p266, %p267
      %p269 = scmp.ne.s32.totalorder %s258, %s259
      %p270 = scmp.eq.s32.totalorder %s36, 0
      %p271 = por %p269, %p270
      %p272 = scmp.ne.s32.totalorder %s258, %s259
      %p273 = scmp.eq.s32.totalorder %s37, 1
      %p274 = por %p272, %p273
      %p276 = scmp.ne.s32.totalorder %s259, %s275
      %p277 = scmp.eq.s32.totalorder %s37, 0
      %p278 = por %p276, %p277
      %s279 = ssub.s32 %s31, %s38
      %p280 = scmp.eq.s32.totalorder %s279, 0
      %s282 = sadd.s32 %s281, 1
      %s283 = scalar_select %p280, %s281, %s282
      %p286 = pneg %p280
      %p287 = scmp.eq.s32.totalorder %s31, 1
      %p288 = por %p286, %p287
      %p289 = scmp.ne.s32.totalorder %s281, %s284
      %p290 = scmp.eq.s32.totalorder %s31, 0
      %p291 = por %p289, %p290
      %p292 = scmp.ne.s32.totalorder %s281, %s284
      %p293 = scmp.eq.s32.totalorder %s36, 1
      %p294 = por %p292, %p293
      %p295 = scmp.ne.s32.totalorder %s284, %s285
      %p296 = scmp.eq.s32.totalorder %s36, 0
      %p297 = por %p295, %p296
      %p298 = scmp.ne.s32.totalorder %s284, %s285
      %p299 = scmp.eq.s32.totalorder %s37, 1
      %p300 = por %p298, %p299
      %p302 = scmp.ne.s32.totalorder %s285, %s301
      %p303 = scmp.eq.s32.totalorder %s37, 0
      %p304 = por %p302, %p303
      %s305 = ssub.s32 %s31, %s38
      %p306 = scmp.eq.s32.totalorder %s305, 0
      %s308 = sadd.s32 %s307, 1
      %s309 = scalar_select %p306, %s307, %s308
      %p312 = pneg %p306
      %p313 = scmp.eq.s32.totalorder %s31, 1
      %p314 = por %p312, %p313
      %p315 = scmp.ne.s32.totalorder %s307, %s310
      %p316 = scmp.eq.s32.totalorder %s31, 0
      %p317 = por %p315, %p316
      %p318 = scmp.ne.s32.totalorder %s307, %s310
      %p319 = scmp.eq.s32.totalorder %s36, 1
      %p320 = por %p318, %p319
      %p321 = scmp.ne.s32.totalorder %s310, %s311
      %p322 = scmp.eq.s32.totalorder %s36, 0
      %p323 = por %p321, %p322
      %p324 = scmp.ne.s32.totalorder %s310, %s311
      %p325 = scmp.eq.s32.totalorder %s37, 1
      %p326 = por %p324, %p325
      %p328 = scmp.ne.s32.totalorder %s311, %s327
      %p329 = scmp.eq.s32.totalorder %s37, 0
      %p330 = por %p328, %p329
      %s331 = ssub.s32 %s31, %s38
      %p332 = scmp.eq.s32.totalorder %s331, 0
      %s334 = sadd.s32 %s333, 1
      %s335 = scalar_select %p332, %s333, %s334
      %p338 = pneg %p332
      %p339 = scmp.eq.s32.totalorder %s31, 1
      %p340 = por %p338, %p339
      %p341 = scmp.ne.s32.totalorder %s333, %s336
      %p342 = scmp.eq.s32.totalorder %s31, 0
      %p343 = por %p341, %p342
      %p344 = scmp.ne.s32.totalorder %s333, %s336
      %p345 = scmp.eq.s32.totalorder %s36, 1
      %p346 = por %p344, %p345
      %p347 = scmp.ne.s32.totalorder %s336, %s337
      %p348 = scmp.eq.s32.totalorder %s36, 0
      %p349 = por %p347, %p348
      %p350 = scmp.ne.s32.totalorder %s336, %s337
      %p351 = scmp.eq.s32.totalorder %s37, 1
      %p352 = por %p350, %p351
      %p354 = scmp.ne.s32.totalorder %s337, %s353
      %p355 = scmp.eq.s32.totalorder %s37, 0
      %p356 = por %p354, %p355
      %s357 = ssub.s32 %s31, %s38
      %p358 = scmp.eq.s32.totalorder %s357, 0
      %s360 = sadd.s32 %s359, 1
      %s361 = scalar_select %p358, %s359, %s360
      %p364 = pneg %p358
      %p365 = scmp.eq.s32.totalorder %s31, 1
      %p366 = por %p364, %p365
      %p367 = scmp.ne.s32.totalorder %s359, %s362
      %p368 = scmp.eq.s32.totalorder %s31, 0
      %p369 = por %p367, %p368
      %p370 = scmp.ne.s32.totalorder %s359, %s362
      %p371 = scmp.eq.s32.totalorder %s36, 1
      %p372 = por %p370, %p371
      %p373 = scmp.ne.s32.totalorder %s362, %s363
      %p374 = scmp.eq.s32.totalorder %s36, 0
      %p375 = por %p373, %p374
      %p376 = scmp.ne.s32.totalorder %s362, %s363
      %p377 = scmp.eq.s32.totalorder %s37, 1
      %p378 = por %p376, %p377
      %p380 = scmp.ne.s32.totalorder %s363, %s379
      %p381 = scmp.eq.s32.totalorder %s37, 0
      %p382 = por %p380, %p381
      %s383 = ssub.s32 %s31, %s38
      %p384 = scmp.eq.s32.totalorder %s383, 0
      %s386 = sadd.s32 %s385, 1
      %s387 = scalar_select %p384, %s385, %s386
      %p390 = pneg %p384
      %p391 = scmp.eq.s32.totalorder %s31, 1
      %p392 = por %p390, %p391
      %p393 = scmp.ne.s32.totalorder %s385, %s388
      %p394 = scmp.eq.s32.totalorder %s31, 0
      %p395 = por %p393, %p394
      %p396 = scmp.ne.s32.totalorder %s385, %s388
      %p397 = scmp.eq.s32.totalorder %s36, 1
      %p398 = por %p396, %p397
      %p399 = scmp.ne.s32.totalorder %s388, %s389
      %p400 = scmp.eq.s32.totalorder %s36, 0
      %p401 = por %p399, %p400
      %p402 = scmp.ne.s32.totalorder %s388, %s389
      %p403 = scmp.eq.s32.totalorder %s37, 1
      %p404 = por %p402, %p403
      %p406 = scmp.ne.s32.totalorder %s389, %s405
      %p407 = scmp.eq.s32.totalorder %s37, 0
      %p408 = por %p406, %p407
      %s410 = sadd.s32 %s409, 1
      %p413 = scmp.eq.s32.totalorder %s31, 1
      %p414 = scmp.ne.s32.totalorder %s409, %s411
      %p415 = scmp.eq.s32.totalorder %s31, 0
      %p416 = por %p414, %p415
      %p417 = scmp.ne.s32.totalorder %s409, %s411
      %p418 = scmp.eq.s32.totalorder %s36, 1
      %p419 = por %p417, %p418
      %p420 = scmp.ne.s32.totalorder %s411, %s412
      %p421 = scmp.eq.s32.totalorder %s36, 0
      %p422 = por %p420, %p421
      %p423 = scmp.ne.s32.totalorder %s411, %s412
      %p424 = scmp.eq.s32.totalorder %s37, 1
      %p425 = por %p423, %p424
      %p427 = scmp.ne.s32.totalorder %s412, %s426
      %p428 = scmp.eq.s32.totalorder %s37, 0
      %p429 = por %p427, %p428
      %p430 = scmp.le.s32.totalorder 1, %s31
      %p431 = scmp.lt.s32.totalorder %s31, 3
      %p432 = pnand %p430, %p431
      %p433 = pneg %p432
      // Predicated region
      $region9: #{decoder_forward.1} parent=5 // pred_check
        _
      $region10: #{decoder_forward.1} parent=5 // pred_check_branch
        %435 = sbr.rel (%p432) target = $region12
      $region11: #{decoder_forward.1} parent=5 // pred_region
        %s436 = ssub.s32 %s31, 1
        // Predicated region
        $region13: #{decoder_forward.1} parent=11 // pred_check
          %p437 = pneg %p52
        $region14: #{decoder_forward.1} parent=11 // pred_check_branch
          %439 = sbr.rel (%p437) target = $region16
        $region15: #{decoder_forward.1} parent=11 // pred_region
          _
        $region16: #{decoder_forward.1} parent=11 // pred_fallthru
          _
        // Predicated region
        $region17: #{decoder_forward.1} parent=11 // pred_check
          %p440 = pneg %p73
        $region18: #{decoder_forward.1} parent=11 // pred_check_branch
          %442 = sbr.rel (%p440) target = $region20
        $region19: #{decoder_forward.1} parent=11 // pred_region
          _
        $region20: #{decoder_forward.1} parent=11 // pred_fallthru
          _
        // Predicated region
        $region21: #{decoder_forward.1} parent=11 // pred_check
          %p443 = pneg %p94
        $region22: #{decoder_forward.1} parent=11 // pred_check_branch
          %445 = sbr.rel (%p443) target = $region24
        $region23: #{decoder_forward.1} parent=11 // pred_region
          _
        $region24: #{decoder_forward.1} parent=11 // pred_fallthru
          _
        // Predicated region
        $region25: #{decoder_forward.1} parent=11 // pred_check
          %p446 = pneg %p115
        $region26: #{decoder_forward.1} parent=11 // pred_check_branch
          %448 = sbr.rel (%p446) target = $region28
        $region27: #{decoder_forward.1} parent=11 // pred_region
          _
        $region28: #{decoder_forward.1} parent=11 // pred_fallthru
          _
      $region12: #{decoder_forward.1} parent=5 // pred_fallthru
        _
      %p449 = scmp.lt.s32.totalorder %s31, 2
      // Predicated region
      $region29: #{decoder_forward.1} parent=5 // pred_check
        %p450 = pneg %p449
      $region30: #{decoder_forward.1} parent=5 // pred_check_branch
        %452 = sbr.rel (%p450) target = $region32
      $region31: #{decoder_forward.1} parent=5 // pred_region
        // Predicated region
        $region33: #{decoder_forward.1} parent=31 // pred_check
          %p453 = pneg %p135
        $region34: #{decoder_forward.1} parent=31 // pred_check_branch
          %455 = sbr.rel (%p453) target = $region36
        $region35: #{decoder_forward.1} parent=31 // pred_region
          %s456 = sand.u32 %s125, 1
          %s457 = scalar_lea.sflag [#allocation3], %s456
          %s458 = sand.u32 %s125, 1
          %s459 = smul.addr %s458, 192
          %s460 = scalar_lea.vmem [#allocation2], %s459
          %462 = vsyncadd %s457, 0
          %s463 = smul.addr %s31, 48
          %s464 = smul.addr %s463, 4
          %s465 = scalar_lea.hbm %s4, %s464
          %s466 = sshll.u32 %s465, 4
          %s467 = int_to_ptr.hbm [resolvable:$true] %s466
          %s468 = sshll.u32 %s460, 4
          %s469 = int_to_ptr.vmem [resolvable:$true] %s468
          %474 = dma.hbm_to_vmem [thread:$0]  %s467, 3072, %s469, %s457, 192, 192, 12
        $region36: #{decoder_forward.1} parent=31 // pred_fallthru
          _
        // Predicated region
        $region37: #{decoder_forward.1} parent=31 // pred_check
          %p475 = pneg %p161
        $region38: #{decoder_forward.1} parent=31 // pred_check_branch
          %477 = sbr.rel (%p475) target = $region40
        $region39: #{decoder_forward.1} parent=31 // pred_region
          %p478 = scmp.lt.s32.totalorder %s31, 1
          %s479 = scalar_select %p478, %s31, 1
          %s480 = smul.addr %s479, 4
          %s481 = smul.addr %s480, 4
          %s482 = scalar_lea.vmem %s5, %s481
        $region40: #{decoder_forward.1} parent=31 // pred_fallthru
          _
        // Predicated region
        $region41: #{decoder_forward.1} parent=31 // pred_check
          %p483 = pneg %p187
        $region42: #{decoder_forward.1} parent=31 // pred_check_branch
          %485 = sbr.rel (%p483) target = $region44
        $region43: #{decoder_forward.1} parent=31 // pred_region
          %p486 = scmp.lt.s32.totalorder %s31, 1
          %s487 = scalar_select %p486, %s31, 1
          %s488 = smul.addr %s487, 16
          %s489 = smul.addr %s488, 4
          %s490 = scalar_lea.vmem %s6, %s489
        $region44: #{decoder_forward.1} parent=31 // pred_fallthru
          _
        // Predicated region
        $region45: #{decoder_forward.1} parent=31 // pred_check
          %p491 = pneg %p213
        $region46: #{decoder_forward.1} parent=31 // pred_check_branch
          %493 = sbr.rel (%p491) target = $region48
        $region47: #{decoder_forward.1} parent=31 // pred_region
          %s494 = sand.u32 %s31, 1
          %s495 = scalar_lea.sflag [#allocation6], %s494
          %s496 = sand.u32 %s203, 1
          %s497 = smul.addr %s496, 128
          %s498 = scalar_lea.vmem [#allocation5], %s497
          %500 = vsyncadd %s495, 0
          %s501 = smul.addr %s31, 32
          %s502 = smul.addr %s501, 4
          %s503 = scalar_lea.hbm %s7, %s502
          %s504 = sshll.u32 %s503, 4
          %s505 = int_to_ptr.hbm [resolvable:$true] %s504
          %s506 = sshll.u32 %s498, 4
          %s507 = int_to_ptr.vmem [resolvable:$true] %s506
          %512 = dma.hbm_to_vmem [thread:$0]  %s505, 2048, %s507, %s495, 128, 128, 8
        $region48: #{decoder_forward.1} parent=31 // pred_fallthru
          _
        // Predicated region
        $region49: #{decoder_forward.1} parent=31 // pred_check
          %p513 = pneg %p239
        $region50: #{decoder_forward.1} parent=31 // pred_check_branch
          %515 = sbr.rel (%p513) target = $region52
        $region51: #{decoder_forward.1} parent=31 // pred_region
          %p516 = scmp.lt.s32.totalorder %s31, 1
          %s517 = scalar_select %p516, %s31, 1
          %s518 = smul.addr %s517, 4
          %s519 = smul.addr %s518, 4
          %s520 = scalar_lea.vmem %s8, %s519
        $region52: #{decoder_forward.1} parent=31 // pred_fallthru
          _
        // Predicated region
        $region53: #{decoder_forward.1} parent=31 // pred_check
          %p521 = pneg %p265
        $region54: #{decoder_forward.1} parent=31 // pred_check_branch
          %523 = sbr.rel (%p521) target = $region56
        $region55: #{decoder_forward.1} parent=31 // pred_region
          %s524 = sand.u32 %s31, 1
          %s525 = scalar_lea.sflag [#allocation6], %s524
          %s526 = sand.u32 %s255, 1
          %s527 = smul.addr %s526, 64
          %s528 = scalar_lea.vmem [#allocation7], %s527
          %530 = vsyncadd %s525, 0
          %s531 = smul.addr %s31, 16
          %s532 = smul.addr %s531, 4
          %s533 = scalar_lea.hbm %s9, %s532
          %s534 = sshll.u32 %s533, 4
          %s535 = int_to_ptr.hbm [resolvable:$true] %s534
          %s536 = sshll.u32 %s528, 4
          %s537 = int_to_ptr.vmem [resolvable:$true] %s536
          %542 = dma.hbm_to_vmem [thread:$0]  %s535, 1024, %s537, %s525, 64, 64, 4
        $region56: #{decoder_forward.1} parent=31 // pred_fallthru
          _
        // Predicated region
        $region57: #{decoder_forward.1} parent=31 // pred_check
          %p543 = pneg %p291
        $region58: #{decoder_forward.1} parent=31 // pred_check_branch
          %545 = sbr.rel (%p543) target = $region60
        $region59: #{decoder_forward.1} parent=31 // pred_region
          %s546 = sand.u32 %s281, 1
          %s547 = scalar_lea.sflag [#allocation9], %s546
          %s548 = sand.u32 %s281, 1
          %s549 = smul.addr %s548, 64
          %s550 = scalar_lea.vmem [#allocation8], %s549
          %552 = vsyncadd %s547, 0
          %s553 = smul.addr %s31, 16
          %s554 = smul.addr %s553, 4
          %s555 = scalar_lea.hbm %s10, %s554
          %s556 = sshll.u32 %s555, 4
          %s557 = int_to_ptr.hbm [resolvable:$true] %s556
          %s558 = sshll.u32 %s550, 4
          %s559 = int_to_ptr.vmem [resolvable:$true] %s558
          %564 = dma.hbm_to_vmem [thread:$0]  %s557, 1024, %s559, %s547, 64, 64, 4
        $region60: #{decoder_forward.1} parent=31 // pred_fallthru
          _
        // Predicated region
        $region61: #{decoder_forward.1} parent=31 // pred_check
          %p565 = pneg %p317
        $region62: #{decoder_forward.1} parent=31 // pred_check_branch
          %567 = sbr.rel (%p565) target = $region64
        $region63: #{decoder_forward.1} parent=31 // pred_region
          %p568 = scmp.lt.s32.totalorder %s31, 1
          %s569 = scalar_select %p568, %s31, 1
          %s570 = smul.addr %s569, 3
          %s571 = scalar_lea.vmem %s11, %s570
        $region64: #{decoder_forward.1} parent=31 // pred_fallthru
          _
        // Predicated region
        $region65: #{decoder_forward.1} parent=31 // pred_check
          %p572 = pneg %p343
        $region66: #{decoder_forward.1} parent=31 // pred_check_branch
          %574 = sbr.rel (%p572) target = $region68
        $region67: #{decoder_forward.1} parent=31 // pred_region
          %p575 = scmp.lt.s32.totalorder %s31, 1
          %s576 = scalar_select %p575, %s31, 1
          %s577 = smul.addr %s576, 2
          %s578 = scalar_lea.vmem %s12, %s577
        $region68: #{decoder_forward.1} parent=31 // pred_fallthru
          _
        // Predicated region
        $region69: #{decoder_forward.1} parent=31 // pred_check
          %p579 = pneg %p369
        $region70: #{decoder_forward.1} parent=31 // pred_check_branch
          %581 = sbr.rel (%p579) target = $region72
        $region71: #{decoder_forward.1} parent=31 // pred_region
          %p582 = scmp.lt.s32.totalorder %s31, 1
          %s583 = scalar_select %p582, %s31, 1
          %s584 = scalar_lea.vmem %s13, %s583
        $region72: #{decoder_forward.1} parent=31 // pred_fallthru
          _
        // Predicated region
        $region73: #{decoder_forward.1} parent=31 // pred_check
          %p585 = pneg %p395
        $region74: #{decoder_forward.1} parent=31 // pred_check_branch
          %587 = sbr.rel (%p585) target = $region76
        $region75: #{decoder_forward.1} parent=31 // pred_region
          %p588 = scmp.lt.s32.totalorder %s31, 1
          %s589 = scalar_select %p588, %s31, 1
          %s590 = smul.addr %s589, 2
          %s591 = smul.addr %s590, 8
          %s592 = scalar_lea.vmem %s14, %s591
        $region76: #{decoder_forward.1} parent=31 // pred_fallthru
          _
      $region32: #{decoder_forward.1} parent=5 // pred_fallthru
        _
      %p593 = scmp.le.s32.totalorder 1, %s31
      %p594 = scmp.lt.s32.totalorder %s31, 3
      %p595 = pnand %p593, %p594
      %p596 = pneg %p595
      // Predicated region
      $region77: #{decoder_forward.1} parent=5 // pred_check
        _
      $region78: #{decoder_forward.1} parent=5 // pred_check_branch
        %598 = sbr.rel (%p595) target = $region80
      $region79: #{decoder_forward.1} parent=5 // pred_region
        %s599 = ssub.s32 %s31, 1
        %s600 = sand.u32 %s128, 1
        %s601 = scalar_lea.sflag [#allocation3], %s600
        %s602 = sand.u32 %s128, 1
        %s603 = smul.addr %s602, 192
        %s604 = scalar_lea.vmem [#allocation2], %s603
        // Predicated region
        $region81: #{decoder_forward.1} parent=79 // pred_check
          %p605 = pneg %p141
        $region82: #{decoder_forward.1} parent=79 // pred_check_branch
          %607 = sbr.rel (%p605) target = $region84
        $region83: #{decoder_forward.1} parent=79 // pred_region
          %609 = dma.done %s601, 3072
        $region84: #{decoder_forward.1} parent=79 // pred_fallthru
          _
        %s610 = sand.u32 %s36, 1
        %s611 = scalar_lea.sflag [#allocation6], %s610
        %s612 = sand.u32 %s206, 1
        %s613 = smul.addr %s612, 128
        %s614 = scalar_lea.vmem [#allocation5], %s613
        // Predicated region
        $region85: #{decoder_forward.1} parent=79 // pred_check
          %p615 = pneg %p219
        $region86: #{decoder_forward.1} parent=79 // pred_check_branch
          %617 = sbr.rel (%p615) target = $region88
        $region87: #{decoder_forward.1} parent=79 // pred_region
          %619 = dma.done %s611, 2048
        $region88: #{decoder_forward.1} parent=79 // pred_fallthru
          _
        %s620 = sand.u32 %s36, 1
        %s621 = scalar_lea.sflag [#allocation6], %s620
        %s622 = sand.u32 %s258, 1
        %s623 = smul.addr %s622, 64
        %s624 = scalar_lea.vmem [#allocation7], %s623
        // Predicated region
        $region89: #{decoder_forward.1} parent=79 // pred_check
          %p625 = pneg %p271
        $region90: #{decoder_forward.1} parent=79 // pred_check_branch
          %627 = sbr.rel (%p625) target = $region92
        $region91: #{decoder_forward.1} parent=79 // pred_region
          %629 = dma.done %s621, 1024
        $region92: #{decoder_forward.1} parent=79 // pred_fallthru
          _
        %s630 = sand.u32 %s284, 1
        %s631 = scalar_lea.sflag [#allocation9], %s630
        %s632 = sand.u32 %s284, 1
        %s633 = smul.addr %s632, 64
        %s634 = scalar_lea.vmem [#allocation8], %s633
        // Predicated region
        $region93: #{decoder_forward.1} parent=79 // pred_check
          %p635 = pneg %p297
        $region94: #{decoder_forward.1} parent=79 // pred_check_branch
          %637 = sbr.rel (%p635) target = $region96
        $region95: #{decoder_forward.1} parent=79 // pred_region
          %639 = dma.done %s631, 1024
        $region96: #{decoder_forward.1} parent=79 // pred_fallthru
          _
        %p640 = pneg %p52
        %p641 = pneg %p49
        %p642 = pneg %p73
        %p643 = pneg %p70
        %p644 = pneg %p94
        %p645 = pneg %p91
        %p646 = pneg %p115
        %p647 = pneg %p112
        %s648 = sand.u32 %s128, 1
        %s649 = scalar_lea.sflag [#allocation3], %s648
        %s650 = sand.u32 %s128, 1
        %s651 = smul.addr %s650, 192
        %s652 = scalar_lea.vmem [#allocation2], %s651
        %p653 = pneg %p141
        %p654 = pneg %p138
        %p655 = scmp.lt.s32.totalorder %s36, 1
        %s656 = scalar_select %p655, %s36, 1
        %s657 = smul.addr %s656, 4
        %s658 = smul.addr %s657, 4
        %s659 = scalar_lea.vmem %s5, %s658
        %p660 = pneg %p167
        %p661 = pneg %p164
        %p662 = scmp.lt.s32.totalorder %s36, 1
        %s663 = scalar_select %p662, %s36, 1
        %s664 = smul.addr %s663, 16
        %s665 = smul.addr %s664, 4
        %s666 = scalar_lea.vmem %s6, %s665
        %p667 = pneg %p193
        %p668 = pneg %p190
        %s669 = sand.u32 %s36, 1
        %s670 = scalar_lea.sflag [#allocation6], %s669
        %s671 = sand.u32 %s206, 1
        %s672 = smul.addr %s671, 128
        %s673 = scalar_lea.vmem [#allocation5], %s672
        %p674 = pneg %p219
        %p675 = pneg %p216
        %p676 = scmp.lt.s32.totalorder %s36, 1
        %s677 = scalar_select %p676, %s36, 1
        %s678 = smul.addr %s677, 4
        %s679 = smul.addr %s678, 4
        %s680 = scalar_lea.vmem %s8, %s679
        %p681 = pneg %p245
        %p682 = pneg %p242
        %s683 = sand.u32 %s36, 1
        %s684 = scalar_lea.sflag [#allocation6], %s683
        %s685 = sand.u32 %s258, 1
        %s686 = smul.addr %s685, 64
        %s687 = scalar_lea.vmem [#allocation7], %s686
        %p688 = pneg %p271
        %p689 = pneg %p268
        %s690 = sand.u32 %s284, 1
        %s691 = scalar_lea.sflag [#allocation9], %s690
        %s692 = sand.u32 %s284, 1
        %s693 = smul.addr %s692, 64
        %s694 = scalar_lea.vmem [#allocation8], %s693
        %p695 = pneg %p297
        %p696 = pneg %p294
        %p697 = scmp.lt.s32.totalorder %s36, 1
        %s698 = scalar_select %p697, %s36, 1
        %s699 = smul.addr %s698, 3
        %s700 = scalar_lea.vmem %s11, %s699
        %p701 = pneg %p323
        %p702 = pneg %p320
        %p703 = scmp.lt.s32.totalorder %s36, 1
        %s704 = scalar_select %p703, %s36, 1
        %s705 = smul.addr %s704, 2
        %s706 = scalar_lea.vmem %s12, %s705
        %p707 = pneg %p349
        %p708 = pneg %p346
        %p709 = scmp.lt.s32.totalorder %s36, 1
        %s710 = scalar_select %p709, %s36, 1
        %s711 = scalar_lea.vmem %s13, %s710
        %p712 = pneg %p375
        %p713 = pneg %p372
        %p714 = scmp.lt.s32.totalorder %s36, 1
        %s715 = scalar_select %p714, %s36, 1
        %s716 = smul.addr %s715, 2
        %s717 = smul.addr %s716, 8
        %s718 = scalar_lea.vmem %s14, %s717
        %p719 = pneg %p401
        %p720 = pneg %p398
        %p721 = pneg %p422
        %p722 = pneg %p419
        %p723 = scmp.lt.s32.totalorder %s36, 1
        %s724 = scalar_select %p723, %s36, 1
        %s725 = smul.addr %s724, 4
        %s726 = smul.addr %s725, 4
        %s727 = scalar_lea.vmem %s5, %s726
        %p728 = scmp.lt.s32.totalorder %s36, 1
        %s729 = scalar_select %p728, %s36, 1
        %s730 = smul.addr %s729, 16
        %s731 = smul.addr %s730, 4
        %s732 = scalar_lea.vmem %s6, %s731
        %p733 = scmp.lt.s32.totalorder %s36, 1
        %s734 = scalar_select %p733, %s36, 1
        %s735 = smul.addr %s734, 4
        %s736 = smul.addr %s735, 4
        %s737 = scalar_lea.vmem %s8, %s736
        %p738 = scmp.lt.s32.totalorder %s36, 1
        %s739 = scalar_select %p738, %s36, 1
        %s740 = smul.addr %s739, 3
        %s741 = scalar_lea.vmem %s11, %s740
        %p742 = scmp.lt.s32.totalorder %s36, 1
        %s743 = scalar_select %p742, %s36, 1
        %s744 = smul.addr %s743, 2
        %s745 = scalar_lea.vmem %s12, %s744
        %p746 = scmp.lt.s32.totalorder %s36, 1
        %s747 = scalar_select %p746, %s36, 1
        %s748 = scalar_lea.vmem %s13, %s747
        %p749 = scmp.lt.s32.totalorder %s36, 1
        %s750 = scalar_select %p749, %s36, 1
        %s751 = smul.addr %s750, 2
        %s752 = smul.addr %s751, 8
        %s753 = scalar_lea.vmem %s14, %s752
        %p755 = scmp.eq.s32.totalorder %s36, 0
        // Predicated region
        $region97: #{decoder_forward.1} parent=79 // pred_check
          %p756 = pneg %p755
        $region98: #{decoder_forward.1} parent=79 // pred_check_branch
          %758 = sbr.rel (%p756) target = $region100
        $region99: #{decoder_forward.1} parent=79 // pred_region
          %v759 = vld [vmem:[%s0] sm:$0xff]
          %v760 = vld [vmem:[%s0 + $0x8] sm:$0xff]
          %761 = vst [vmem:[#allocation10] sm:$0xff] %v759
          %762 = vst [vmem:[#allocation10 + $0x8] sm:$0xff] %v760
        $region100: #{decoder_forward.1} parent=79 // pred_fallthru
          _
        %v763 = vld [vmem:[#allocation10] sm:$0xff]
        %v764 = vld [vmem:[#allocation10 + $0x8] sm:$0xff]
        %v765 = vld [vmem:[%s753] sm:$0xff]
        %v766 = vld [vmem:[%s753 + $0x8] sm:$0x3]
        %v767 = vlaneseq
        %v768 = vand.u32 %v767, 127
        %vm769 = vcmp.lt.s32.totalorder %v768, 32
        %v770 = vpack.c.bf16 %v764, %v763
        %v771 = vld [vmem:[%s604] sm:$0xff]
        %v772 = vld [vmem:[%s604 + $0x8] sm:$0xf]
        %v773 = vld [vmem:[%s604 + $0xc] sm:$0xff]
        %v774 = vld [vmem:[%s604 + $0x14] sm:$0xf]
        %v775 = vld [vmem:[%s604 + $0x18] sm:$0xff]
        %v776 = vld [vmem:[%s604 + $0x20] sm:$0xf]
        %v777 = vld [vmem:[%s604 + $0x24] sm:$0xff]
        %v778 = vld [vmem:[%s604 + $0x2c] sm:$0xf]
        %v779 = vld [vmem:[%s604 + $0x30] sm:$0xff]
        %v780 = vld [vmem:[%s604 + $0x38] sm:$0xf]
        %v781 = vld [vmem:[%s604 + $0x3c] sm:$0xff]
        %v782 = vld [vmem:[%s604 + $0x44] sm:$0xf]
        %v783 = vld [vmem:[%s604 + $0x48] sm:$0xff]
        %v784 = vld [vmem:[%s604 + $0x50] sm:$0xf]
        %v785 = vld [vmem:[%s604 + $0x54] sm:$0xff]
        %v786 = vld [vmem:[%s604 + $0x5c] sm:$0xf]
        %v787 = vld [vmem:[%s604 + $0x60] sm:$0xff]
        %v788 = vld [vmem:[%s604 + $0x68] sm:$0xf]
        %v789 = vld [vmem:[%s604 + $0x6c] sm:$0xff]
        %v790 = vld [vmem:[%s604 + $0x74] sm:$0xf]
        %v791 = vld [vmem:[%s604 + $0x78] sm:$0xff]
        %v792 = vld [vmem:[%s604 + $0x80] sm:$0xf]
        %v793 = vld [vmem:[%s604 + $0x84] sm:$0xff]
        %v794 = vld [vmem:[%s604 + $0x8c] sm:$0xf]
        %v795 = vld [vmem:[%s604 + $0x90] sm:$0xff]
        %v796 = vld [vmem:[%s604 + $0x98] sm:$0xf]
        %v797 = vld [vmem:[%s604 + $0x9c] sm:$0xff]
        %v798 = vld [vmem:[%s604 + $0xa4] sm:$0xf]
        %v799 = vld [vmem:[%s604 + $0xa8] sm:$0xff]
        %v800 = vld [vmem:[%s604 + $0xb0] sm:$0xf]
        %v801 = vld [vmem:[%s604 + $0xb4] sm:$0xff]
        %v802 = vld [vmem:[%s604 + $0xbc] sm:$0xf]
        %v803 = vld [vmem:[%s741] sm:$0x7]
        %v805 = vperm.slane %v803, 0
        %v806 = vperm.slane %v803, 1
        %v807 = vperm.slane %v803, 2
        %v843 = vunpack.c.l.b16 %v771
        %v844 = vunpack.c.h.b16 %v771
        %v845 = vunpack.c.l.b16 %v772
        %v846 = vunpack.c.l.b16 %v773
        %v847 = vunpack.c.h.b16 %v773
        %v848 = vunpack.c.l.b16 %v774
        %v849 = vunpack.c.l.b16 %v775
        %v850 = vunpack.c.h.b16 %v775
        %v851 = vunpack.c.l.b16 %v776
        %v852 = vunpack.c.l.b16 %v777
        %v853 = vunpack.c.h.b16 %v777
        %v854 = vunpack.c.l.b16 %v778
        %v855 = vunpack.c.l.b16 %v779
        %v856 = vunpack.c.h.b16 %v779
        %v857 = vunpack.c.l.b16 %v780
        %v858 = vunpack.c.l.b16 %v781
        %v859 = vunpack.c.h.b16 %v781
        %v860 = vunpack.c.l.b16 %v782
        %v861 = vunpack.c.l.b16 %v783
        %v862 = vunpack.c.h.b16 %v783
        %v863 = vunpack.c.l.b16 %v784
        %v864 = vunpack.c.l.b16 %v785
        %v865 = vunpack.c.h.b16 %v785
        %v866 = vunpack.c.l.b16 %v786
        %v867 = vunpack.c.l.b16 %v787
        %v868 = vunpack.c.h.b16 %v787
        %v869 = vunpack.c.l.b16 %v788
        %v870 = vunpack.c.l.b16 %v789
        %v871 = vunpack.c.h.b16 %v789
        %v872 = vunpack.c.l.b16 %v790
        %v873 = vunpack.c.l.b16 %v791
        %v874 = vunpack.c.h.b16 %v791
        %v875 = vunpack.c.l.b16 %v792
        %v876 = vunpack.c.l.b16 %v793
        %v877 = vunpack.c.h.b16 %v793
        %v878 = vunpack.c.l.b16 %v794
        %v879 = vunpack.c.l.b16 %v795
        %v880 = vunpack.c.h.b16 %v795
        %v881 = vunpack.c.l.b16 %v796
        %v882 = vunpack.c.l.b16 %v797
        %v883 = vunpack.c.h.b16 %v797
        %v884 = vunpack.c.l.b16 %v798
        %v885 = vunpack.c.l.b16 %v799
        %v886 = vunpack.c.h.b16 %v799
        %v887 = vunpack.c.l.b16 %v800
        %v888 = vunpack.c.l.b16 %v801
        %v889 = vunpack.c.h.b16 %v801
        %v890 = vunpack.c.l.b16 %v802
        %v891 = vpack.c.b16 %v846, %v843
        %v892 = vpack.c.b16 %v847, %v844
        %v893 = vpack.c.b16 %v848, %v845
        %v894 = vpack.c.b16 %v852, %v849
        %v895 = vpack.c.b16 %v853, %v850
        %v896 = vpack.c.b16 %v854, %v851
        %v897 = vpack.c.b16 %v858, %v855
        %v898 = vpack.c.b16 %v859, %v856
        %v899 = vpack.c.b16 %v860, %v857
        %v900 = vpack.c.b16 %v864, %v861
        %v901 = vpack.c.b16 %v865, %v862
        %v902 = vpack.c.b16 %v866, %v863
        %v903 = vpack.c.b16 %v870, %v867
        %v904 = vpack.c.b16 %v871, %v868
        %v905 = vpack.c.b16 %v872, %v869
        %v906 = vpack.c.b16 %v876, %v873
        %v907 = vpack.c.b16 %v877, %v874
        %v908 = vpack.c.b16 %v878, %v875
        %v909 = vpack.c.b16 %v882, %v879
        %v910 = vpack.c.b16 %v883, %v880
        %v911 = vpack.c.b16 %v884, %v881
        %v912 = vpack.c.b16 %v888, %v885
        %v913 = vpack.c.b16 %v889, %v886
        %v914 = vpack.c.b16 %v890, %v887
        %939 = vmatpush.bf16.msra.mxu0 %v912
        %940 = vmatpush.bf16.msra.mxu0 %v909
        %941 = vmatpush.bf16.msra.mxu0 %v906
        %942 = vmatpush.bf16.msra.mxu0 %v903
        %943 = vmatpush.bf16.msra.mxu0 %v900
        %944 = vmatpush.bf16.msra.mxu0 %v897
        %945 = vmatpush.bf16.msra.mxu0 %v894
        %946 = vmatpush.bf16.msra.mxu0 %v891
        %947 = vmatmul.bf16.gmra.mxu0 %v770
        %v948 = vpop.f32.mrf.mxu0
        %v949 = vadd.f32 %v805, %v948
        %v950 = vpop.f32.mrf.mxu0
        %v951 = vadd.f32 %v805, %v950
        %952 = vdwg.mxu0
        %953 = vmatpush.bf16.msra.mxu0 %v913
        %954 = vmatpush.bf16.msra.mxu0 %v910
        %955 = vmatpush.bf16.msra.mxu0 %v907
        %956 = vmatpush.bf16.msra.mxu0 %v904
        %957 = vmatpush.bf16.msra.mxu0 %v901
        %958 = vmatpush.bf16.msra.mxu0 %v898
        %959 = vmatpush.bf16.msra.mxu0 %v895
        %960 = vmatpush.bf16.msra.mxu0 %v892
        %961 = vmatmul.bf16.gmra.mxu0 %v770
        %v962 = vpop.f32.mrf.mxu0
        %v963 = vadd.f32 %v806, %v962
        %v964 = vpop.f32.mrf.mxu0
        %v965 = vadd.f32 %v806, %v964
        %966 = vdwg.mxu0
        %967 = vmatpush.bf16.msra.mxu0 %v914
        %968 = vmatpush.bf16.msra.mxu0 %v911
        %969 = vmatpush.bf16.msra.mxu0 %v908
        %970 = vmatpush.bf16.msra.mxu0 %v905
        %971 = vmatpush.bf16.msra.mxu0 %v902
        %972 = vmatpush.bf16.msra.mxu0 %v899
        %973 = vmatpush.bf16.msra.mxu0 %v896
        %974 = vmatpush.bf16.msra.mxu0 %v893
        %975 = vmatmul.bf16.gmra.mxu0 %v770
        %v976 = vpop.f32.mrf.mxu0
        %v977 = vadd.f32 %v807, %v976
        %v978 = vpop.f32.mrf.mxu0
        %v979 = vadd.f32 %v807, %v978
        %980 = vdwg.mxu0
        %v981 = vld [vmem:[%s2] sm:$0x1]
        %v982 = vld [vmem:[%s2 + $0x1] sm:$0x1]
        %v983 = vld [vmem:[%s727] sm:$0xf]
        %v984 = vld [vmem:[%s727 + $0x4] sm:$0xf]
        %v985 = vld [vmem:[%s727 + $0x8] sm:$0xf]
        %v986 = vld [vmem:[%s727 + $0xc] sm:$0xf]
        %v989 = vperm.slane %v981, 0
        %v990 = vperm.slane %v982, 0
        %vm993 = vcmask 64512
        %v995 = vsel %vm993, %v949, 0
        %v998 = vsel %vm993, %v963, 0
        %1000 = vmatpush.xpose.msra.mxu0 0.0
        %1001 = vmatpush.xpose.msra.mxu0 0.0
        %1002 = vmatpush.xpose.msra.mxu0 0.0
        %1003 = vmatpush.xpose.msra.mxu0 0.0
        %1004 = vmatpush.xpose.msra.mxu0 0.0
        %1005 = vmatpush.xpose.msra.mxu0 0.0
        %1006 = vmatpush.xpose.msra.mxu0 0.0
        %1007 = vmatpush.xpose.msra.mxu0 0.0
        %1008 = vmatpush.xpose.msra.mxu0 0.0
        %1009 = vmatpush.xpose.msra.mxu0 0.0
        %1010 = vmatpush.xpose.msra.mxu0 0.0
        %1011 = vmatpush.xpose.msra.mxu0 0.0
        %1012 = vmatpush.xpose.msra.mxu0 0.0
        %1013 = vmatpush.xpose.msra.mxu0 0.0
        %1014 = vmatpush.xpose.msra.mxu0 0.0
        %1015 = vmatpush.xpose.msra.mxu0 %v998
        %1016 = vmatmul.f32.gmra.mxu0 %v995
        %v1017 = vpop.f32.mrf.mxu0
        %v1018 = vadd.f32 %v989, %v1017
        %1019 = vdwg.mxu0
        %v1021 = vsel %vm993, %v951, 0
        %v1024 = vsel %vm993, %v965, 0
        %1026 = vmatpush.xpose.msra.mxu0 0.0
        %1027 = vmatpush.xpose.msra.mxu0 0.0
        %1028 = vmatpush.xpose.msra.mxu0 0.0
        %1029 = vmatpush.xpose.msra.mxu0 0.0
        %1030 = vmatpush.xpose.msra.mxu0 0.0
        %1031 = vmatpush.xpose.msra.mxu0 0.0
        %1032 = vmatpush.xpose.msra.mxu0 0.0
        %1033 = vmatpush.xpose.msra.mxu0 0.0
        %1034 = vmatpush.xpose.msra.mxu0 0.0
        %1035 = vmatpush.xpose.msra.mxu0 0.0
        %1036 = vmatpush.xpose.msra.mxu0 0.0
        %1037 = vmatpush.xpose.msra.mxu0 0.0
        %1038 = vmatpush.xpose.msra.mxu0 0.0
        %1039 = vmatpush.xpose.msra.mxu0 0.0
        %1040 = vmatpush.xpose.msra.mxu0 0.0
        %1041 = vmatpush.xpose.msra.mxu0 %v1024
        %1042 = vmatmul.f32.gmra.mxu0 %v1021
        %v1043 = vpop.f32.mrf.mxu0
        %v1044 = vadd.f32 %v990, %v1043
        %1045 = vdwg.mxu0
        %v1046 = vsel %vm993, %v1018, -inf
        %1047 = vmax.xlane.f32.xlu0 %v1046
        %v1048 = vpop.xlane.xlu0 %1047
        %v1049 = vsel %vm993, %v1044, -inf
        %1050 = vmax.xlane.f32.xlu0 %v1049
        %v1051 = vpop.xlane.xlu0 %1050
        %v1052 = vsub.f32 %v1018, %v1048
        %v1053 = vsub.f32 %v1044, %v1051
        %v1054 = vmul.f32 %v1052, 1.442695
        %v1055 = vpow.pop %v1054
        %v1056 = vmul.f32 %v1053, 1.442695
        %v1057 = vpow.pop %v1056
        %v1058 = vsel %vm993, %v1055, 0.0
        %1059 = vadd.xlane.f32.xlu0 %v1058
        %v1060 = vpop.xlane.xlu0 %1059
        %v1061 = vsel %vm993, %v1057, 0.0
        %1062 = vadd.xlane.f32.xlu0 %v1061
        %v1063 = vpop.xlane.xlu0 %1062
        %v1064 = vrcp.pop %v1060
        %v1065 = vrcp.pop %v1063
        %v1066 = vmul.f32 %v1055, %v1064
        %v1067 = vmul.f32 %v1057, %v1065
        %v1069 = vsel %vm993, %v1066, 0
        %1071 = vmatpush.msra.mxu0 0.0
        %1072 = vmatpush.msra.mxu0 0.0
        %1073 = vmatpush.msra.mxu0 0.0
        %1074 = vmatpush.msra.mxu0 0.0
        %1075 = vmatpush.msra.mxu0 0.0
        %1076 = vmatpush.msra.mxu0 0.0
        %1077 = vmatpush.msra.mxu0 0.0
        %1078 = vmatpush.msra.mxu0 0.0
        %1079 = vmatpush.msra.mxu0 0.0
        %1080 = vmatpush.msra.mxu0 0.0
        %1081 = vmatpush.msra.mxu0 0.0
        %1082 = vmatpush.msra.mxu0 0.0
        %1083 = vmatpush.msra.mxu0 0.0
        %1084 = vmatpush.msra.mxu0 0.0
        %1085 = vmatpush.msra.mxu0 0.0
        %1086 = vmatpush.msra.mxu0 %v977
        %1087 = vmatmul.f32.gmra.mxu0 %v1069
        %v1088 = vpop.f32.mrf.mxu0
        %v1089 = vadd.f32 0.0, %v1088
        %1090 = vdwg.mxu0
        %v1092 = vsel %vm993, %v1067, 0
        %1094 = vmatpush.msra.mxu0 0.0
        %1095 = vmatpush.msra.mxu0 0.0
        %1096 = vmatpush.msra.mxu0 0.0
        %1097 = vmatpush.msra.mxu0 0.0
        %1098 = vmatpush.msra.mxu0 0.0
        %1099 = vmatpush.msra.mxu0 0.0
        %1100 = vmatpush.msra.mxu0 0.0
        %1101 = vmatpush.msra.mxu0 0.0
        %1102 = vmatpush.msra.mxu0 0.0
        %1103 = vmatpush.msra.mxu0 0.0
        %1104 = vmatpush.msra.mxu0 0.0
        %1105 = vmatpush.msra.mxu0 0.0
        %1106 = vmatpush.msra.mxu0 0.0
        %1107 = vmatpush.msra.mxu0 0.0
        %1108 = vmatpush.msra.mxu0 0.0
        %1109 = vmatpush.msra.mxu0 %v979
        %1110 = vmatmul.f32.gmra.mxu0 %v1092
        %v1111 = vpop.f32.mrf.mxu0
        %v1112 = vadd.f32 0.0, %v1111
        %1113 = vdwg.mxu0
        %v1114 = vpack.c.bf16 %v1112, %v1089
        %1115 = vrot.lane.b32.xlu0 %v949, 120
        %v1116 = vpop.permute.xlu0 %1115
        %1117 = vrot.lane.b32.xlu0 %v963, 120
        %v1118 = vpop.permute.xlu0 %1117
        %v1119 = vsel %vm993, %v1116, 0
        %v1121 = vsel %vm993, %v1118, 0
        %1123 = vmatpush.xpose.msra.mxu0 0.0
        %1124 = vmatpush.xpose.msra.mxu0 0.0
        %1125 = vmatpush.xpose.msra.mxu0 0.0
        %1126 = vmatpush.xpose.msra.mxu0 0.0
        %1127 = vmatpush.xpose.msra.mxu0 0.0
        %1128 = vmatpush.xpose.msra.mxu0 0.0
        %1129 = vmatpush.xpose.msra.mxu0 0.0
        %1130 = vmatpush.xpose.msra.mxu0 0.0
        %1131 = vmatpush.xpose.msra.mxu0 0.0
        %1132 = vmatpush.xpose.msra.mxu0 0.0
        %1133 = vmatpush.xpose.msra.mxu0 0.0
        %1134 = vmatpush.xpose.msra.mxu0 0.0
        %1135 = vmatpush.xpose.msra.mxu0 0.0
        %1136 = vmatpush.xpose.msra.mxu0 0.0
        %1137 = vmatpush.xpose.msra.mxu0 0.0
        %1138 = vmatpush.xpose.msra.mxu0 %v1121
        %1139 = vmatmul.f32.gmra.mxu0 %v1119
        %v1140 = vpop.f32.mrf.mxu0
        %v1141 = vadd.f32 %v989, %v1140
        %1142 = vdwg.mxu0
        %1143 = vrot.lane.b32.xlu0 %v951, 120
        %v1144 = vpop.permute.xlu0 %1143
        %1145 = vrot.lane.b32.xlu0 %v965, 120
        %v1146 = vpop.permute.xlu0 %1145
        %v1147 = vsel %vm993, %v1144, 0
        %v1149 = vsel %vm993, %v1146, 0
        %1151 = vmatpush.xpose.msra.mxu0 0.0
        %1152 = vmatpush.xpose.msra.mxu0 0.0
        %1153 = vmatpush.xpose.msra.mxu0 0.0
        %1154 = vmatpush.xpose.msra.mxu0 0.0
        %1155 = vmatpush.xpose.msra.mxu0 0.0
        %1156 = vmatpush.xpose.msra.mxu0 0.0
        %1157 = vmatpush.xpose.msra.mxu0 0.0
        %1158 = vmatpush.xpose.msra.mxu0 0.0
        %1159 = vmatpush.xpose.msra.mxu0 0.0
        %1160 = vmatpush.xpose.msra.mxu0 0.0
        %1161 = vmatpush.xpose.msra.mxu0 0.0
        %1162 = vmatpush.xpose.msra.mxu0 0.0
        %1163 = vmatpush.xpose.msra.mxu0 0.0
        %1164 = vmatpush.xpose.msra.mxu0 0.0
        %1165 = vmatpush.xpose.msra.mxu0 0.0
        %1166 = vmatpush.xpose.msra.mxu0 %v1149
        %1167 = vmatmul.f32.gmra.mxu0 %v1147
        %v1168 = vpop.f32.mrf.mxu0
        %v1169 = vadd.f32 %v990, %v1168
        %1170 = vdwg.mxu0
        %v1171 = vsel %vm993, %v1141, -inf
        %1172 = vmax.xlane.f32.xlu0 %v1171
        %v1173 = vpop.xlane.xlu0 %1172
        %v1174 = vsel %vm993, %v1169, -inf
        %1175 = vmax.xlane.f32.xlu0 %v1174
        %v1176 = vpop.xlane.xlu0 %1175
        %v1177 = vsub.f32 %v1141, %v1173
        %v1178 = vsub.f32 %v1169, %v1176
        %v1179 = vmul.f32 %v1177, 1.442695
        %v1180 = vpow.pop %v1179
        %v1181 = vmul.f32 %v1178, 1.442695
        %v1182 = vpow.pop %v1181
        %v1183 = vsel %vm993, %v1180, 0.0
        %1184 = vadd.xlane.f32.xlu0 %v1183
        %v1185 = vpop.xlane.xlu0 %1184
        %v1186 = vsel %vm993, %v1182, 0.0
        %1187 = vadd.xlane.f32.xlu0 %v1186
        %v1188 = vpop.xlane.xlu0 %1187
        %v1189 = vrcp.pop %v1185
        %v1190 = vrcp.pop %v1188
        %v1191 = vmul.f32 %v1180, %v1189
        %v1192 = vmul.f32 %v1182, %v1190
        %1194 = vrot.lane.b32.xlu0 %v977, 120
        %v1195 = vpop.permute.xlu0 %1194
        %v1198 = vsel %vm993, %v1191, 0
        %1200 = vmatpush.msra.mxu0 0.0
        %1201 = vmatpush.msra.mxu0 0.0
        %1202 = vmatpush.msra.mxu0 0.0
        %1203 = vmatpush.msra.mxu0 0.0
        %1204 = vmatpush.msra.mxu0 0.0
        %1205 = vmatpush.msra.mxu0 0.0
        %1206 = vmatpush.msra.mxu0 0.0
        %1207 = vmatpush.msra.mxu0 0.0
        %1208 = vmatpush.msra.mxu0 0.0
        %1209 = vmatpush.msra.mxu0 0.0
        %1210 = vmatpush.msra.mxu0 0.0
        %1211 = vmatpush.msra.mxu0 0.0
        %1212 = vmatpush.msra.mxu0 0.0
        %1213 = vmatpush.msra.mxu0 0.0
        %1214 = vmatpush.msra.mxu0 0.0
        %1215 = vmatpush.msra.mxu0 %v1195
        %1216 = vmatmul.f32.gmra.mxu0 %v1198
        %v1217 = vpop.f32.mrf.mxu0
        %v1218 = vadd.f32 0.0, %v1217
        %1219 = vdwg.mxu0
        %1221 = vrot.lane.b32.xlu0 %v979, 120
        %v1222 = vpop.permute.xlu0 %1221
        %v1225 = vsel %vm993, %v1192, 0
        %1227 = vmatpush.msra.mxu0 0.0
        %1228 = vmatpush.msra.mxu0 0.0
        %1229 = vmatpush.msra.mxu0 0.0
        %1230 = vmatpush.msra.mxu0 0.0
        %1231 = vmatpush.msra.mxu0 0.0
        %1232 = vmatpush.msra.mxu0 0.0
        %1233 = vmatpush.msra.mxu0 0.0
        %1234 = vmatpush.msra.mxu0 0.0
        %1235 = vmatpush.msra.mxu0 0.0
        %1236 = vmatpush.msra.mxu0 0.0
        %1237 = vmatpush.msra.mxu0 0.0
        %1238 = vmatpush.msra.mxu0 0.0
        %1239 = vmatpush.msra.mxu0 0.0
        %1240 = vmatpush.msra.mxu0 0.0
        %1241 = vmatpush.msra.mxu0 0.0
        %1242 = vmatpush.msra.mxu0 %v1222
        %1243 = vmatmul.f32.gmra.mxu0 %v1225
        %v1244 = vpop.f32.mrf.mxu0
        %v1245 = vadd.f32 0.0, %v1244
        %1246 = vdwg.mxu0
        %v1247 = vpack.c.bf16 %v1245, %v1218
        %v1249 = vsel %vm993, %v1247, 0
        %vm1251 = vcmask 1043456
        %v1253 = vsel %vm1251, %v984, 0
        %1255 = vmatpush.bf16.msra.mxu0 0
        %1256 = vmatpush.bf16.msra.mxu0 0
        %1257 = vmatpush.bf16.msra.mxu0 0
        %1258 = vmatpush.bf16.msra.mxu0 0
        %1259 = vmatpush.bf16.msra.mxu0 0
        %1260 = vmatpush.bf16.msra.mxu0 0
        %1261 = vmatpush.bf16.msra.mxu0 0
        %1262 = vmatpush.bf16.msra.mxu0 %v1253
        %1263 = vmatmul.bf16.gmra.mxu0 %v1249
        %v1264 = vpop.f32.mrf.mxu0
        %v1265 = vadd.f32 0.0, %v1264
        %v1266 = vpop.f32.mrf.mxu0
        %v1267 = vadd.f32 0.0, %v1266
        %1268 = vdwg.mxu0
        %v1270 = vsel %vm993, %v1114, 0
        %v1273 = vsel %vm1251, %v983, 0
        %1275 = vmatpush.bf16.msra.mxu0 0
        %1276 = vmatpush.bf16.msra.mxu0 0
        %1277 = vmatpush.bf16.msra.mxu0 0
        %1278 = vmatpush.bf16.msra.mxu0 0
        %1279 = vmatpush.bf16.msra.mxu0 0
        %1280 = vmatpush.bf16.msra.mxu0 0
        %1281 = vmatpush.bf16.msra.mxu0 0
        %1282 = vmatpush.bf16.msra.mxu0 %v1273
        %1283 = vmatmul.bf16.gmra.mxu0 %v1270
        %v1284 = vpop.f32.mrf.mxu0
        %v1285 = vadd.f32 %v1265, %v1284
        %v1286 = vpop.f32.mrf.mxu0
        %v1287 = vadd.f32 %v1267, %v1286
        %1288 = vdwg.mxu0
        %1289 = vrot.lane.b32.xlu0 %v949, 112
        %v1290 = vpop.permute.xlu0 %1289
        %1291 = vrot.lane.b32.xlu0 %v963, 112
        %v1292 = vpop.permute.xlu0 %1291
        %v1293 = vsel %vm993, %v1290, 0
        %v1295 = vsel %vm993, %v1292, 0
        %1297 = vmatpush.xpose.msra.mxu0 0.0
        %1298 = vmatpush.xpose.msra.mxu0 0.0
        %1299 = vmatpush.xpose.msra.mxu0 0.0
        %1300 = vmatpush.xpose.msra.mxu0 0.0
        %1301 = vmatpush.xpose.msra.mxu0 0.0
        %1302 = vmatpush.xpose.msra.mxu0 0.0
        %1303 = vmatpush.xpose.msra.mxu0 0.0
        %1304 = vmatpush.xpose.msra.mxu0 0.0
        %1305 = vmatpush.xpose.msra.mxu0 0.0
        %1306 = vmatpush.xpose.msra.mxu0 0.0
        %1307 = vmatpush.xpose.msra.mxu0 0.0
        %1308 = vmatpush.xpose.msra.mxu0 0.0
        %1309 = vmatpush.xpose.msra.mxu0 0.0
        %1310 = vmatpush.xpose.msra.mxu0 0.0
        %1311 = vmatpush.xpose.msra.mxu0 0.0
        %1312 = vmatpush.xpose.msra.mxu0 %v1295
        %1313 = vmatmul.f32.gmra.mxu0 %v1293
        %v1314 = vpop.f32.mrf.mxu0
        %v1315 = vadd.f32 %v989, %v1314
        %1316 = vdwg.mxu0
        %1317 = vrot.lane.b32.xlu0 %v951, 112
        %v1318 = vpop.permute.xlu0 %1317
        %1319 = vrot.lane.b32.xlu0 %v965, 112
        %v1320 = vpop.permute.xlu0 %1319
        %v1321 = vsel %vm993, %v1318, 0
        %v1323 = vsel %vm993, %v1320, 0
        %1325 = vmatpush.xpose.msra.mxu0 0.0
        %1326 = vmatpush.xpose.msra.mxu0 0.0
        %1327 = vmatpush.xpose.msra.mxu0 0.0
        %1328 = vmatpush.xpose.msra.mxu0 0.0
        %1329 = vmatpush.xpose.msra.mxu0 0.0
        %1330 = vmatpush.xpose.msra.mxu0 0.0
        %1331 = vmatpush.xpose.msra.mxu0 0.0
        %1332 = vmatpush.xpose.msra.mxu0 0.0
        %1333 = vmatpush.xpose.msra.mxu0 0.0
        %1334 = vmatpush.xpose.msra.mxu0 0.0
        %1335 = vmatpush.xpose.msra.mxu0 0.0
        %1336 = vmatpush.xpose.msra.mxu0 0.0
        %1337 = vmatpush.xpose.msra.mxu0 0.0
        %1338 = vmatpush.xpose.msra.mxu0 0.0
        %1339 = vmatpush.xpose.msra.mxu0 0.0
        %1340 = vmatpush.xpose.msra.mxu0 %v1323
        %1341 = vmatmul.f32.gmra.mxu0 %v1321
        %v1342 = vpop.f32.mrf.mxu0
        %v1343 = vadd.f32 %v990, %v1342
        %1344 = vdwg.mxu0
        %v1345 = vsel %vm993, %v1315, -inf
        %1346 = vmax.xlane.f32.xlu0 %v1345
        %v1347 = vpop.xlane.xlu0 %1346
        %v1348 = vsel %vm993, %v1343, -inf
        %1349 = vmax.xlane.f32.xlu0 %v1348
        %v1350 = vpop.xlane.xlu0 %1349
        %v1351 = vsub.f32 %v1315, %v1347
        %v1352 = vsub.f32 %v1343, %v1350
        %v1353 = vmul.f32 %v1351, 1.442695
        %v1354 = vpow.pop %v1353
        %v1355 = vmul.f32 %v1352, 1.442695
        %v1356 = vpow.pop %v1355
        %v1357 = vsel %vm993, %v1354, 0.0
        %1358 = vadd.xlane.f32.xlu0 %v1357
        %v1359 = vpop.xlane.xlu0 %1358
        %v1360 = vsel %vm993, %v1356, 0.0
        %1361 = vadd.xlane.f32.xlu0 %v1360
        %v1362 = vpop.xlane.xlu0 %1361
        %v1363 = vrcp.pop %v1359
        %v1364 = vrcp.pop %v1362
        %v1365 = vmul.f32 %v1354, %v1363
        %v1366 = vmul.f32 %v1356, %v1364
        %1367 = vrot.lane.b32.xlu0 %v977, 112
        %v1368 = vpop.permute.xlu0 %1367
        %v1371 = vsel %vm993, %v1365, 0
        %1373 = vmatpush.msra.mxu0 0.0
        %1374 = vmatpush.msra.mxu0 0.0
        %1375 = vmatpush.msra.mxu0 0.0
        %1376 = vmatpush.msra.mxu0 0.0
        %1377 = vmatpush.msra.mxu0 0.0
        %1378 = vmatpush.msra.mxu0 0.0
        %1379 = vmatpush.msra.mxu0 0.0
        %1380 = vmatpush.msra.mxu0 0.0
        %1381 = vmatpush.msra.mxu0 0.0
        %1382 = vmatpush.msra.mxu0 0.0
        %1383 = vmatpush.msra.mxu0 0.0
        %1384 = vmatpush.msra.mxu0 0.0
        %1385 = vmatpush.msra.mxu0 0.0
        %1386 = vmatpush.msra.mxu0 0.0
        %1387 = vmatpush.msra.mxu0 0.0
        %1388 = vmatpush.msra.mxu0 %v1368
        %1389 = vmatmul.f32.gmra.mxu0 %v1371
        %v1390 = vpop.f32.mrf.mxu0
        %v1391 = vadd.f32 0.0, %v1390
        %1392 = vdwg.mxu0
        %1393 = vrot.lane.b32.xlu0 %v979, 112
        %v1394 = vpop.permute.xlu0 %1393
        %v1397 = vsel %vm993, %v1366, 0
        %1399 = vmatpush.msra.mxu0 0.0
        %1400 = vmatpush.msra.mxu0 0.0
        %1401 = vmatpush.msra.mxu0 0.0
        %1402 = vmatpush.msra.mxu0 0.0
        %1403 = vmatpush.msra.mxu0 0.0
        %1404 = vmatpush.msra.mxu0 0.0
        %1405 = vmatpush.msra.mxu0 0.0
        %1406 = vmatpush.msra.mxu0 0.0
        %1407 = vmatpush.msra.mxu0 0.0
        %1408 = vmatpush.msra.mxu0 0.0
        %1409 = vmatpush.msra.mxu0 0.0
        %1410 = vmatpush.msra.mxu0 0.0
        %1411 = vmatpush.msra.mxu0 0.0
        %1412 = vmatpush.msra.mxu0 0.0
        %1413 = vmatpush.msra.mxu0 0.0
        %1414 = vmatpush.msra.mxu0 %v1394
        %1415 = vmatmul.f32.gmra.mxu0 %v1397
        %v1416 = vpop.f32.mrf.mxu0
        %v1417 = vadd.f32 0.0, %v1416
        %1418 = vdwg.mxu0
        %v1419 = vpack.c.bf16 %v1417, %v1391
        %v1421 = vsel %vm993, %v1419, 0
        %v1424 = vsel %vm1251, %v985, 0
        %1426 = vmatpush.bf16.msra.mxu0 0
        %1427 = vmatpush.bf16.msra.mxu0 0
        %1428 = vmatpush.bf16.msra.mxu0 0
        %1429 = vmatpush.bf16.msra.mxu0 0
        %1430 = vmatpush.bf16.msra.mxu0 0
        %1431 = vmatpush.bf16.msra.mxu0 0
        %1432 = vmatpush.bf16.msra.mxu0 0
        %1433 = vmatpush.bf16.msra.mxu0 %v1424
        %1434 = vmatmul.bf16.gmra.mxu0 %v1421
        %v1435 = vpop.f32.mrf.mxu0
        %v1436 = vadd.f32 0.0, %v1435
        %v1437 = vpop.f32.mrf.mxu0
        %v1438 = vadd.f32 0.0, %v1437
        %1439 = vdwg.mxu0
        %v1440 = vadd.f32 %v1285, %v1436
        %v1441 = vadd.f32 %v1287, %v1438
        %1442 = vrot.lane.b32.xlu0 %v949, 104
        %v1443 = vpop.permute.xlu0 %1442
        %1444 = vrot.lane.b32.xlu0 %v963, 104
        %v1445 = vpop.permute.xlu0 %1444
        %v1446 = vsel %vm993, %v1443, 0
        %v1448 = vsel %vm993, %v1445, 0
        %1450 = vmatpush.xpose.msra.mxu0 0.0
        %1451 = vmatpush.xpose.msra.mxu0 0.0
        %1452 = vmatpush.xpose.msra.mxu0 0.0
        %1453 = vmatpush.xpose.msra.mxu0 0.0
        %1454 = vmatpush.xpose.msra.mxu0 0.0
        %1455 = vmatpush.xpose.msra.mxu0 0.0
        %1456 = vmatpush.xpose.msra.mxu0 0.0
        %1457 = vmatpush.xpose.msra.mxu0 0.0
        %1458 = vmatpush.xpose.msra.mxu0 0.0
        %1459 = vmatpush.xpose.msra.mxu0 0.0
        %1460 = vmatpush.xpose.msra.mxu0 0.0
        %1461 = vmatpush.xpose.msra.mxu0 0.0
        %1462 = vmatpush.xpose.msra.mxu0 0.0
        %1463 = vmatpush.xpose.msra.mxu0 0.0
        %1464 = vmatpush.xpose.msra.mxu0 0.0
        %1465 = vmatpush.xpose.msra.mxu0 %v1448
        %1466 = vmatmul.f32.gmra.mxu0 %v1446
        %v1467 = vpop.f32.mrf.mxu0
        %v1468 = vadd.f32 %v989, %v1467
        %1469 = vdwg.mxu0
        %1470 = vrot.lane.b32.xlu0 %v951, 104
        %v1471 = vpop.permute.xlu0 %1470
        %1472 = vrot.lane.b32.xlu0 %v965, 104
        %v1473 = vpop.permute.xlu0 %1472
        %v1474 = vsel %vm993, %v1471, 0
        %v1476 = vsel %vm993, %v1473, 0
        %1478 = vmatpush.xpose.msra.mxu0 0.0
        %1479 = vmatpush.xpose.msra.mxu0 0.0
        %1480 = vmatpush.xpose.msra.mxu0 0.0
        %1481 = vmatpush.xpose.msra.mxu0 0.0
        %1482 = vmatpush.xpose.msra.mxu0 0.0
        %1483 = vmatpush.xpose.msra.mxu0 0.0
        %1484 = vmatpush.xpose.msra.mxu0 0.0
        %1485 = vmatpush.xpose.msra.mxu0 0.0
        %1486 = vmatpush.xpose.msra.mxu0 0.0
        %1487 = vmatpush.xpose.msra.mxu0 0.0
        %1488 = vmatpush.xpose.msra.mxu0 0.0
        %1489 = vmatpush.xpose.msra.mxu0 0.0
        %1490 = vmatpush.xpose.msra.mxu0 0.0
        %1491 = vmatpush.xpose.msra.mxu0 0.0
        %1492 = vmatpush.xpose.msra.mxu0 0.0
        %1493 = vmatpush.xpose.msra.mxu0 %v1476
        %1494 = vmatmul.f32.gmra.mxu0 %v1474
        %v1495 = vpop.f32.mrf.mxu0
        %v1496 = vadd.f32 %v990, %v1495
        %1497 = vdwg.mxu0
        %v1498 = vsel %vm993, %v1468, -inf
        %1499 = vmax.xlane.f32.xlu0 %v1498
        %v1500 = vpop.xlane.xlu0 %1499
        %v1501 = vsel %vm993, %v1496, -inf
        %1502 = vmax.xlane.f32.xlu0 %v1501
        %v1503 = vpop.xlane.xlu0 %1502
        %v1504 = vsub.f32 %v1468, %v1500
        %v1505 = vsub.f32 %v1496, %v1503
        %v1506 = vmul.f32 %v1504, 1.442695
        %v1507 = vpow.pop %v1506
        %v1508 = vmul.f32 %v1505, 1.442695
        %v1509 = vpow.pop %v1508
        %v1510 = vsel %vm993, %v1507, 0.0
        %1511 = vadd.xlane.f32.xlu0 %v1510
        %v1512 = vpop.xlane.xlu0 %1511
        %v1513 = vsel %vm993, %v1509, 0.0
        %1514 = vadd.xlane.f32.xlu0 %v1513
        %v1515 = vpop.xlane.xlu0 %1514
        %v1516 = vrcp.pop %v1512
        %v1517 = vrcp.pop %v1515
        %v1518 = vmul.f32 %v1507, %v1516
        %v1519 = vmul.f32 %v1509, %v1517
        %1520 = vrot.lane.b32.xlu0 %v977, 104
        %v1521 = vpop.permute.xlu0 %1520
        %v1524 = vsel %vm993, %v1518, 0
        %1526 = vmatpush.msra.mxu0 0.0
        %1527 = vmatpush.msra.mxu0 0.0
        %1528 = vmatpush.msra.mxu0 0.0
        %1529 = vmatpush.msra.mxu0 0.0
        %1530 = vmatpush.msra.mxu0 0.0
        %1531 = vmatpush.msra.mxu0 0.0
        %1532 = vmatpush.msra.mxu0 0.0
        %1533 = vmatpush.msra.mxu0 0.0
        %1534 = vmatpush.msra.mxu0 0.0
        %1535 = vmatpush.msra.mxu0 0.0
        %1536 = vmatpush.msra.mxu0 0.0
        %1537 = vmatpush.msra.mxu0 0.0
        %1538 = vmatpush.msra.mxu0 0.0
        %1539 = vmatpush.msra.mxu0 0.0
        %1540 = vmatpush.msra.mxu0 0.0
        %1541 = vmatpush.msra.mxu0 %v1521
        %1542 = vmatmul.f32.gmra.mxu0 %v1524
        %v1543 = vpop.f32.mrf.mxu0
        %v1544 = vadd.f32 0.0, %v1543
        %1545 = vdwg.mxu0
        %1546 = vrot.lane.b32.xlu0 %v979, 104
        %v1547 = vpop.permute.xlu0 %1546
        %v1550 = vsel %vm993, %v1519, 0
        %1552 = vmatpush.msra.mxu0 0.0
        %1553 = vmatpush.msra.mxu0 0.0
        %1554 = vmatpush.msra.mxu0 0.0
        %1555 = vmatpush.msra.mxu0 0.0
        %1556 = vmatpush.msra.mxu0 0.0
        %1557 = vmatpush.msra.mxu0 0.0
        %1558 = vmatpush.msra.mxu0 0.0
        %1559 = vmatpush.msra.mxu0 0.0
        %1560 = vmatpush.msra.mxu0 0.0
        %1561 = vmatpush.msra.mxu0 0.0
        %1562 = vmatpush.msra.mxu0 0.0
        %1563 = vmatpush.msra.mxu0 0.0
        %1564 = vmatpush.msra.mxu0 0.0
        %1565 = vmatpush.msra.mxu0 0.0
        %1566 = vmatpush.msra.mxu0 0.0
        %1567 = vmatpush.msra.mxu0 %v1547
        %1568 = vmatmul.f32.gmra.mxu0 %v1550
        %v1569 = vpop.f32.mrf.mxu0
        %v1570 = vadd.f32 0.0, %v1569
        %1571 = vdwg.mxu0
        %v1572 = vpack.c.bf16 %v1570, %v1544
        %v1574 = vsel %vm993, %v1572, 0
        %v1577 = vsel %vm1251, %v986, 0
        %1579 = vmatpush.bf16.msra.mxu0 0
        %1580 = vmatpush.bf16.msra.mxu0 0
        %1581 = vmatpush.bf16.msra.mxu0 0
        %1582 = vmatpush.bf16.msra.mxu0 0
        %1583 = vmatpush.bf16.msra.mxu0 0
        %1584 = vmatpush.bf16.msra.mxu0 0
        %1585 = vmatpush.bf16.msra.mxu0 0
        %1586 = vmatpush.bf16.msra.mxu0 %v1577
        %1587 = vmatmul.bf16.gmra.mxu0 %v1574
        %v1588 = vpop.f32.mrf.mxu0
        %v1589 = vadd.f32 0.0, %v1588
        %v1590 = vpop.f32.mrf.mxu0
        %v1591 = vadd.f32 0.0, %v1590
        %1592 = vdwg.mxu0
        %v1593 = vadd.f32 %v1440, %v1589
        %v1594 = vadd.f32 %v1441, %v1591
        %v1595 = vperm.slane %v765, 0
        %v1596 = vadd.f32 %v1593, %v1595
        %v1597 = vadd.f32 %v1594, %v1595
        %v1598 = vadd.f32 %v1596, %v763
        %v1599 = vadd.f32 %v1597, %v764
        %1600 = vadd.xlane.f32.xlu0 %v1598
        %v1601 = vpop.xlane.xlu0 %1600
        %1602 = vadd.xlane.f32.xlu0 %v1599
        %v1603 = vpop.xlane.xlu0 %1602
        %v1604 = vmul.f32 %v1601, 0.03125
        %v1605 = vmul.f32 %v1603, 0.03125
        %v1606 = vsub.f32 %v1598, %v1604
        %v1607 = vsub.f32 %v1599, %v1605
        %v1608 = vsel %vm769, 1, 0
        %vm1609 = vcmp.eq.s32.totalorder %v1608, 1
        %v1610 = vsel %vm1609, %v1606, 0.0
        %v1611 = vsel %vm1609, %v1607, 0.0
        %v1612 = vmul.f32 %v1610, %v1610
        %v1613 = vmul.f32 %v1611, %v1611
        %1614 = vadd.xlane.f32.xlu0 %v1612
        %v1615 = vpop.xlane.xlu0 %1614
        %1616 = vadd.xlane.f32.xlu0 %v1613
        %v1617 = vpop.xlane.xlu0 %1616
        %v1618 = vmul.f32 %v1615, 0.03125
        %v1619 = vmul.f32 %v1617, 0.03125
        %v1620 = vadd.f32 %v1618, 1e-05
        %v1621 = vadd.f32 %v1619, 1e-05
        %v1622 = vrsqrt.pop %v1620
        %v1623 = vmul.f32 %v1622, %v1620
        %v1624 = vmul.f32 %v1623, %v1622
        %v1625 = vmul.f32 0.5, %v1624
        %v1626 = vsub.f32 1.5, %v1625
        %v1627 = vmul.f32 %v1622, %v1626
        %vm1628 = vweird.f32 %v1620
        %vm1629 = vweird.f32 %v1622
        %vm1630 = vmor %vm1628, %vm1629
        %v1631 = vsel %vm1630, %v1622, %v1627
        %v1632 = vrsqrt.pop %v1621
        %v1633 = vmul.f32 %v1632, %v1621
        %v1634 = vmul.f32 %v1633, %v1632
        %v1635 = vmul.f32 0.5, %v1634
        %v1636 = vsub.f32 1.5, %v1635
        %v1637 = vmul.f32 %v1632, %v1636
        %vm1638 = vweird.f32 %v1621
        %vm1639 = vweird.f32 %v1632
        %vm1640 = vmor %vm1638, %vm1639
        %v1641 = vsel %vm1640, %v1632, %v1637
        %v1642 = vmul.f32 %v1610, %v1631
        %v1643 = vmul.f32 %v1611, %v1641
        %v1644 = vperm.slane %v765, 1
        %v1645 = vmul.f32 %v1642, %v1644
        %v1646 = vmul.f32 %v1643, %v1644
        %v1647 = vperm.slane %v765, 2
        %v1648 = vadd.f32 %v1645, %v1647
        %v1649 = vadd.f32 %v1646, %v1647
        %v1650 = vpack.c.bf16 %v1649, %v1648
        %v1651 = vld [vmem:[%s732] sm:$0xf]
        %v1652 = vld [vmem:[%s732 + $0x4] sm:$0xf]
        %v1653 = vld [vmem:[%s732 + $0x8] sm:$0xf]
        %v1654 = vld [vmem:[%s732 + $0xc] sm:$0xf]
        %v1655 = vld [vmem:[%s732 + $0x10] sm:$0xf]
        %v1656 = vld [vmem:[%s732 + $0x14] sm:$0xf]
        %v1657 = vld [vmem:[%s732 + $0x18] sm:$0xf]
        %v1658 = vld [vmem:[%s732 + $0x1c] sm:$0xf]
        %v1659 = vld [vmem:[%s732 + $0x20] sm:$0xf]
        %v1660 = vld [vmem:[%s732 + $0x24] sm:$0xf]
        %v1661 = vld [vmem:[%s732 + $0x28] sm:$0xf]
        %v1662 = vld [vmem:[%s732 + $0x2c] sm:$0xf]
        %v1663 = vld [vmem:[%s732 + $0x30] sm:$0xf]
        %v1664 = vld [vmem:[%s732 + $0x34] sm:$0xf]
        %v1665 = vld [vmem:[%s732 + $0x38] sm:$0xf]
        %v1666 = vld [vmem:[%s732 + $0x3c] sm:$0xf]
        %v1667 = vperm.slane %v765, 3
        %v1684 = vunpack.c.l.b16 %v1651
        %v1685 = vunpack.c.l.b16 %v1652
        %v1686 = vunpack.c.l.b16 %v1653
        %v1687 = vunpack.c.l.b16 %v1654
        %v1688 = vunpack.c.l.b16 %v1655
        %v1689 = vunpack.c.l.b16 %v1656
        %v1690 = vunpack.c.l.b16 %v1657
        %v1691 = vunpack.c.l.b16 %v1658
        %v1692 = vunpack.c.l.b16 %v1659
        %v1693 = vunpack.c.l.b16 %v1660
        %v1694 = vunpack.c.l.b16 %v1661
        %v1695 = vunpack.c.l.b16 %v1662
        %v1696 = vunpack.c.l.b16 %v1663
        %v1697 = vunpack.c.l.b16 %v1664
        %v1698 = vunpack.c.l.b16 %v1665
        %v1699 = vunpack.c.l.b16 %v1666
        %v1700 = vpack.c.b16 %v1685, %v1684
        %v1701 = vpack.c.b16 %v1687, %v1686
        %v1702 = vpack.c.b16 %v1689, %v1688
        %v1703 = vpack.c.b16 %v1691, %v1690
        %v1704 = vpack.c.b16 %v1693, %v1692
        %v1705 = vpack.c.b16 %v1695, %v1694
        %v1706 = vpack.c.b16 %v1697, %v1696
        %v1707 = vpack.c.b16 %v1699, %v1698
        %1716 = vmatpush.bf16.msra.mxu0 %v1707
        %1717 = vmatpush.bf16.msra.mxu0 %v1706
        %1718 = vmatpush.bf16.msra.mxu0 %v1705
        %1719 = vmatpush.bf16.msra.mxu0 %v1704
        %1720 = vmatpush.bf16.msra.mxu0 %v1703
        %1721 = vmatpush.bf16.msra.mxu0 %v1702
        %1722 = vmatpush.bf16.msra.mxu0 %v1701
        %1723 = vmatpush.bf16.msra.mxu0 %v1700
        %1724 = vmatmul.bf16.gmra.mxu0 %v1650
        %v1725 = vpop.f32.mrf.mxu0
        %v1726 = vadd.f32 %v1667, %v1725
        %v1727 = vpop.f32.mrf.mxu0
        %v1728 = vadd.f32 %v1667, %v1727
        %1729 = vdwg.mxu0
        %v1730 = vld [vmem:[%s1] sm:$0xf]
        %v1731 = vld [vmem:[%s1 + $0x4] sm:$0xf]
        %v1732 = vld [vmem:[%s1 + $0x8] sm:$0xf]
        %v1733 = vld [vmem:[%s1 + $0xc] sm:$0xf]
        %v1734 = vld [vmem:[%s614] sm:$0xff]
        %v1735 = vld [vmem:[%s614 + $0x8] sm:$0xff]
        %v1736 = vld [vmem:[%s614 + $0x10] sm:$0xff]
        %v1737 = vld [vmem:[%s614 + $0x18] sm:$0xff]
        %v1738 = vld [vmem:[%s614 + $0x20] sm:$0xff]
        %v1739 = vld [vmem:[%s614 + $0x28] sm:$0xff]
        %v1740 = vld [vmem:[%s614 + $0x30] sm:$0xff]
        %v1741 = vld [vmem:[%s614 + $0x38] sm:$0xff]
        %v1742 = vld [vmem:[%s614 + $0x40] sm:$0xff]
        %v1743 = vld [vmem:[%s614 + $0x48] sm:$0xff]
        %v1744 = vld [vmem:[%s614 + $0x50] sm:$0xff]
        %v1745 = vld [vmem:[%s614 + $0x58] sm:$0xff]
        %v1746 = vld [vmem:[%s614 + $0x60] sm:$0xff]
        %v1747 = vld [vmem:[%s614 + $0x68] sm:$0xff]
        %v1748 = vld [vmem:[%s614 + $0x70] sm:$0xff]
        %v1749 = vld [vmem:[%s614 + $0x78] sm:$0xff]
        %v1750 = vld [vmem:[%s745] sm:$0x3]
        %v1752 = vperm.slane %v1750, 0
        %v1753 = vperm.slane %v1750, 1
        %v1760 = vunpack.c.l.b16 %v1730
        %v1761 = vunpack.c.l.b16 %v1731
        %v1762 = vunpack.c.l.b16 %v1732
        %v1763 = vunpack.c.l.b16 %v1733
        %v1764 = vpack.c.b16 %v1761, %v1760
        %v1765 = vpack.c.b16 %v1763, %v1762
        %v1784 = vunpack.c.l.b16 %v1734
        %v1785 = vunpack.c.h.b16 %v1734
        %v1786 = vunpack.c.l.b16 %v1735
        %v1787 = vunpack.c.h.b16 %v1735
        %v1788 = vunpack.c.l.b16 %v1736
        %v1789 = vunpack.c.h.b16 %v1736
        %v1790 = vunpack.c.l.b16 %v1737
        %v1791 = vunpack.c.h.b16 %v1737
        %v1792 = vunpack.c.l.b16 %v1738
        %v1793 = vunpack.c.h.b16 %v1738
        %v1794 = vunpack.c.l.b16 %v1739
        %v1795 = vunpack.c.h.b16 %v1739
        %v1796 = vunpack.c.l.b16 %v1740
        %v1797 = vunpack.c.h.b16 %v1740
        %v1798 = vunpack.c.l.b16 %v1741
        %v1799 = vunpack.c.h.b16 %v1741
        %v1800 = vunpack.c.l.b16 %v1742
        %v1801 = vunpack.c.h.b16 %v1742
        %v1802 = vunpack.c.l.b16 %v1743
        %v1803 = vunpack.c.h.b16 %v1743
        %v1804 = vunpack.c.l.b16 %v1744
        %v1805 = vunpack.c.h.b16 %v1744
        %v1806 = vunpack.c.l.b16 %v1745
        %v1807 = vunpack.c.h.b16 %v1745
        %v1808 = vunpack.c.l.b16 %v1746
        %v1809 = vunpack.c.h.b16 %v1746
        %v1810 = vunpack.c.l.b16 %v1747
        %v1811 = vunpack.c.h.b16 %v1747
        %v1812 = vunpack.c.l.b16 %v1748
        %v1813 = vunpack.c.h.b16 %v1748
        %v1814 = vunpack.c.l.b16 %v1749
        %v1815 = vunpack.c.h.b16 %v1749
        %v1816 = vpack.c.b16 %v1786, %v1784
        %v1817 = vpack.c.b16 %v1787, %v1785
        %v1818 = vpack.c.b16 %v1790, %v1788
        %v1819 = vpack.c.b16 %v1791, %v1789
        %v1820 = vpack.c.b16 %v1794, %v1792
        %v1821 = vpack.c.b16 %v1795, %v1793
        %v1822 = vpack.c.b16 %v1798, %v1796
        %v1823 = vpack.c.b16 %v1799, %v1797
        %v1824 = vpack.c.b16 %v1802, %v1800
        %v1825 = vpack.c.b16 %v1803, %v1801
        %v1826 = vpack.c.b16 %v1806, %v1804
        %v1827 = vpack.c.b16 %v1807, %v1805
        %v1828 = vpack.c.b16 %v1810, %v1808
        %v1829 = vpack.c.b16 %v1811, %v1809
        %v1830 = vpack.c.b16 %v1814, %v1812
        %v1831 = vpack.c.b16 %v1815, %v1813
        %1848 = vmatpush.bf16.msra.mxu0 %v1830
        %1849 = vmatpush.bf16.msra.mxu0 %v1828
        %1850 = vmatpush.bf16.msra.mxu0 %v1826
        %1851 = vmatpush.bf16.msra.mxu0 %v1824
        %1852 = vmatpush.bf16.msra.mxu0 %v1822
        %1853 = vmatpush.bf16.msra.mxu0 %v1820
        %1854 = vmatpush.bf16.msra.mxu0 %v1818
        %1855 = vmatpush.bf16.msra.mxu0 %v1816
        %1856 = vmatmul.bf16.gmra.mxu0 %v1764
        %v1857 = vpop.f32.mrf.mxu0
        %v1858 = vadd.f32 %v1752, %v1857
        %v1859 = vpop.f32.mrf.mxu0
        %v1860 = vadd.f32 %v1752, %v1859
        %1861 = vmatmul.bf16.gmra.mxu0 %v1765
        %v1862 = vpop.f32.mrf.mxu0
        %v1863 = vadd.f32 %v1752, %v1862
        %v1864 = vpop.f32.mrf.mxu0
        %v1865 = vadd.f32 %v1752, %v1864
        %1866 = vdwg.mxu0
        %1867 = vmatpush.bf16.msra.mxu0 %v1831
        %1868 = vmatpush.bf16.msra.mxu0 %v1829
        %1869 = vmatpush.bf16.msra.mxu0 %v1827
        %1870 = vmatpush.bf16.msra.mxu0 %v1825
        %1871 = vmatpush.bf16.msra.mxu0 %v1823
        %1872 = vmatpush.bf16.msra.mxu0 %v1821
        %1873 = vmatpush.bf16.msra.mxu0 %v1819
        %1874 = vmatpush.bf16.msra.mxu0 %v1817
        %1875 = vmatmul.bf16.gmra.mxu0 %v1764
        %v1876 = vpop.f32.mrf.mxu0
        %v1877 = vadd.f32 %v1753, %v1876
        %v1878 = vpop.f32.mrf.mxu0
        %v1879 = vadd.f32 %v1753, %v1878
        %1880 = vmatmul.bf16.gmra.mxu0 %v1765
        %v1881 = vpop.f32.mrf.mxu0
        %v1882 = vadd.f32 %v1753, %v1881
        %v1883 = vpop.f32.mrf.mxu0
        %v1884 = vadd.f32 %v1753, %v1883
        %1885 = vdwg.mxu0
        %v1886 = vld [vmem:[%s3] sm:$0x1]
        %v1887 = vld [vmem:[%s3 + $0x1] sm:$0x1]
        %v1888 = vld [vmem:[%s737] sm:$0xf]
        %v1889 = vld [vmem:[%s737 + $0x4] sm:$0xf]
        %v1890 = vld [vmem:[%s737 + $0x8] sm:$0xf]
        %v1891 = vld [vmem:[%s737 + $0xc] sm:$0xf]
        %v1894 = vperm.slane %v1886, 0
        %v1895 = vperm.slane %v1887, 0
        %v1899 = vsel %vm993, %v1726, 0
        %v1902 = vsel %vm993, %v1858, 0
        %v1905 = vsel %vm993, %v1860, 0
        %1907 = vmatpush.xpose.msra.mxu0 0.0
        %1908 = vmatpush.xpose.msra.mxu0 0.0
        %1909 = vmatpush.xpose.msra.mxu0 0.0
        %1910 = vmatpush.xpose.msra.mxu0 0.0
        %1911 = vmatpush.xpose.msra.mxu0 0.0
        %1912 = vmatpush.xpose.msra.mxu0 0.0
        %1913 = vmatpush.xpose.msra.mxu0 0.0
        %1914 = vmatpush.xpose.msra.mxu0 0.0
        %1915 = vmatpush.xpose.msra.mxu0 0.0
        %1916 = vmatpush.xpose.msra.mxu0 0.0
        %1917 = vmatpush.xpose.msra.mxu0 0.0
        %1918 = vmatpush.xpose.msra.mxu0 0.0
        %1919 = vmatpush.xpose.msra.mxu0 0.0
        %1920 = vmatpush.xpose.msra.mxu0 0.0
        %1921 = vmatpush.xpose.msra.mxu0 %v1905
        %1922 = vmatpush.xpose.msra.mxu0 %v1902
        %1923 = vmatmul.f32.gmra.mxu0 %v1899
        %v1924 = vpop.f32.mrf.mxu0
        %v1925 = vadd.f32 %v1894, %v1924
        %1926 = vdwg.mxu0
        %v1928 = vsel %vm993, %v1728, 0
        %v1931 = vsel %vm993, %v1863, 0
        %v1934 = vsel %vm993, %v1865, 0
        %1936 = vmatpush.xpose.msra.mxu0 0.0
        %1937 = vmatpush.xpose.msra.mxu0 0.0
        %1938 = vmatpush.xpose.msra.mxu0 0.0
        %1939 = vmatpush.xpose.msra.mxu0 0.0
        %1940 = vmatpush.xpose.msra.mxu0 0.0
        %1941 = vmatpush.xpose.msra.mxu0 0.0
        %1942 = vmatpush.xpose.msra.mxu0 0.0
        %1943 = vmatpush.xpose.msra.mxu0 0.0
        %1944 = vmatpush.xpose.msra.mxu0 0.0
        %1945 = vmatpush.xpose.msra.mxu0 0.0
        %1946 = vmatpush.xpose.msra.mxu0 0.0
        %1947 = vmatpush.xpose.msra.mxu0 0.0
        %1948 = vmatpush.xpose.msra.mxu0 0.0
        %1949 = vmatpush.xpose.msra.mxu0 0.0
        %1950 = vmatpush.xpose.msra.mxu0 %v1934
        %1951 = vmatpush.xpose.msra.mxu0 %v1931
        %1952 = vmatmul.f32.gmra.mxu0 %v1928
        %v1953 = vpop.f32.mrf.mxu0
        %v1954 = vadd.f32 %v1895, %v1953
        %1955 = vdwg.mxu0
        %vm1956 = vcmask 130048
        %v1957 = vsel %vm1956, %v1925, -inf
        %1958 = vmax.xlane.f32.xlu0 %v1957
        %v1959 = vpop.xlane.xlu0 %1958
        %v1960 = vsel %vm1956, %v1954, -inf
        %1961 = vmax.xlane.f32.xlu0 %v1960
        %v1962 = vpop.xlane.xlu0 %1961
        %v1963 = vsub.f32 %v1925, %v1959
        %v1964 = vsub.f32 %v1954, %v1962
        %v1965 = vmul.f32 %v1963, 1.442695
        %v1966 = vpow.pop %v1965
        %v1967 = vmul.f32 %v1964, 1.442695
        %v1968 = vpow.pop %v1967
        %v1969 = vsel %vm1956, %v1966, 0.0
        %1970 = vadd.xlane.f32.xlu0 %v1969
        %v1971 = vpop.xlane.xlu0 %1970
        %v1972 = vsel %vm1956, %v1968, 0.0
        %1973 = vadd.xlane.f32.xlu0 %v1972
        %v1974 = vpop.xlane.xlu0 %1973
        %v1975 = vrcp.pop %v1971
        %v1976 = vrcp.pop %v1974
        %v1977 = vmul.f32 %v1966, %v1975
        %v1978 = vmul.f32 %v1968, %v1976
        %v1980 = vsel %vm1956, %v1977, 0
        %1982 = vmatpush.msra.mxu0 0.0
        %1983 = vmatpush.msra.mxu0 0.0
        %1984 = vmatpush.msra.mxu0 0.0
        %1985 = vmatpush.msra.mxu0 0.0
        %1986 = vmatpush.msra.mxu0 0.0
        %1987 = vmatpush.msra.mxu0 0.0
        %1988 = vmatpush.msra.mxu0 0.0
        %1989 = vmatpush.msra.mxu0 0.0
        %1990 = vmatpush.msra.mxu0 0.0
        %1991 = vmatpush.msra.mxu0 0.0
        %1992 = vmatpush.msra.mxu0 0.0
        %1993 = vmatpush.msra.mxu0 0.0
        %1994 = vmatpush.msra.mxu0 0.0
        %1995 = vmatpush.msra.mxu0 0.0
        %1996 = vmatpush.msra.mxu0 %v1879
        %1997 = vmatpush.msra.mxu0 %v1877
        %1998 = vmatmul.f32.gmra.mxu0 %v1980
        %v1999 = vpop.f32.mrf.mxu0
        %v2000 = vadd.f32 0.0, %v1999
        %2001 = vdwg.mxu0
        %v2003 = vsel %vm1956, %v1978, 0
        %2005 = vmatpush.msra.mxu0 0.0
        %2006 = vmatpush.msra.mxu0 0.0
        %2007 = vmatpush.msra.mxu0 0.0
        %2008 = vmatpush.msra.mxu0 0.0
        %2009 = vmatpush.msra.mxu0 0.0
        %2010 = vmatpush.msra.mxu0 0.0
        %2011 = vmatpush.msra.mxu0 0.0
        %2012 = vmatpush.msra.mxu0 0.0
        %2013 = vmatpush.msra.mxu0 0.0
        %2014 = vmatpush.msra.mxu0 0.0
        %2015 = vmatpush.msra.mxu0 0.0
        %2016 = vmatpush.msra.mxu0 0.0
        %2017 = vmatpush.msra.mxu0 0.0
        %2018 = vmatpush.msra.mxu0 0.0
        %2019 = vmatpush.msra.mxu0 %v1884
        %2020 = vmatpush.msra.mxu0 %v1882
        %2021 = vmatmul.f32.gmra.mxu0 %v2003
        %v2022 = vpop.f32.mrf.mxu0
        %v2023 = vadd.f32 0.0, %v2022
        %2024 = vdwg.mxu0
        %v2025 = vpack.c.bf16 %v2023, %v2000
        %2026 = vrot.lane.b32.xlu0 %v1726, 120
        %v2027 = vpop.permute.xlu0 %2026
        %2028 = vrot.lane.b32.xlu0 %v1858, 120
        %v2029 = vpop.permute.xlu0 %2028
        %2030 = vrot.lane.b32.xlu0 %v1860, 120
        %v2031 = vpop.permute.xlu0 %2030
        %v2032 = vsel %vm993, %v2027, 0
        %v2034 = vsel %vm993, %v2029, 0
        %v2036 = vsel %vm993, %v2031, 0
        %2038 = vmatpush.xpose.msra.mxu0 0.0
        %2039 = vmatpush.xpose.msra.mxu0 0.0
        %2040 = vmatpush.xpose.msra.mxu0 0.0
        %2041 = vmatpush.xpose.msra.mxu0 0.0
        %2042 = vmatpush.xpose.msra.mxu0 0.0
        %2043 = vmatpush.xpose.msra.mxu0 0.0
        %2044 = vmatpush.xpose.msra.mxu0 0.0
        %2045 = vmatpush.xpose.msra.mxu0 0.0
        %2046 = vmatpush.xpose.msra.mxu0 0.0
        %2047 = vmatpush.xpose.msra.mxu0 0.0
        %2048 = vmatpush.xpose.msra.mxu0 0.0
        %2049 = vmatpush.xpose.msra.mxu0 0.0
        %2050 = vmatpush.xpose.msra.mxu0 0.0
        %2051 = vmatpush.xpose.msra.mxu0 0.0
        %2052 = vmatpush.xpose.msra.mxu0 %v2036
        %2053 = vmatpush.xpose.msra.mxu0 %v2034
        %2054 = vmatmul.f32.gmra.mxu0 %v2032
        %v2055 = vpop.f32.mrf.mxu0
        %v2056 = vadd.f32 %v1894, %v2055
        %2057 = vdwg.mxu0
        %2058 = vrot.lane.b32.xlu0 %v1728, 120
        %v2059 = vpop.permute.xlu0 %2058
        %2060 = vrot.lane.b32.xlu0 %v1863, 120
        %v2061 = vpop.permute.xlu0 %2060
        %2062 = vrot.lane.b32.xlu0 %v1865, 120
        %v2063 = vpop.permute.xlu0 %2062
        %v2064 = vsel %vm993, %v2059, 0
        %v2066 = vsel %vm993, %v2061, 0
        %v2068 = vsel %vm993, %v2063, 0
        %2070 = vmatpush.xpose.msra.mxu0 0.0
        %2071 = vmatpush.xpose.msra.mxu0 0.0
        %2072 = vmatpush.xpose.msra.mxu0 0.0
        %2073 = vmatpush.xpose.msra.mxu0 0.0
        %2074 = vmatpush.xpose.msra.mxu0 0.0
        %2075 = vmatpush.xpose.msra.mxu0 0.0
        %2076 = vmatpush.xpose.msra.mxu0 0.0
        %2077 = vmatpush.xpose.msra.mxu0 0.0
        %2078 = vmatpush.xpose.msra.mxu0 0.0
        %2079 = vmatpush.xpose.msra.mxu0 0.0
        %2080 = vmatpush.xpose.msra.mxu0 0.0
        %2081 = vmatpush.xpose.msra.mxu0 0.0
        %2082 = vmatpush.xpose.msra.mxu0 0.0
        %2083 = vmatpush.xpose.msra.mxu0 0.0
        %2084 = vmatpush.xpose.msra.mxu0 %v2068
        %2085 = vmatpush.xpose.msra.mxu0 %v2066
        %2086 = vmatmul.f32.gmra.mxu0 %v2064
        %v2087 = vpop.f32.mrf.mxu0
        %v2088 = vadd.f32 %v1895, %v2087
        %2089 = vdwg.mxu0
        %v2090 = vsel %vm1956, %v2056, -inf
        %2091 = vmax.xlane.f32.xlu0 %v2090
        %v2092 = vpop.xlane.xlu0 %2091
        %v2093 = vsel %vm1956, %v2088, -inf
        %2094 = vmax.xlane.f32.xlu0 %v2093
        %v2095 = vpop.xlane.xlu0 %2094
        %v2096 = vsub.f32 %v2056, %v2092
        %v2097 = vsub.f32 %v2088, %v2095
        %v2098 = vmul.f32 %v2096, 1.442695
        %v2099 = vpow.pop %v2098
        %v2100 = vmul.f32 %v2097, 1.442695
        %v2101 = vpow.pop %v2100
        %v2102 = vsel %vm1956, %v2099, 0.0
        %2103 = vadd.xlane.f32.xlu0 %v2102
        %v2104 = vpop.xlane.xlu0 %2103
        %v2105 = vsel %vm1956, %v2101, 0.0
        %2106 = vadd.xlane.f32.xlu0 %v2105
        %v2107 = vpop.xlane.xlu0 %2106
        %v2108 = vrcp.pop %v2104
        %v2109 = vrcp.pop %v2107
        %v2110 = vmul.f32 %v2099, %v2108
        %v2111 = vmul.f32 %v2101, %v2109
        %2114 = vrot.lane.b32.xlu0 %v1877, 120
        %v2115 = vpop.permute.xlu0 %2114
        %2116 = vrot.lane.b32.xlu0 %v1879, 120
        %v2117 = vpop.permute.xlu0 %2116
        %v2121 = vsel %vm1956, %v2110, 0
        %2123 = vmatpush.msra.mxu0 0.0
        %2124 = vmatpush.msra.mxu0 0.0
        %2125 = vmatpush.msra.mxu0 0.0
        %2126 = vmatpush.msra.mxu0 0.0
        %2127 = vmatpush.msra.mxu0 0.0
        %2128 = vmatpush.msra.mxu0 0.0
        %2129 = vmatpush.msra.mxu0 0.0
        %2130 = vmatpush.msra.mxu0 0.0
        %2131 = vmatpush.msra.mxu0 0.0
        %2132 = vmatpush.msra.mxu0 0.0
        %2133 = vmatpush.msra.mxu0 0.0
        %2134 = vmatpush.msra.mxu0 0.0
        %2135 = vmatpush.msra.mxu0 0.0
        %2136 = vmatpush.msra.mxu0 0.0
        %2137 = vmatpush.msra.mxu0 %v2117
        %2138 = vmatpush.msra.mxu0 %v2115
        %2139 = vmatmul.f32.gmra.mxu0 %v2121
        %v2140 = vpop.f32.mrf.mxu0
        %v2141 = vadd.f32 0.0, %v2140
        %2142 = vdwg.mxu0
        %2145 = vrot.lane.b32.xlu0 %v1882, 120
        %v2146 = vpop.permute.xlu0 %2145
        %2147 = vrot.lane.b32.xlu0 %v1884, 120
        %v2148 = vpop.permute.xlu0 %2147
        %v2152 = vsel %vm1956, %v2111, 0
        %2154 = vmatpush.msra.mxu0 0.0
        %2155 = vmatpush.msra.mxu0 0.0
        %2156 = vmatpush.msra.mxu0 0.0
        %2157 = vmatpush.msra.mxu0 0.0
        %2158 = vmatpush.msra.mxu0 0.0
        %2159 = vmatpush.msra.mxu0 0.0
        %2160 = vmatpush.msra.mxu0 0.0
        %2161 = vmatpush.msra.mxu0 0.0
        %2162 = vmatpush.msra.mxu0 0.0
        %2163 = vmatpush.msra.mxu0 0.0
        %2164 = vmatpush.msra.mxu0 0.0
        %2165 = vmatpush.msra.mxu0 0.0
        %2166 = vmatpush.msra.mxu0 0.0
        %2167 = vmatpush.msra.mxu0 0.0
        %2168 = vmatpush.msra.mxu0 %v2148
        %2169 = vmatpush.msra.mxu0 %v2146
        %2170 = vmatmul.f32.gmra.mxu0 %v2152
        %v2171 = vpop.f32.mrf.mxu0
        %v2172 = vadd.f32 0.0, %v2171
        %2173 = vdwg.mxu0
        %v2174 = vpack.c.bf16 %v2172, %v2141
        %v2176 = vsel %vm993, %v2174, 0
        %v2179 = vsel %vm1251, %v1889, 0
        %2181 = vmatpush.bf16.msra.mxu0 0
        %2182 = vmatpush.bf16.msra.mxu0 0
        %2183 = vmatpush.bf16.msra.mxu0 0
        %2184 = vmatpush.bf16.msra.mxu0 0
        %2185 = vmatpush.bf16.msra.mxu0 0
        %2186 = vmatpush.bf16.msra.mxu0 0
        %2187 = vmatpush.bf16.msra.mxu0 0
        %2188 = vmatpush.bf16.msra.mxu0 %v2179
        %2189 = vmatmul.bf16.gmra.mxu0 %v2176
        %v2190 = vpop.f32.mrf.mxu0
        %v2191 = vadd.f32 0.0, %v2190
        %v2192 = vpop.f32.mrf.mxu0
        %v2193 = vadd.f32 0.0, %v2192
        %2194 = vdwg.mxu0
        %v2196 = vsel %vm993, %v2025, 0
        %v2199 = vsel %vm1251, %v1888, 0
        %2201 = vmatpush.bf16.msra.mxu0 0
        %2202 = vmatpush.bf16.msra.mxu0 0
        %2203 = vmatpush.bf16.msra.mxu0 0
        %2204 = vmatpush.bf16.msra.mxu0 0
        %2205 = vmatpush.bf16.msra.mxu0 0
        %2206 = vmatpush.bf16.msra.mxu0 0
        %2207 = vmatpush.bf16.msra.mxu0 0
        %2208 = vmatpush.bf16.msra.mxu0 %v2199
        %2209 = vmatmul.bf16.gmra.mxu0 %v2196
        %v2210 = vpop.f32.mrf.mxu0
        %v2211 = vadd.f32 %v2191, %v2210
        %v2212 = vpop.f32.mrf.mxu0
        %v2213 = vadd.f32 %v2193, %v2212
        %2214 = vdwg.mxu0
        %2215 = vrot.lane.b32.xlu0 %v1726, 112
        %v2216 = vpop.permute.xlu0 %2215
        %2217 = vrot.lane.b32.xlu0 %v1858, 112
        %v2218 = vpop.permute.xlu0 %2217
        %2219 = vrot.lane.b32.xlu0 %v1860, 112
        %v2220 = vpop.permute.xlu0 %2219
        %v2221 = vsel %vm993, %v2216, 0
        %v2223 = vsel %vm993, %v2218, 0
        %v2225 = vsel %vm993, %v2220, 0
        %2227 = vmatpush.xpose.msra.mxu0 0.0
        %2228 = vmatpush.xpose.msra.mxu0 0.0
        %2229 = vmatpush.xpose.msra.mxu0 0.0
        %2230 = vmatpush.xpose.msra.mxu0 0.0
        %2231 = vmatpush.xpose.msra.mxu0 0.0
        %2232 = vmatpush.xpose.msra.mxu0 0.0
        %2233 = vmatpush.xpose.msra.mxu0 0.0
        %2234 = vmatpush.xpose.msra.mxu0 0.0
        %2235 = vmatpush.xpose.msra.mxu0 0.0
        %2236 = vmatpush.xpose.msra.mxu0 0.0
        %2237 = vmatpush.xpose.msra.mxu0 0.0
        %2238 = vmatpush.xpose.msra.mxu0 0.0
        %2239 = vmatpush.xpose.msra.mxu0 0.0
        %2240 = vmatpush.xpose.msra.mxu0 0.0
        %2241 = vmatpush.xpose.msra.mxu0 %v2225
        %2242 = vmatpush.xpose.msra.mxu0 %v2223
        %2243 = vmatmul.f32.gmra.mxu0 %v2221
        %v2244 = vpop.f32.mrf.mxu0
        %v2245 = vadd.f32 %v1894, %v2244
        %2246 = vdwg.mxu0
        %2247 = vrot.lane.b32.xlu0 %v1728, 112
        %v2248 = vpop.permute.xlu0 %2247
        %2249 = vrot.lane.b32.xlu0 %v1863, 112
        %v2250 = vpop.permute.xlu0 %2249
        %2251 = vrot.lane.b32.xlu0 %v1865, 112
        %v2252 = vpop.permute.xlu0 %2251
        %v2253 = vsel %vm993, %v2248, 0
        %v2255 = vsel %vm993, %v2250, 0
        %v2257 = vsel %vm993, %v2252, 0
        %2259 = vmatpush.xpose.msra.mxu0 0.0
        %2260 = vmatpush.xpose.msra.mxu0 0.0
        %2261 = vmatpush.xpose.msra.mxu0 0.0
        %2262 = vmatpush.xpose.msra.mxu0 0.0
        %2263 = vmatpush.xpose.msra.mxu0 0.0
        %2264 = vmatpush.xpose.msra.mxu0 0.0
        %2265 = vmatpush.xpose.msra.mxu0 0.0
        %2266 = vmatpush.xpose.msra.mxu0 0.0
        %2267 = vmatpush.xpose.msra.mxu0 0.0
        %2268 = vmatpush.xpose.msra.mxu0 0.0
        %2269 = vmatpush.xpose.msra.mxu0 0.0
        %2270 = vmatpush.xpose.msra.mxu0 0.0
        %2271 = vmatpush.xpose.msra.mxu0 0.0
        %2272 = vmatpush.xpose.msra.mxu0 0.0
        %2273 = vmatpush.xpose.msra.mxu0 %v2257
        %2274 = vmatpush.xpose.msra.mxu0 %v2255
        %2275 = vmatmul.f32.gmra.mxu0 %v2253
        %v2276 = vpop.f32.mrf.mxu0
        %v2277 = vadd.f32 %v1895, %v2276
        %2278 = vdwg.mxu0
        %v2279 = vsel %vm1956, %v2245, -inf
        %2280 = vmax.xlane.f32.xlu0 %v2279
        %v2281 = vpop.xlane.xlu0 %2280
        %v2282 = vsel %vm1956, %v2277, -inf
        %2283 = vmax.xlane.f32.xlu0 %v2282
        %v2284 = vpop.xlane.xlu0 %2283
        %v2285 = vsub.f32 %v2245, %v2281
        %v2286 = vsub.f32 %v2277, %v2284
        %v2287 = vmul.f32 %v2285, 1.442695
        %v2288 = vpow.pop %v2287
        %v2289 = vmul.f32 %v2286, 1.442695
        %v2290 = vpow.pop %v2289
        %v2291 = vsel %vm1956, %v2288, 0.0
        %2292 = vadd.xlane.f32.xlu0 %v2291
        %v2293 = vpop.xlane.xlu0 %2292
        %v2294 = vsel %vm1956, %v2290, 0.0
        %2295 = vadd.xlane.f32.xlu0 %v2294
        %v2296 = vpop.xlane.xlu0 %2295
        %v2297 = vrcp.pop %v2293
        %v2298 = vrcp.pop %v2296
        %v2299 = vmul.f32 %v2288, %v2297
        %v2300 = vmul.f32 %v2290, %v2298
        %2301 = vrot.lane.b32.xlu0 %v1877, 112
        %v2302 = vpop.permute.xlu0 %2301
        %2303 = vrot.lane.b32.xlu0 %v1879, 112
        %v2304 = vpop.permute.xlu0 %2303
        %v2308 = vsel %vm1956, %v2299, 0
        %2310 = vmatpush.msra.mxu0 0.0
        %2311 = vmatpush.msra.mxu0 0.0
        %2312 = vmatpush.msra.mxu0 0.0
        %2313 = vmatpush.msra.mxu0 0.0
        %2314 = vmatpush.msra.mxu0 0.0
        %2315 = vmatpush.msra.mxu0 0.0
        %2316 = vmatpush.msra.mxu0 0.0
        %2317 = vmatpush.msra.mxu0 0.0
        %2318 = vmatpush.msra.mxu0 0.0
        %2319 = vmatpush.msra.mxu0 0.0
        %2320 = vmatpush.msra.mxu0 0.0
        %2321 = vmatpush.msra.mxu0 0.0
        %2322 = vmatpush.msra.mxu0 0.0
        %2323 = vmatpush.msra.mxu0 0.0
        %2324 = vmatpush.msra.mxu0 %v2304
        %2325 = vmatpush.msra.mxu0 %v2302
        %2326 = vmatmul.f32.gmra.mxu0 %v2308
        %v2327 = vpop.f32.mrf.mxu0
        %v2328 = vadd.f32 0.0, %v2327
        %2329 = vdwg.mxu0
        %2330 = vrot.lane.b32.xlu0 %v1882, 112
        %v2331 = vpop.permute.xlu0 %2330
        %2332 = vrot.lane.b32.xlu0 %v1884, 112
        %v2333 = vpop.permute.xlu0 %2332
        %v2337 = vsel %vm1956, %v2300, 0
        %2339 = vmatpush.msra.mxu0 0.0
        %2340 = vmatpush.msra.mxu0 0.0
        %2341 = vmatpush.msra.mxu0 0.0
        %2342 = vmatpush.msra.mxu0 0.0
        %2343 = vmatpush.msra.mxu0 0.0
        %2344 = vmatpush.msra.mxu0 0.0
        %2345 = vmatpush.msra.mxu0 0.0
        %2346 = vmatpush.msra.mxu0 0.0
        %2347 = vmatpush.msra.mxu0 0.0
        %2348 = vmatpush.msra.mxu0 0.0
        %2349 = vmatpush.msra.mxu0 0.0
        %2350 = vmatpush.msra.mxu0 0.0
        %2351 = vmatpush.msra.mxu0 0.0
        %2352 = vmatpush.msra.mxu0 0.0
        %2353 = vmatpush.msra.mxu0 %v2333
        %2354 = vmatpush.msra.mxu0 %v2331
        %2355 = vmatmul.f32.gmra.mxu0 %v2337
        %v2356 = vpop.f32.mrf.mxu0
        %v2357 = vadd.f32 0.0, %v2356
        %2358 = vdwg.mxu0
        %v2359 = vpack.c.bf16 %v2357, %v2328
        %v2361 = vsel %vm993, %v2359, 0
        %v2364 = vsel %vm1251, %v1890, 0
        %2366 = vmatpush.bf16.msra.mxu0 0
        %2367 = vmatpush.bf16.msra.mxu0 0
        %2368 = vmatpush.bf16.msra.mxu0 0
        %2369 = vmatpush.bf16.msra.mxu0 0
        %2370 = vmatpush.bf16.msra.mxu0 0
        %2371 = vmatpush.bf16.msra.mxu0 0
        %2372 = vmatpush.bf16.msra.mxu0 0
        %2373 = vmatpush.bf16.msra.mxu0 %v2364
        %2374 = vmatmul.bf16.gmra.mxu0 %v2361
        %v2375 = vpop.f32.mrf.mxu0
        %v2376 = vadd.f32 0.0, %v2375
        %v2377 = vpop.f32.mrf.mxu0
        %v2378 = vadd.f32 0.0, %v2377
        %2379 = vdwg.mxu0
        %v2380 = vadd.f32 %v2211, %v2376
        %v2381 = vadd.f32 %v2213, %v2378
        %2382 = vrot.lane.b32.xlu0 %v1726, 104
        %v2383 = vpop.permute.xlu0 %2382
        %2384 = vrot.lane.b32.xlu0 %v1858, 104
        %v2385 = vpop.permute.xlu0 %2384
        %2386 = vrot.lane.b32.xlu0 %v1860, 104
        %v2387 = vpop.permute.xlu0 %2386
        %v2388 = vsel %vm993, %v2383, 0
        %v2390 = vsel %vm993, %v2385, 0
        %v2392 = vsel %vm993, %v2387, 0
        %2394 = vmatpush.xpose.msra.mxu0 0.0
        %2395 = vmatpush.xpose.msra.mxu0 0.0
        %2396 = vmatpush.xpose.msra.mxu0 0.0
        %2397 = vmatpush.xpose.msra.mxu0 0.0
        %2398 = vmatpush.xpose.msra.mxu0 0.0
        %2399 = vmatpush.xpose.msra.mxu0 0.0
        %2400 = vmatpush.xpose.msra.mxu0 0.0
        %2401 = vmatpush.xpose.msra.mxu0 0.0
        %2402 = vmatpush.xpose.msra.mxu0 0.0
        %2403 = vmatpush.xpose.msra.mxu0 0.0
        %2404 = vmatpush.xpose.msra.mxu0 0.0
        %2405 = vmatpush.xpose.msra.mxu0 0.0
        %2406 = vmatpush.xpose.msra.mxu0 0.0
        %2407 = vmatpush.xpose.msra.mxu0 0.0
        %2408 = vmatpush.xpose.msra.mxu0 %v2392
        %2409 = vmatpush.xpose.msra.mxu0 %v2390
        %2410 = vmatmul.f32.gmra.mxu0 %v2388
        %v2411 = vpop.f32.mrf.mxu0
        %v2412 = vadd.f32 %v1894, %v2411
        %2413 = vdwg.mxu0
        %2414 = vrot.lane.b32.xlu0 %v1728, 104
        %v2415 = vpop.permute.xlu0 %2414
        %2416 = vrot.lane.b32.xlu0 %v1863, 104
        %v2417 = vpop.permute.xlu0 %2416
        %2418 = vrot.lane.b32.xlu0 %v1865, 104
        %v2419 = vpop.permute.xlu0 %2418
        %v2420 = vsel %vm993, %v2415, 0
        %v2422 = vsel %vm993, %v2417, 0
        %v2424 = vsel %vm993, %v2419, 0
        %2426 = vmatpush.xpose.msra.mxu0 0.0
        %2427 = vmatpush.xpose.msra.mxu0 0.0
        %2428 = vmatpush.xpose.msra.mxu0 0.0
        %2429 = vmatpush.xpose.msra.mxu0 0.0
        %2430 = vmatpush.xpose.msra.mxu0 0.0
        %2431 = vmatpush.xpose.msra.mxu0 0.0
        %2432 = vmatpush.xpose.msra.mxu0 0.0
        %2433 = vmatpush.xpose.msra.mxu0 0.0
        %2434 = vmatpush.xpose.msra.mxu0 0.0
        %2435 = vmatpush.xpose.msra.mxu0 0.0
        %2436 = vmatpush.xpose.msra.mxu0 0.0
        %2437 = vmatpush.xpose.msra.mxu0 0.0
        %2438 = vmatpush.xpose.msra.mxu0 0.0
        %2439 = vmatpush.xpose.msra.mxu0 0.0
        %2440 = vmatpush.xpose.msra.mxu0 %v2424
        %2441 = vmatpush.xpose.msra.mxu0 %v2422
        %2442 = vmatmul.f32.gmra.mxu0 %v2420
        %v2443 = vpop.f32.mrf.mxu0
        %v2444 = vadd.f32 %v1895, %v2443
        %2445 = vdwg.mxu0
        %v2446 = vsel %vm1956, %v2412, -inf
        %2447 = vmax.xlane.f32.xlu0 %v2446
        %v2448 = vpop.xlane.xlu0 %2447
        %v2449 = vsel %vm1956, %v2444, -inf
        %2450 = vmax.xlane.f32.xlu0 %v2449
        %v2451 = vpop.xlane.xlu0 %2450
        %v2452 = vsub.f32 %v2412, %v2448
        %v2453 = vsub.f32 %v2444, %v2451
        %v2454 = vmul.f32 %v2452, 1.442695
        %v2455 = vpow.pop %v2454
        %v2456 = vmul.f32 %v2453, 1.442695
        %v2457 = vpow.pop %v2456
        %v2458 = vsel %vm1956, %v2455, 0.0
        %2459 = vadd.xlane.f32.xlu0 %v2458
        %v2460 = vpop.xlane.xlu0 %2459
        %v2461 = vsel %vm1956, %v2457, 0.0
        %2462 = vadd.xlane.f32.xlu0 %v2461
        %v2463 = vpop.xlane.xlu0 %2462
        %v2464 = vrcp.pop %v2460
        %v2465 = vrcp.pop %v2463
        %v2466 = vmul.f32 %v2455, %v2464
        %v2467 = vmul.f32 %v2457, %v2465
        %2468 = vrot.lane.b32.xlu0 %v1877, 104
        %v2469 = vpop.permute.xlu0 %2468
        %2470 = vrot.lane.b32.xlu0 %v1879, 104
        %v2471 = vpop.permute.xlu0 %2470
        %v2475 = vsel %vm1956, %v2466, 0
        %2477 = vmatpush.msra.mxu0 0.0
        %2478 = vmatpush.msra.mxu0 0.0
        %2479 = vmatpush.msra.mxu0 0.0
        %2480 = vmatpush.msra.mxu0 0.0
        %2481 = vmatpush.msra.mxu0 0.0
        %2482 = vmatpush.msra.mxu0 0.0
        %2483 = vmatpush.msra.mxu0 0.0
        %2484 = vmatpush.msra.mxu0 0.0
        %2485 = vmatpush.msra.mxu0 0.0
        %2486 = vmatpush.msra.mxu0 0.0
        %2487 = vmatpush.msra.mxu0 0.0
        %2488 = vmatpush.msra.mxu0 0.0
        %2489 = vmatpush.msra.mxu0 0.0
        %2490 = vmatpush.msra.mxu0 0.0
        %2491 = vmatpush.msra.mxu0 %v2471
        %2492 = vmatpush.msra.mxu0 %v2469
        %2493 = vmatmul.f32.gmra.mxu0 %v2475
        %v2494 = vpop.f32.mrf.mxu0
        %v2495 = vadd.f32 0.0, %v2494
        %2496 = vdwg.mxu0
        %2497 = vrot.lane.b32.xlu0 %v1882, 104
        %v2498 = vpop.permute.xlu0 %2497
        %2499 = vrot.lane.b32.xlu0 %v1884, 104
        %v2500 = vpop.permute.xlu0 %2499
        %v2504 = vsel %vm1956, %v2467, 0
        %2506 = vmatpush.msra.mxu0 0.0
        %2507 = vmatpush.msra.mxu0 0.0
        %2508 = vmatpush.msra.mxu0 0.0
        %2509 = vmatpush.msra.mxu0 0.0
        %2510 = vmatpush.msra.mxu0 0.0
        %2511 = vmatpush.msra.mxu0 0.0
        %2512 = vmatpush.msra.mxu0 0.0
        %2513 = vmatpush.msra.mxu0 0.0
        %2514 = vmatpush.msra.mxu0 0.0
        %2515 = vmatpush.msra.mxu0 0.0
        %2516 = vmatpush.msra.mxu0 0.0
        %2517 = vmatpush.msra.mxu0 0.0
        %2518 = vmatpush.msra.mxu0 0.0
        %2519 = vmatpush.msra.mxu0 0.0
        %2520 = vmatpush.msra.mxu0 %v2500
        %2521 = vmatpush.msra.mxu0 %v2498
        %2522 = vmatmul.f32.gmra.mxu0 %v2504
        %v2523 = vpop.f32.mrf.mxu0
        %v2524 = vadd.f32 0.0, %v2523
        %2525 = vdwg.mxu0
        %v2526 = vpack.c.bf16 %v2524, %v2495
        %v2528 = vsel %vm993, %v2526, 0
        %v2531 = vsel %vm1251, %v1891, 0
        %2533 = vmatpush.bf16.msra.mxu0 0
        %2534 = vmatpush.bf16.msra.mxu0 0
        %2535 = vmatpush.bf16.msra.mxu0 0
        %2536 = vmatpush.bf16.msra.mxu0 0
        %2537 = vmatpush.bf16.msra.mxu0 0
        %2538 = vmatpush.bf16.msra.mxu0 0
        %2539 = vmatpush.bf16.msra.mxu0 0
        %2540 = vmatpush.bf16.msra.mxu0 %v2531
        %2541 = vmatmul.bf16.gmra.mxu0 %v2528
        %v2542 = vpop.f32.mrf.mxu0
        %v2543 = vadd.f32 0.0, %v2542
        %v2544 = vpop.f32.mrf.mxu0
        %v2545 = vadd.f32 0.0, %v2544
        %2546 = vdwg.mxu0
        %v2547 = vadd.f32 %v2380, %v2543
        %v2548 = vadd.f32 %v2381, %v2545
        %v2549 = vperm.slane %v765, 4
        %v2550 = vadd.f32 %v2547, %v2549
        %v2551 = vadd.f32 %v2548, %v2549
        %v2552 = vadd.f32 %v2550, %v1648
        %v2553 = vadd.f32 %v2551, %v1649
        %2554 = vadd.xlane.f32.xlu0 %v2552
        %v2555 = vpop.xlane.xlu0 %2554
        %2556 = vadd.xlane.f32.xlu0 %v2553
        %v2557 = vpop.xlane.xlu0 %2556
        %v2558 = vmul.f32 %v2555, 0.03125
        %v2559 = vmul.f32 %v2557, 0.03125
        %v2560 = vsub.f32 %v2552, %v2558
        %v2561 = vsub.f32 %v2553, %v2559
        %v2562 = vsel %vm1609, %v2560, 0.0
        %v2563 = vsel %vm1609, %v2561, 0.0
        %v2564 = vmul.f32 %v2562, %v2562
        %v2565 = vmul.f32 %v2563, %v2563
        %2566 = vadd.xlane.f32.xlu0 %v2564
        %v2567 = vpop.xlane.xlu0 %2566
        %2568 = vadd.xlane.f32.xlu0 %v2565
        %v2569 = vpop.xlane.xlu0 %2568
        %v2570 = vmul.f32 %v2567, 0.03125
        %v2571 = vmul.f32 %v2569, 0.03125
        %v2572 = vadd.f32 %v2570, 1e-05
        %v2573 = vadd.f32 %v2571, 1e-05
        %v2574 = vrsqrt.pop %v2572
        %v2575 = vmul.f32 %v2574, %v2572
        %v2576 = vmul.f32 %v2575, %v2574
        %v2577 = vmul.f32 0.5, %v2576
        %v2578 = vsub.f32 1.5, %v2577
        %v2579 = vmul.f32 %v2574, %v2578
        %vm2580 = vweird.f32 %v2572
        %vm2581 = vweird.f32 %v2574
        %vm2582 = vmor %vm2580, %vm2581
        %v2583 = vsel %vm2582, %v2574, %v2579
        %v2584 = vrsqrt.pop %v2573
        %v2585 = vmul.f32 %v2584, %v2573
        %v2586 = vmul.f32 %v2585, %v2584
        %v2587 = vmul.f32 0.5, %v2586
        %v2588 = vsub.f32 1.5, %v2587
        %v2589 = vmul.f32 %v2584, %v2588
        %vm2590 = vweird.f32 %v2573
        %vm2591 = vweird.f32 %v2584
        %vm2592 = vmor %vm2590, %vm2591
        %v2593 = vsel %vm2592, %v2584, %v2589
        %v2594 = vmul.f32 %v2562, %v2583
        %v2595 = vmul.f32 %v2563, %v2593
        %v2596 = vperm.slane %v765, 5
        %v2597 = vmul.f32 %v2594, %v2596
        %v2598 = vmul.f32 %v2595, %v2596
        %v2599 = vperm.slane %v765, 6
        %v2600 = vadd.f32 %v2597, %v2599
        %v2601 = vadd.f32 %v2598, %v2599
        %v2602 = vpack.c.bf16 %v2601, %v2600
        %v2603 = vld [vmem:[%s624] sm:$0xf]
        %v2604 = vld [vmem:[%s624 + $0x4] sm:$0xf]
        %v2605 = vld [vmem:[%s624 + $0x8] sm:$0xf]
        %v2606 = vld [vmem:[%s624 + $0xc] sm:$0xf]
        %v2607 = vld [vmem:[%s624 + $0x10] sm:$0xf]
        %v2608 = vld [vmem:[%s624 + $0x14] sm:$0xf]
        %v2609 = vld [vmem:[%s624 + $0x18] sm:$0xf]
        %v2610 = vld [vmem:[%s624 + $0x1c] sm:$0xf]
        %v2611 = vld [vmem:[%s624 + $0x20] sm:$0xf]
        %v2612 = vld [vmem:[%s624 + $0x24] sm:$0xf]
        %v2613 = vld [vmem:[%s624 + $0x28] sm:$0xf]
        %v2614 = vld [vmem:[%s624 + $0x2c] sm:$0xf]
        %v2615 = vld [vmem:[%s624 + $0x30] sm:$0xf]
        %v2616 = vld [vmem:[%s624 + $0x34] sm:$0xf]
        %v2617 = vld [vmem:[%s624 + $0x38] sm:$0xf]
        %v2618 = vld [vmem:[%s624 + $0x3c] sm:$0xf]
        %v2619 = vld [vmem:[%s748] sm:$0x1]
        %v2621 = vperm.slane %v2619, 0
        %v2639 = vunpack.c.l.b16 %v2603
        %v2640 = vunpack.c.l.b16 %v2604
        %v2641 = vunpack.c.l.b16 %v2605
        %v2642 = vunpack.c.l.b16 %v2606
        %v2643 = vunpack.c.l.b16 %v2607
        %v2644 = vunpack.c.l.b16 %v2608
        %v2645 = vunpack.c.l.b16 %v2609
        %v2646 = vunpack.c.l.b16 %v2610
        %v2647 = vunpack.c.l.b16 %v2611
        %v2648 = vunpack.c.l.b16 %v2612
        %v2649 = vunpack.c.l.b16 %v2613
        %v2650 = vunpack.c.l.b16 %v2614
        %v2651 = vunpack.c.l.b16 %v2615
        %v2652 = vunpack.c.l.b16 %v2616
        %v2653 = vunpack.c.l.b16 %v2617
        %v2654 = vunpack.c.l.b16 %v2618
        %v2655 = vpack.c.b16 %v2640, %v2639
        %v2656 = vpack.c.b16 %v2642, %v2641
        %v2657 = vpack.c.b16 %v2644, %v2643
        %v2658 = vpack.c.b16 %v2646, %v2645
        %v2659 = vpack.c.b16 %v2648, %v2647
        %v2660 = vpack.c.b16 %v2650, %v2649
        %v2661 = vpack.c.b16 %v2652, %v2651
        %v2662 = vpack.c.b16 %v2654, %v2653
        %2671 = vmatpush.bf16.msra.mxu0 %v2662
        %2672 = vmatpush.bf16.msra.mxu0 %v2661
        %2673 = vmatpush.bf16.msra.mxu0 %v2660
        %2674 = vmatpush.bf16.msra.mxu0 %v2659
        %2675 = vmatpush.bf16.msra.mxu0 %v2658
        %2676 = vmatpush.bf16.msra.mxu0 %v2657
        %2677 = vmatpush.bf16.msra.mxu0 %v2656
        %2678 = vmatpush.bf16.msra.mxu0 %v2655
        %2679 = vmatmul.bf16.gmra.mxu0 %v2602
        %v2680 = vpop.f32.mrf.mxu0
        %v2681 = vadd.f32 %v2621, %v2680
        %v2682 = vpop.f32.mrf.mxu0
        %v2683 = vadd.f32 %v2621, %v2682
        %2684 = vdwg.mxu0
        %v2685 = vmax.f32 %v2681, 0.0
        %v2686 = vmax.f32 %v2683, 0.0
        %v2687 = vpack.c.bf16 %v2686, %v2685
        %v2688 = vld [vmem:[%s634] sm:$0xf]
        %v2689 = vld [vmem:[%s634 + $0x4] sm:$0xf]
        %v2690 = vld [vmem:[%s634 + $0x8] sm:$0xf]
        %v2691 = vld [vmem:[%s634 + $0xc] sm:$0xf]
        %v2692 = vld [vmem:[%s634 + $0x10] sm:$0xf]
        %v2693 = vld [vmem:[%s634 + $0x14] sm:$0xf]
        %v2694 = vld [vmem:[%s634 + $0x18] sm:$0xf]
        %v2695 = vld [vmem:[%s634 + $0x1c] sm:$0xf]
        %v2696 = vld [vmem:[%s634 + $0x20] sm:$0xf]
        %v2697 = vld [vmem:[%s634 + $0x24] sm:$0xf]
        %v2698 = vld [vmem:[%s634 + $0x28] sm:$0xf]
        %v2699 = vld [vmem:[%s634 + $0x2c] sm:$0xf]
        %v2700 = vld [vmem:[%s634 + $0x30] sm:$0xf]
        %v2701 = vld [vmem:[%s634 + $0x34] sm:$0xf]
        %v2702 = vld [vmem:[%s634 + $0x38] sm:$0xf]
        %v2703 = vld [vmem:[%s634 + $0x3c] sm:$0xf]
        %v2704 = vperm.slane %v765, 7
        %v2721 = vunpack.c.l.b16 %v2688
        %v2722 = vunpack.c.l.b16 %v2689
        %v2723 = vunpack.c.l.b16 %v2690
        %v2724 = vunpack.c.l.b16 %v2691
        %v2725 = vunpack.c.l.b16 %v2692
        %v2726 = vunpack.c.l.b16 %v2693
        %v2727 = vunpack.c.l.b16 %v2694
        %v2728 = vunpack.c.l.b16 %v2695
        %v2729 = vunpack.c.l.b16 %v2696
        %v2730 = vunpack.c.l.b16 %v2697
        %v2731 = vunpack.c.l.b16 %v2698
        %v2732 = vunpack.c.l.b16 %v2699
        %v2733 = vunpack.c.l.b16 %v2700
        %v2734 = vunpack.c.l.b16 %v2701
        %v2735 = vunpack.c.l.b16 %v2702
        %v2736 = vunpack.c.l.b16 %v2703
        %v2737 = vpack.c.b16 %v2722, %v2721
        %v2738 = vpack.c.b16 %v2724, %v2723
        %v2739 = vpack.c.b16 %v2726, %v2725
        %v2740 = vpack.c.b16 %v2728, %v2727
        %v2741 = vpack.c.b16 %v2730, %v2729
        %v2742 = vpack.c.b16 %v2732, %v2731
        %v2743 = vpack.c.b16 %v2734, %v2733
        %v2744 = vpack.c.b16 %v2736, %v2735
        %2753 = vmatpush.bf16.msra.mxu0 %v2744
        %2754 = vmatpush.bf16.msra.mxu0 %v2743
        %2755 = vmatpush.bf16.msra.mxu0 %v2742
        %2756 = vmatpush.bf16.msra.mxu0 %v2741
        %2757 = vmatpush.bf16.msra.mxu0 %v2740
        %2758 = vmatpush.bf16.msra.mxu0 %v2739
        %2759 = vmatpush.bf16.msra.mxu0 %v2738
        %2760 = vmatpush.bf16.msra.mxu0 %v2737
        %2761 = vmatmul.bf16.gmra.mxu0 %v2687
        %v2762 = vpop.f32.mrf.mxu0
        %v2763 = vadd.f32 %v2704, %v2762
        %v2764 = vpop.f32.mrf.mxu0
        %v2765 = vadd.f32 %v2704, %v2764
        %2766 = vdwg.mxu0
        %v2767 = vadd.f32 %v2763, %v2600
        %v2768 = vadd.f32 %v2765, %v2601
        %2769 = vadd.xlane.f32.xlu0 %v2767
        %v2770 = vpop.xlane.xlu0 %2769
        %2771 = vadd.xlane.f32.xlu0 %v2768
        %v2772 = vpop.xlane.xlu0 %2771
        %v2773 = vmul.f32 %v2770, 0.03125
        %v2774 = vmul.f32 %v2772, 0.03125
        %v2775 = vsub.f32 %v2767, %v2773
        %v2776 = vsub.f32 %v2768, %v2774
        %v2777 = vsel %vm1609, %v2775, 0.0
        %v2778 = vsel %vm1609, %v2776, 0.0
        %v2779 = vmul.f32 %v2777, %v2777
        %v2780 = vmul.f32 %v2778, %v2778
        %2781 = vadd.xlane.f32.xlu0 %v2779
        %v2782 = vpop.xlane.xlu0 %2781
        %2783 = vadd.xlane.f32.xlu0 %v2780
        %v2784 = vpop.xlane.xlu0 %2783
        %v2785 = vmul.f32 %v2782, 0.03125
        %v2786 = vmul.f32 %v2784, 0.03125
        %v2787 = vadd.f32 %v2785, 1e-05
        %v2788 = vadd.f32 %v2786, 1e-05
        %v2789 = vrsqrt.pop %v2787
        %v2790 = vmul.f32 %v2789, %v2787
        %v2791 = vmul.f32 %v2790, %v2789
        %v2792 = vmul.f32 0.5, %v2791
        %v2793 = vsub.f32 1.5, %v2792
        %v2794 = vmul.f32 %v2789, %v2793
        %vm2795 = vweird.f32 %v2787
        %vm2796 = vweird.f32 %v2789
        %vm2797 = vmor %vm2795, %vm2796
        %v2798 = vsel %vm2797, %v2789, %v2794
        %v2799 = vrsqrt.pop %v2788
        %v2800 = vmul.f32 %v2799, %v2788
        %v2801 = vmul.f32 %v2800, %v2799
        %v2802 = vmul.f32 0.5, %v2801
        %v2803 = vsub.f32 1.5, %v2802
        %v2804 = vmul.f32 %v2799, %v2803
        %vm2805 = vweird.f32 %v2788
        %vm2806 = vweird.f32 %v2799
        %vm2807 = vmor %vm2805, %vm2806
        %v2808 = vsel %vm2807, %v2799, %v2804
        %v2809 = vmul.f32 %v2777, %v2798
        %v2810 = vmul.f32 %v2778, %v2808
        %v2811 = vperm.slane %v766, 0
        %v2812 = vmul.f32 %v2809, %v2811
        %v2813 = vmul.f32 %v2810, %v2811
        %v2814 = vperm.slane %v766, 1
        %v2815 = vadd.f32 %v2812, %v2814
        %v2816 = vadd.f32 %v2813, %v2814
        %2817 = vst [vmem:[#allocation10] sm:$0xff] %v2815
        %2818 = vst [vmem:[#allocation10 + $0x8] sm:$0xff] %v2816
        // Predicated region
        $region101: #{decoder_forward.1} parent=79 // pred_check
          %p2819 = pneg %p419
        $region102: #{decoder_forward.1} parent=79 // pred_check_branch
          %2821 = sbr.rel (%p2819) target = $region104
        $region103: #{decoder_forward.1} parent=79 // pred_region
          %2823 = vsyncadd [#allocation4], 0
          %s2824 = sshll.u32 [#allocation10], 4
          %s2825 = int_to_ptr.vmem [resolvable:$true] %s2824
          %s2826 = sshll.u32 %s15, 4
          %s2827 = int_to_ptr.hbm [resolvable:$true] %s2826
          %2832 = dma.vmem_to_hbm [thread:$0]  %s2825, 256, %s2827, [#allocation4], 128, 128, 8
        $region104: #{decoder_forward.1} parent=79 // pred_fallthru
          _
        // Predicated region
        $region105: #{decoder_forward.1} parent=79 // pred_check
          %p2833 = pneg %p419
        $region106: #{decoder_forward.1} parent=79 // pred_check_branch
          %2835 = sbr.rel (%p2833) target = $region108
        $region107: #{decoder_forward.1} parent=79 // pred_region
          %2837 = dma.done [#allocation4], 256
        $region108: #{decoder_forward.1} parent=79 // pred_fallthru
          _
      $region80: #{decoder_forward.1} parent=5 // pred_fallthru
        _
      %p2838 = scmp.le.s32.totalorder 2, %s31
      // Predicated region
      $region109: #{decoder_forward.1} parent=5 // pred_check
        %p2839 = pneg %p2838
      $region110: #{decoder_forward.1} parent=5 // pred_check_branch
        %2841 = sbr.rel (%p2839) target = $region112
      $region111: #{decoder_forward.1} parent=5 // pred_region
        %s2842 = ssub.s32 %s31, 2
      $region112: #{decoder_forward.1} parent=5 // pred_fallthru
        _
    $region6: #{decoder_forward.1} parent=1 // loop_footer
      %s35 = sadd.s32 1, %s31
    $region7: #{decoder_forward.1} parent=1 // loop_footer_branch
      %30 = sbr.rel target = $region3
    $region8: #{decoder_forward.1} parent=1 // loop_exit
      _
    %2843 = vsyncpa [#allocation3], 1
    %s2844 = scalar_lea.sflag [#allocation3], 1
    %2845 = vsyncpa %s2844, 1
    %2846 = vsyncpa [#allocation6], 1
    %s2847 = scalar_lea.sflag [#allocation6], 1
    %2848 = vsyncpa %s2847, 1
    %2849 = vsyncpa [#allocation9], 1
    %s2850 = scalar_lea.sflag [#allocation9], 1
    %2851 = vsyncpa %s2850, 1
    %2852 = vsyncpa [#allocation4], 1
    %s2853 = scalar_lea.sflag [#allocation4], 1
    %2854 = vsyncpa %s2853, 1

</llo_original>
